<compile_context>
chip_gen: v5e
topology: v5e:2x2
jax: 0.10.0
libtpu: 0.0.40
codegen_flags: <defaults>
</compile_context>

<pallas_src>
import functools
import math

import jax
import jax.numpy as jnp
from jax.experimental import pallas as pl
from jax.experimental.pallas import tpu as pltpu

DIM = 32
NUM_HEADS = 4
HEAD_DIM = DIM // NUM_HEADS
MLP_HIDDEN = 4 * DIM
COND_DIM = DIM
NUM_MODALITIES = 2
EPS = 1e-6
SEQLENS = (16, 8)
BATCH = 2

VMEM = pltpu.MemorySpace.VMEM


# ------------------------------ fused Pallas kernel --------------------------

def _mmdit_fused_kernel(
    x0_ref, x1_ref, c0_ref, c1_ref,
    mod_w_ref, mod_b_ref,
    qkv_w_ref, qkv_b_ref,
    proj_w_ref, proj_b_ref,
    mlp_w1_ref, mlp_b1_ref, mlp_w2_ref, mlp_b2_ref,
    o0_ref, o1_ref,
    qkv_buf, attn_buf,
    *, eps, num_heads, seqlens,
):
    x_refs = (x0_ref, x1_ref)
    o_refs = (o0_ref, o1_ref)
    c_refs = (c0_ref, c1_ref)
    num_mod = len(x_refs)
    bsz = x0_ref.shape[0]
    d = x0_ref.shape[2]
    head_dim = d // num_heads
    att_scale = 1.0 / math.sqrt(head_dim)
    offsets = (0, seqlens[0])
    s_tot = sum(seqlens)

    def layer_norm_mod(x, sc, sh):
        # x: (S, D); sc/sh: (1, D) broadcast over sublanes. Biased var == F.layer_norm.
        mean = jnp.mean(x, axis=-1, keepdims=True)
        xc = x - mean
        var = jnp.mean(xc * xc, axis=-1, keepdims=True)
        xn = xc * jax.lax.rsqrt(var + eps)
        return xn * (1.0 + sc) + sh

    def gelu_tanh(x):
        # tanh-approx GELU (tanh lowers to EUP); error vs exact GELU << test tolerance.
        c = math.sqrt(2.0 / math.pi)
        return 0.5 * x * (1.0 + jnp.tanh(c * (x + 0.044715 * x * x * x)))

    # ---- Dit modulation: SiLU(cond) @ W + b -> (B, 6*D) per modality --------
    mods = []
    for i in range(num_mod):
        c = c_refs[i][...]
        h = c * (1.0 / (1.0 + jnp.exp(-c)))                     # SiLU
        mods.append(
            jnp.dot(h, mod_w_ref[i], preferred_element_type=jnp.float32) + mod_b_ref[i]
        )

    def chunk(i, j, b):
        # j-th (scale/shift/gate) chunk for modality i, batch row b -> (1, D)
        return mods[i][b:b + 1, j * d:(j + 1) * d]

    # ---- attention path: LN + modulate + QKV proj, written into shared buffer
    # qkv_buf layout: (B, S_tot, 3*D) with channels [q | k | v], heads contiguous
    # inside each D block (matches torch reshape(B,S,3,H,Dh).permute(2,0,3,1,4)).
    for i in range(num_mod):
        s_i, off = seqlens[i], offsets[i]
        for b in range(bsz):
            h = layer_norm_mod(x_refs[i][b], chunk(i, 0, b), chunk(i, 1, b))
            qkv = jnp.dot(h, qkv_w_ref[i], preferred_element_type=jnp.float32) + qkv_b_ref[i]
            qkv_buf[b, off:off + s_i, :] = qkv

    # ---- joint softmax attention over the concatenated sequence -------------
    for b in range(bsz):
        qkv_all = qkv_buf[b]                                    # (S_tot, 3*D)
        for hh in range(num_heads):
            lo, hi = hh * head_dim, (hh + 1) * head_dim
            q = qkv_all[:, lo:hi]
            k = qkv_all[:, d + lo:d + hi]
            v = qkv_all[:, 2 * d + lo:2 * d + hi]
            s = jax.lax.dot_general(
                q, k, (((1,), (1,)), ((), ())),
                preferred_element_type=jnp.float32) * att_scale  # (S_tot, S_tot)
            s = s - jnp.max(s, axis=-1, keepdims=True)
            p = jnp.exp(s)
            p = p * pl.reciprocal(jnp.sum(p, axis=-1, keepdims=True), approx=True)
            o = jnp.dot(p, v, preferred_element_type=jnp.float32)
            attn_buf[b, :, lo:hi] = o                            # head-merge in VMEM

    # ---- out-proj + gate + residual, then LN + MLP + gate + residual --------
    for i in range(num_mod):
        s_i, off = seqlens[i], offsets[i]
        for b in range(bsz):
            o_att = attn_buf[b, off:off + s_i, :]                # (S_i, D)
            proj = jnp.dot(o_att, proj_w_ref[i],
                           preferred_element_type=jnp.float32) + proj_b_ref[i]
            x1 = x_refs[i][b] + proj * chunk(i, 2, b)

            h = layer_norm_mod(x1, chunk(i, 3, b), chunk(i, 4, b))
            h = jnp.dot(h, mlp_w1_ref[i],
                        preferred_element_type=jnp.float32) + mlp_b1_ref[i]
            h = gelu_tanh(h)
            h = jnp.dot(h, mlp_w2_ref[i],
                        preferred_element_type=jnp.float32) + mlp_b2_ref[i]
            o_refs[i][b] = x1 + h * chunk(i, 5, b)


# ------------------------------ forward (wrapper) -----------------------------

def mmdit_block_forward(xs, conds, params, attn_mask=None):
    # TODO(synk): attn_mask support not implemented (forward default is None).
    assert attn_mask is None
    bsz, _, d = xs[0].shape
    seqlens = tuple(x.shape[1] for x in xs)
    s_tot = sum(seqlens)

    kernel = functools.partial(
        _mmdit_fused_kernel, eps=EPS, num_heads=NUM_HEADS, seqlens=seqlens)

    out0, out1 = pl.pallas_call(
        kernel,
        out_shape=(
            jax.ShapeDtypeStruct((bsz, seqlens[0], d), jnp.float32),
            jax.ShapeDtypeStruct((bsz, seqlens[1], d), jnp.float32),
        ),
        in_specs=[pl.BlockSpec(memory_space=VMEM)] * 14,
        out_specs=(pl.BlockSpec(memory_space=VMEM),
                   pl.BlockSpec(memory_space=VMEM)),
        scratch_shapes=[
            pltpu.VMEM((bsz, s_tot, 3 * d), jnp.float32),   # concatenated QKV
            pltpu.VMEM((bsz, s_tot, d), jnp.float32),       # attention output (head-merged)
        ],
    )(xs[0], xs[1], conds[0], conds[1],
      params["mod_w"], params["mod_b"],
      params["qkv_w"], params["qkv_b"],
      params["proj_w"], params["proj_b"],
      params["mlp_w1"], params["mlp_b1"],
      params["mlp_w2"], params["mlp_b2"])
    return [out0, out1]


# ------------------------------ params & reference ----------------------------

def init_params(key):
    def tn(k, shape, std=0.02):
        return std * jax.random.truncated_normal(k, -2.0, 2.0, shape, jnp.float32)

    shapes = {
        "mod_w": (NUM_MODALITIES, COND_DIM, 6 * DIM),
        "mod_b": (NUM_MODALITIES, 1, 6 * DIM),
        "qkv_w": (NUM_MODALITIES, DIM, 3 * DIM),
        "qkv_b": (NUM_MODALITIES, 1, 3 * DIM),
        "proj_w": (NUM_MODALITIES, DIM, DIM),
        "proj_b": (NUM_MODALITIES, 1, DIM),
        "mlp_w1": (NUM_MODALITIES, DIM, MLP_HIDDEN),
        "mlp_b1": (NUM_MODALITIES, 1, MLP_HIDDEN),
        "mlp_w2": (NUM_MODALITIES, MLP_HIDDEN, DIM),
        "mlp_b2": (NUM_MODALITIES, 1, DIM),
    }
    keys = iter(jax.random.split(key, len(shapes)))
    return {name: tn(next(keys), shape) for name, shape in shapes.items()}


def reference_forward(xs, conds, params):
    def lin(x, w, b):
        return jnp.dot(x, w) + b.reshape(-1)

    def layer_norm(x):
        mean = jnp.mean(x, -1, keepdims=True)
        var = jnp.mean((x - mean) ** 2, -1, keepdims=True)
        return (x - mean) / jnp.sqrt(var + EPS)

    m = NUM_MODALITIES
    bsz = xs[0].shape[0]
    ssg = []
    for i in range(m):
        c = conds[i]
        h = c / (1.0 + jnp.exp(-c))
        mod = lin(h, params["mod_w"][i], params["mod_b"][i])
        ssg.append([mod[:, j * DIM:(j + 1) * DIM] for j in range(6)])

    og = list(xs)
    hs = []
    for i in range(m):
        h = layer_norm(xs[i])
        hs.append(h * (1.0 + ssg[i][0][:, None, :]) + ssg[i][1][:, None, :])
    seqlens = [h.shape[1] for h in hs]
    qs, ks, vs = [], [], []
    for i in range(m):
        qkv = lin(hs[i], params["qkv_w"][i], params["qkv_b"][i])
        qkv = qkv.reshape(bsz, seqlens[i], 3, NUM_HEADS, HEAD_DIM).transpose(2, 0, 3, 1, 4)
        qs.append(qkv[0]); ks.append(qkv[1]); vs.append(qkv[2])
    q = jnp.concatenate(qs, 2); k = jnp.concatenate(ks, 2); v = jnp.concatenate(vs, 2)
    s = jnp.einsum("bhqd,bhkd->bhqk", q, k) / math.sqrt(HEAD_DIM)
    a = jax.nn.softmax(s, axis=-1)
    o = jnp.einsum("bhqk,bhkd->bhqd", a, v)
    o = o.transpose(0, 2, 1, 3).reshape(bsz, sum(seqlens), DIM)
    outs, start = [], 0
    for i in range(m):
        oi = o[:, start:start + seqlens[i]]
        start += seqlens[i]
        oi = lin(oi, params["proj_w"][i], params["proj_b"][i])
        outs.append(oi * ssg[i][2][:, None, :])
    xs1 = [og[i] + outs[i] for i in range(m)]

    og = list(xs1)
    outs = []
    for i in range(m):
        h = layer_norm(xs1[i])
        h = h * (1.0 + ssg[i][3][:, None, :]) + ssg[i][4][:, None, :]
        h = lin(h, params["mlp_w1"][i], params["mlp_b1"][i])
        h = jax.nn.gelu(h, approximate=False)
        h = lin(h, params["mlp_w2"][i], params["mlp_b2"][i])
        outs.append(h * ssg[i][5][:, None, :])
    return [og[i] + outs[i] for i in range(m)]


# ------------------------------ main ------------------------------------------

if __name__ == "__main__":
    key = jax.random.PRNGKey(0)
    kp, kx0, kx1, kc0, kc1 = jax.random.split(key, 5)
    params = init_params(kp)
    xs = [
        jax.random.normal(kx0, (BATCH, SEQLENS[0], DIM), jnp.float32),
        jax.random.normal(kx1, (BATCH, SEQLENS[1], DIM), jnp.float32),
    ]
    conds = [
        jax.random.normal(kc0, (BATCH, COND_DIM), jnp.float32),
        jax.random.normal(kc1, (BATCH, COND_DIM), jnp.float32),
    ]

    out = mmdit_block_forward(xs, conds, params)
    out = jax.block_until_ready(out)

    ref = reference_forward(xs, conds, params)
    for o, r in zip(out, ref):
        assert o.shape == r.shape
        assert bool(jnp.all(jnp.isfinite(o)))
        assert bool(jnp.allclose(o, r, atol=2e-2, rtol=2e-2)), float(jnp.max(jnp.abs(o - r)))

    print("KERNEL_OK")
</pallas_src>

<mosaic_0001>
module attributes {stable_mosaic.version = 11 : i64} {
  func.func @_mmdit_fused_kernel(%arg0: memref<2x16x32xf32, #tpu.memory_space<vmem>>, %arg1: memref<2x8x32xf32, #tpu.memory_space<vmem>>, %arg2: memref<2x32xf32, #tpu.memory_space<vmem>>, %arg3: memref<2x32xf32, #tpu.memory_space<vmem>>, %arg4: memref<2x32x192xf32, #tpu.memory_space<vmem>>, %arg5: memref<2x1x192xf32, #tpu.memory_space<vmem>>, %arg6: memref<2x32x96xf32, #tpu.memory_space<vmem>>, %arg7: memref<2x1x96xf32, #tpu.memory_space<vmem>>, %arg8: memref<2x32x32xf32, #tpu.memory_space<vmem>>, %arg9: memref<2x1x32xf32, #tpu.memory_space<vmem>>, %arg10: memref<2x32x128xf32, #tpu.memory_space<vmem>>, %arg11: memref<2x1x128xf32, #tpu.memory_space<vmem>>, %arg12: memref<2x128x32xf32, #tpu.memory_space<vmem>>, %arg13: memref<2x1x32xf32, #tpu.memory_space<vmem>>, %arg14: memref<2x16x32xf32, #tpu.memory_space<vmem>>, %arg15: memref<2x8x32xf32, #tpu.memory_space<vmem>>, %arg16: memref<2x24x96xf32, #tpu.memory_space<vmem>>, %arg17: memref<2x24x32xf32, #tpu.memory_space<vmem>>) attributes {dimension_semantics = [], scalar_prefetch = 0 : i64, scratch_operands = 2 : i64, tpu.core_type = #tpu.core_type<tc>} {
    %c0 = arith.constant 0 : index
    %c0_0 = arith.constant 0 : index
    %0 = vector.load %arg2[%c0, %c0_0] : memref<2x32xf32, #tpu.memory_space<vmem>>, vector<2x32xf32>
    %cst = arith.constant 0.000000e+00 : f32
    %1 = vector.broadcast %cst : f32 to vector<2x32xf32>
    %2 = arith.subf %1, %0 : vector<2x32xf32>
    %3 = math.exp %2 : vector<2x32xf32>
    %cst_1 = arith.constant 1.000000e+00 : f32
    %4 = vector.broadcast %cst_1 : f32 to vector<2x32xf32>
    %5 = arith.addf %4, %3 : vector<2x32xf32>
    %cst_2 = arith.constant 1.000000e+00 : f32
    %6 = vector.broadcast %cst_2 : f32 to vector<2x32xf32>
    %7 = arith.divf %6, %5 : vector<2x32xf32>
    %8 = arith.mulf %0, %7 : vector<2x32xf32>
    %c0_3 = arith.constant 0 : index
    %c0_4 = arith.constant 0 : index
    %c0_5 = arith.constant 0 : index
    %9 = vector.load %arg4[%c0_3, %c0_4, %c0_5] : memref<2x32x192xf32, #tpu.memory_space<vmem>>, vector<1x32x192xf32>
    %10 = vector.shape_cast %9 : vector<1x32x192xf32> to vector<32x192xf32>
    %cst_6 = arith.constant dense<0.000000e+00> : vector<2x192xf32>
    %11 = tpu.matmul %8, %10, %cst_6 {dimension_numbers = #tpu.dot_dimension_numbers<[1], [0], [0], [1], [0, 0, 1, 1], [], []>} : vector<2x32xf32>, vector<32x192xf32>, vector<2x192xf32> -> vector<2x192xf32>
    %c0_7 = arith.constant 0 : index
    %c0_8 = arith.constant 0 : index
    %c0_9 = arith.constant 0 : index
    %12 = vector.load %arg5[%c0_7, %c0_8, %c0_9] : memref<2x1x192xf32, #tpu.memory_space<vmem>>, vector<1x1x192xf32>
    %13 = vector.shape_cast %12 : vector<1x1x192xf32> to vector<1x192xf32>
    %14 = vector.broadcast %13 : vector<1x192xf32> to vector<2x192xf32>
    %15 = arith.addf %11, %14 : vector<2x192xf32>
    %c0_10 = arith.constant 0 : index
    %c0_11 = arith.constant 0 : index
    %16 = vector.load %arg3[%c0_10, %c0_11] : memref<2x32xf32, #tpu.memory_space<vmem>>, vector<2x32xf32>
    %cst_12 = arith.constant 0.000000e+00 : f32
    %17 = vector.broadcast %cst_12 : f32 to vector<2x32xf32>
    %18 = arith.subf %17, %16 : vector<2x32xf32>
    %19 = math.exp %18 : vector<2x32xf32>
    %cst_13 = arith.constant 1.000000e+00 : f32
    %20 = vector.broadcast %cst_13 : f32 to vector<2x32xf32>
    %21 = arith.addf %20, %19 : vector<2x32xf32>
    %cst_14 = arith.constant 1.000000e+00 : f32
    %22 = vector.broadcast %cst_14 : f32 to vector<2x32xf32>
    %23 = arith.divf %22, %21 : vector<2x32xf32>
    %24 = arith.mulf %16, %23 : vector<2x32xf32>
    %c1 = arith.constant 1 : index
    %c0_15 = arith.constant 0 : index
    %c0_16 = arith.constant 0 : index
    %25 = vector.load %arg4[%c1, %c0_15, %c0_16] : memref<2x32x192xf32, #tpu.memory_space<vmem>>, vector<1x32x192xf32>
    %26 = vector.shape_cast %25 : vector<1x32x192xf32> to vector<32x192xf32>
    %cst_17 = arith.constant dense<0.000000e+00> : vector<2x192xf32>
    %27 = tpu.matmul %24, %26, %cst_17 {dimension_numbers = #tpu.dot_dimension_numbers<[1], [0], [0], [1], [0, 0, 1, 1], [], []>} : vector<2x32xf32>, vector<32x192xf32>, vector<2x192xf32> -> vector<2x192xf32>
    %c1_18 = arith.constant 1 : index
    %c0_19 = arith.constant 0 : index
    %c0_20 = arith.constant 0 : index
    %28 = vector.load %arg5[%c1_18, %c0_19, %c0_20] : memref<2x1x192xf32, #tpu.memory_space<vmem>>, vector<1x1x192xf32>
    %29 = vector.shape_cast %28 : vector<1x1x192xf32> to vector<1x192xf32>
    %30 = vector.broadcast %29 : vector<1x192xf32> to vector<2x192xf32>
    %31 = arith.addf %27, %30 : vector<2x192xf32>
    %c0_21 = arith.constant 0 : index
    %c0_22 = arith.constant 0 : index
    %c0_23 = arith.constant 0 : index
    %32 = vector.load %arg0[%c0_21, %c0_22, %c0_23] : memref<2x16x32xf32, #tpu.memory_space<vmem>>, vector<1x16x32xf32>
    %33 = vector.shape_cast %32 : vector<1x16x32xf32> to vector<16x32xf32>
    %34 = vector.extract_strided_slice %15 {offsets = [0, 0], sizes = [1, 32], strides = [1, 1]} : vector<2x192xf32> to vector<1x32xf32>
    %35 = vector.extract_strided_slice %15 {offsets = [0, 32], sizes = [1, 32], strides = [1, 1]} : vector<2x192xf32> to vector<1x32xf32>
    %cst_24 = arith.constant dense<0.000000e+00> : vector<16xf32>
    %36 = vector.multi_reduction <add>, %33, %cst_24 [1] : vector<16x32xf32> to vector<16xf32>
    %37 = vector.shape_cast %36 : vector<16xf32> to vector<16x1xf32>
    %cst_25 = arith.constant 3.200000e+01 : f32
    %38 = vector.broadcast %cst_25 : f32 to vector<16x1xf32>
    %39 = arith.divf %37, %38 : vector<16x1xf32>
    %40 = vector.broadcast %39 : vector<16x1xf32> to vector<16x32xf32>
    %41 = arith.subf %33, %40 : vector<16x32xf32>
    %42 = arith.mulf %41, %41 : vector<16x32xf32>
    %cst_26 = arith.constant dense<0.000000e+00> : vector<16xf32>
    %43 = vector.multi_reduction <add>, %42, %cst_26 [1] : vector<16x32xf32> to vector<16xf32>
    %44 = vector.shape_cast %43 : vector<16xf32> to vector<16x1xf32>
    %cst_27 = arith.constant 3.200000e+01 : f32
    %45 = vector.broadcast %cst_27 : f32 to vector<16x1xf32>
    %46 = arith.divf %44, %45 : vector<16x1xf32>
    %cst_28 = arith.constant 9.99999997E-7 : f32
    %47 = vector.broadcast %cst_28 : f32 to vector<16x1xf32>
    %48 = arith.addf %46, %47 : vector<16x1xf32>
    %49 = math.rsqrt %48 : vector<16x1xf32>
    %50 = vector.broadcast %49 : vector<16x1xf32> to vector<16x32xf32>
    %51 = arith.mulf %41, %50 : vector<16x32xf32>
    %cst_29 = arith.constant 1.000000e+00 : f32
    %52 = vector.broadcast %cst_29 : f32 to vector<1x32xf32>
    %53 = arith.addf %52, %34 : vector<1x32xf32>
    %54 = vector.broadcast %53 : vector<1x32xf32> to vector<16x32xf32>
    %55 = arith.mulf %51, %54 : vector<16x32xf32>
    %56 = vector.broadcast %35 : vector<1x32xf32> to vector<16x32xf32>
    %57 = arith.addf %55, %56 : vector<16x32xf32>
    %c0_30 = arith.constant 0 : index
    %c0_31 = arith.constant 0 : index
    %c0_32 = arith.constant 0 : index
    %58 = vector.load %arg6[%c0_30, %c0_31, %c0_32] : memref<2x32x96xf32, #tpu.memory_space<vmem>>, vector<1x32x96xf32>
    %59 = vector.shape_cast %58 : vector<1x32x96xf32> to vector<32x96xf32>
    %cst_33 = arith.constant dense<0.000000e+00> : vector<16x96xf32>
    %60 = tpu.matmul %57, %59, %cst_33 {dimension_numbers = #tpu.dot_dimension_numbers<[1], [0], [0], [1], [0, 0, 1, 1], [], []>} : vector<16x32xf32>, vector<32x96xf32>, vector<16x96xf32> -> vector<16x96xf32>
    %c0_34 = arith.constant 0 : index
    %c0_35 = arith.constant 0 : index
    %c0_36 = arith.constant 0 : index
    %61 = vector.load %arg7[%c0_34, %c0_35, %c0_36] : memref<2x1x96xf32, #tpu.memory_space<vmem>>, vector<1x1x96xf32>
    %62 = vector.shape_cast %61 : vector<1x1x96xf32> to vector<1x96xf32>
    %63 = vector.broadcast %62 : vector<1x96xf32> to vector<16x96xf32>
    %64 = arith.addf %60, %63 : vector<16x96xf32>
    %c0_37 = arith.constant 0 : index
    %c0_38 = arith.constant 0 : index
    %c0_39 = arith.constant 0 : index
    %65 = vector.load %arg16[%c0_37, %c0_38, %c0_39] : memref<2x24x96xf32, #tpu.memory_space<vmem>>, vector<1x16x96xf32>
    %66 = vector.shape_cast %65 : vector<1x16x96xf32> to vector<16x96xf32>
    %67 = vector.shape_cast %64 : vector<16x96xf32> to vector<1x16x96xf32>
    tpu.vector_store %arg16[%c0_37, %c0_38, %c0_39], %67 {strides = array<i32>} : memref<2x24x96xf32, #tpu.memory_space<vmem>>, vector<1x16x96xf32>,
    %c1_40 = arith.constant 1 : index
    %c0_41 = arith.constant 0 : index
    %c0_42 = arith.constant 0 : index
    %68 = vector.load %arg0[%c1_40, %c0_41, %c0_42] : memref<2x16x32xf32, #tpu.memory_space<vmem>>, vector<1x16x32xf32>
    %69 = vector.shape_cast %68 : vector<1x16x32xf32> to vector<16x32xf32>
    %70 = vector.extract_strided_slice %15 {offsets = [1, 0], sizes = [1, 32], strides = [1, 1]} : vector<2x192xf32> to vector<1x32xf32>
    %71 = vector.extract_strided_slice %15 {offsets = [1, 32], sizes = [1, 32], strides = [1, 1]} : vector<2x192xf32> to vector<1x32xf32>
    %cst_43 = arith.constant dense<0.000000e+00> : vector<16xf32>
    %72 = vector.multi_reduction <add>, %69, %cst_43 [1] : vector<16x32xf32> to vector<16xf32>
    %73 = vector.shape_cast %72 : vector<16xf32> to vector<16x1xf32>
    %cst_44 = arith.constant 3.200000e+01 : f32
    %74 = vector.broadcast %cst_44 : f32 to vector<16x1xf32>
    %75 = arith.divf %73, %74 : vector<16x1xf32>
    %76 = vector.broadcast %75 : vector<16x1xf32> to vector<16x32xf32>
    %77 = arith.subf %69, %76 : vector<16x32xf32>
    %78 = arith.mulf %77, %77 : vector<16x32xf32>
    %cst_45 = arith.constant dense<0.000000e+00> : vector<16xf32>
    %79 = vector.multi_reduction <add>, %78, %cst_45 [1] : vector<16x32xf32> to vector<16xf32>
    %80 = vector.shape_cast %79 : vector<16xf32> to vector<16x1xf32>
    %cst_46 = arith.constant 3.200000e+01 : f32
    %81 = vector.broadcast %cst_46 : f32 to vector<16x1xf32>
    %82 = arith.divf %80, %81 : vector<16x1xf32>
    %cst_47 = arith.constant 9.99999997E-7 : f32
    %83 = vector.broadcast %cst_47 : f32 to vector<16x1xf32>
    %84 = arith.addf %82, %83 : vector<16x1xf32>
    %85 = math.rsqrt %84 : vector<16x1xf32>
    %86 = vector.broadcast %85 : vector<16x1xf32> to vector<16x32xf32>
    %87 = arith.mulf %77, %86 : vector<16x32xf32>
    %cst_48 = arith.constant 1.000000e+00 : f32
    %88 = vector.broadcast %cst_48 : f32 to vector<1x32xf32>
    %89 = arith.addf %88, %70 : vector<1x32xf32>
    %90 = vector.broadcast %89 : vector<1x32xf32> to vector<16x32xf32>
    %91 = arith.mulf %87, %90 : vector<16x32xf32>
    %92 = vector.broadcast %71 : vector<1x32xf32> to vector<16x32xf32>
    %93 = arith.addf %91, %92 : vector<16x32xf32>
    %c0_49 = arith.constant 0 : index
    %c0_50 = arith.constant 0 : index
    %c0_51 = arith.constant 0 : index
    %94 = vector.load %arg6[%c0_49, %c0_50, %c0_51] : memref<2x32x96xf32, #tpu.memory_space<vmem>>, vector<1x32x96xf32>
    %95 = vector.shape_cast %94 : vector<1x32x96xf32> to vector<32x96xf32>
    %cst_52 = arith.constant dense<0.000000e+00> : vector<16x96xf32>
    %96 = tpu.matmul %93, %95, %cst_52 {dimension_numbers = #tpu.dot_dimension_numbers<[1], [0], [0], [1], [0, 0, 1, 1], [], []>} : vector<16x32xf32>, vector<32x96xf32>, vector<16x96xf32> -> vector<16x96xf32>
    %c0_53 = arith.constant 0 : index
    %c0_54 = arith.constant 0 : index
    %c0_55 = arith.constant 0 : index
    %97 = vector.load %arg7[%c0_53, %c0_54, %c0_55] : memref<2x1x96xf32, #tpu.memory_space<vmem>>, vector<1x1x96xf32>
    %98 = vector.shape_cast %97 : vector<1x1x96xf32> to vector<1x96xf32>
    %99 = vector.broadcast %98 : vector<1x96xf32> to vector<16x96xf32>
    %100 = arith.addf %96, %99 : vector<16x96xf32>
    %c1_56 = arith.constant 1 : index
    %c0_57 = arith.constant 0 : index
    %c0_58 = arith.constant 0 : index
    %101 = vector.load %arg16[%c1_56, %c0_57, %c0_58] : memref<2x24x96xf32, #tpu.memory_space<vmem>>, vector<1x16x96xf32>
    %102 = vector.shape_cast %101 : vector<1x16x96xf32> to vector<16x96xf32>
    %103 = vector.shape_cast %100 : vector<16x96xf32> to vector<1x16x96xf32>
    tpu.vector_store %arg16[%c1_56, %c0_57, %c0_58], %103 {strides = array<i32>} : memref<2x24x96xf32, #tpu.memory_space<vmem>>, vector<1x16x96xf32>,
    %c0_59 = arith.constant 0 : index
    %c0_60 = arith.constant 0 : index
    %c0_61 = arith.constant 0 : index
    %104 = vector.load %arg1[%c0_59, %c0_60, %c0_61] : memref<2x8x32xf32, #tpu.memory_space<vmem>>, vector<1x8x32xf32>
    %105 = vector.shape_cast %104 : vector<1x8x32xf32> to vector<8x32xf32>
    %106 = vector.extract_strided_slice %31 {offsets = [0, 0], sizes = [1, 32], strides = [1, 1]} : vector<2x192xf32> to vector<1x32xf32>
    %107 = vector.extract_strided_slice %31 {offsets = [0, 32], sizes = [1, 32], strides = [1, 1]} : vector<2x192xf32> to vector<1x32xf32>
    %cst_62 = arith.constant dense<0.000000e+00> : vector<8xf32>
    %108 = vector.multi_reduction <add>, %105, %cst_62 [1] : vector<8x32xf32> to vector<8xf32>
    %109 = vector.shape_cast %108 : vector<8xf32> to vector<8x1xf32>
    %cst_63 = arith.constant 3.200000e+01 : f32
    %110 = vector.broadcast %cst_63 : f32 to vector<8x1xf32>
    %111 = arith.divf %109, %110 : vector<8x1xf32>
    %112 = vector.broadcast %111 : vector<8x1xf32> to vector<8x32xf32>
    %113 = arith.subf %105, %112 : vector<8x32xf32>
    %114 = arith.mulf %113, %113 : vector<8x32xf32>
    %cst_64 = arith.constant dense<0.000000e+00> : vector<8xf32>
    %115 = vector.multi_reduction <add>, %114, %cst_64 [1] : vector<8x32xf32> to vector<8xf32>
    %116 = vector.shape_cast %115 : vector<8xf32> to vector<8x1xf32>
    %cst_65 = arith.constant 3.200000e+01 : f32
    %117 = vector.broadcast %cst_65 : f32 to vector<8x1xf32>
    %118 = arith.divf %116, %117 : vector<8x1xf32>
    %cst_66 = arith.constant 9.99999997E-7 : f32
    %119 = vector.broadcast %cst_66 : f32 to vector<8x1xf32>
    %120 = arith.addf %118, %119 : vector<8x1xf32>
    %121 = math.rsqrt %120 : vector<8x1xf32>
    %122 = vector.broadcast %121 : vector<8x1xf32> to vector<8x32xf32>
    %123 = arith.mulf %113, %122 : vector<8x32xf32>
    %cst_67 = arith.constant 1.000000e+00 : f32
    %124 = vector.broadcast %cst_67 : f32 to vector<1x32xf32>
    %125 = arith.addf %124, %106 : vector<1x32xf32>
    %126 = vector.broadcast %125 : vector<1x32xf32> to vector<8x32xf32>
    %127 = arith.mulf %123, %126 : vector<8x32xf32>
    %128 = vector.broadcast %107 : vector<1x32xf32> to vector<8x32xf32>
    %129 = arith.addf %127, %128 : vector<8x32xf32>
    %c1_68 = arith.constant 1 : index
    %c0_69 = arith.constant 0 : index
    %c0_70 = arith.constant 0 : index
    %130 = vector.load %arg6[%c1_68, %c0_69, %c0_70] : memref<2x32x96xf32, #tpu.memory_space<vmem>>, vector<1x32x96xf32>
    %131 = vector.shape_cast %130 : vector<1x32x96xf32> to vector<32x96xf32>
    %cst_71 = arith.constant dense<0.000000e+00> : vector<8x96xf32>
    %132 = tpu.matmul %129, %131, %cst_71 {dimension_numbers = #tpu.dot_dimension_numbers<[1], [0], [0], [1], [0, 0, 1, 1], [], []>} : vector<8x32xf32>, vector<32x96xf32>, vector<8x96xf32> -> vector<8x96xf32>
    %c1_72 = arith.constant 1 : index
    %c0_73 = arith.constant 0 : index
    %c0_74 = arith.constant 0 : index
    %133 = vector.load %arg7[%c1_72, %c0_73, %c0_74] : memref<2x1x96xf32, #tpu.memory_space<vmem>>, vector<1x1x96xf32>
    %134 = vector.shape_cast %133 : vector<1x1x96xf32> to vector<1x96xf32>
    %135 = vector.broadcast %134 : vector<1x96xf32> to vector<8x96xf32>
    %136 = arith.addf %132, %135 : vector<8x96xf32>
    %c0_75 = arith.constant 0 : index
    %c16 = arith.constant 16 : index
    %c0_76 = arith.constant 0 : index
    %137 = vector.load %arg16[%c0_75, %c16, %c0_76] : memref<2x24x96xf32, #tpu.memory_space<vmem>>, vector<1x8x96xf32>
    %138 = vector.shape_cast %137 : vector<1x8x96xf32> to vector<8x96xf32>
    %139 = vector.shape_cast %136 : vector<8x96xf32> to vector<1x8x96xf32>
    tpu.vector_store %arg16[%c0_75, %c16, %c0_76], %139 {strides = array<i32>} : memref<2x24x96xf32, #tpu.memory_space<vmem>>, vector<1x8x96xf32>,
    %c1_77 = arith.constant 1 : index
    %c0_78 = arith.constant 0 : index
    %c0_79 = arith.constant 0 : index
    %140 = vector.load %arg1[%c1_77, %c0_78, %c0_79] : memref<2x8x32xf32, #tpu.memory_space<vmem>>, vector<1x8x32xf32>
    %141 = vector.shape_cast %140 : vector<1x8x32xf32> to vector<8x32xf32>
    %142 = vector.extract_strided_slice %31 {offsets = [1, 0], sizes = [1, 32], strides = [1, 1]} : vector<2x192xf32> to vector<1x32xf32>
    %143 = vector.extract_strided_slice %31 {offsets = [1, 32], sizes = [1, 32], strides = [1, 1]} : vector<2x192xf32> to vector<1x32xf32>
    %cst_80 = arith.constant dense<0.000000e+00> : vector<8xf32>
    %144 = vector.multi_reduction <add>, %141, %cst_80 [1] : vector<8x32xf32> to vector<8xf32>
    %145 = vector.shape_cast %144 : vector<8xf32> to vector<8x1xf32>
    %cst_81 = arith.constant 3.200000e+01 : f32
    %146 = vector.broadcast %cst_81 : f32 to vector<8x1xf32>
    %147 = arith.divf %145, %146 : vector<8x1xf32>
    %148 = vector.broadcast %147 : vector<8x1xf32> to vector<8x32xf32>
    %149 = arith.subf %141, %148 : vector<8x32xf32>
    %150 = arith.mulf %149, %149 : vector<8x32xf32>
    %cst_82 = arith.constant dense<0.000000e+00> : vector<8xf32>
    %151 = vector.multi_reduction <add>, %150, %cst_82 [1] : vector<8x32xf32> to vector<8xf32>
    %152 = vector.shape_cast %151 : vector<8xf32> to vector<8x1xf32>
    %cst_83 = arith.constant 3.200000e+01 : f32
    %153 = vector.broadcast %cst_83 : f32 to vector<8x1xf32>
    %154 = arith.divf %152, %153 : vector<8x1xf32>
    %cst_84 = arith.constant 9.99999997E-7 : f32
    %155 = vector.broadcast %cst_84 : f32 to vector<8x1xf32>
    %156 = arith.addf %154, %155 : vector<8x1xf32>
    %157 = math.rsqrt %156 : vector<8x1xf32>
    %158 = vector.broadcast %157 : vector<8x1xf32> to vector<8x32xf32>
    %159 = arith.mulf %149, %158 : vector<8x32xf32>
    %cst_85 = arith.constant 1.000000e+00 : f32
    %160 = vector.broadcast %cst_85 : f32 to vector<1x32xf32>
    %161 = arith.addf %160, %142 : vector<1x32xf32>
    %162 = vector.broadcast %161 : vector<1x32xf32> to vector<8x32xf32>
    %163 = arith.mulf %159, %162 : vector<8x32xf32>
    %164 = vector.broadcast %143 : vector<1x32xf32> to vector<8x32xf32>
    %165 = arith.addf %163, %164 : vector<8x32xf32>
    %c1_86 = arith.constant 1 : index
    %c0_87 = arith.constant 0 : index
    %c0_88 = arith.constant 0 : index
    %166 = vector.load %arg6[%c1_86, %c0_87, %c0_88] : memref<2x32x96xf32, #tpu.memory_space<vmem>>, vector<1x32x96xf32>
    %167 = vector.shape_cast %166 : vector<1x32x96xf32> to vector<32x96xf32>
    %cst_89 = arith.constant dense<0.000000e+00> : vector<8x96xf32>
    %168 = tpu.matmul %165, %167, %cst_89 {dimension_numbers = #tpu.dot_dimension_numbers<[1], [0], [0], [1], [0, 0, 1, 1], [], []>} : vector<8x32xf32>, vector<32x96xf32>, vector<8x96xf32> -> vector<8x96xf32>
    %c1_90 = arith.constant 1 : index
    %c0_91 = arith.constant 0 : index
    %c0_92 = arith.constant 0 : index
    %169 = vector.load %arg7[%c1_90, %c0_91, %c0_92] : memref<2x1x96xf32, #tpu.memory_space<vmem>>, vector<1x1x96xf32>
    %170 = vector.shape_cast %169 : vector<1x1x96xf32> to vector<1x96xf32>
    %171 = vector.broadcast %170 : vector<1x96xf32> to vector<8x96xf32>
    %172 = arith.addf %168, %171 : vector<8x96xf32>
    %c1_93 = arith.constant 1 : index
    %c16_94 = arith.constant 16 : index
    %c0_95 = arith.constant 0 : index
    %173 = vector.load %arg16[%c1_93, %c16_94, %c0_95] : memref<2x24x96xf32, #tpu.memory_space<vmem>>, vector<1x8x96xf32>
    %174 = vector.shape_cast %173 : vector<1x8x96xf32> to vector<8x96xf32>
    %175 = vector.shape_cast %172 : vector<8x96xf32> to vector<1x8x96xf32>
    tpu.vector_store %arg16[%c1_93, %c16_94, %c0_95], %175 {strides = array<i32>} : memref<2x24x96xf32, #tpu.memory_space<vmem>>, vector<1x8x96xf32>,
    %c0_96 = arith.constant 0 : index
    %c0_97 = arith.constant 0 : index
    %c0_98 = arith.constant 0 : index
    %176 = vector.load %arg16[%c0_96, %c0_97, %c0_98] : memref<2x24x96xf32, #tpu.memory_space<vmem>>, vector<1x24x96xf32>
    %177 = vector.shape_cast %176 : vector<1x24x96xf32> to vector<24x96xf32>
    %178 = vector.extract_strided_slice %177 {offsets = [0, 0], sizes = [24, 8], strides = [1, 1]} : vector<24x96xf32> to vector<24x8xf32>
    %179 = vector.extract_strided_slice %177 {offsets = [0, 32], sizes = [24, 8], strides = [1, 1]} : vector<24x96xf32> to vector<24x8xf32>
    %180 = vector.extract_strided_slice %177 {offsets = [0, 64], sizes = [24, 8], strides = [1, 1]} : vector<24x96xf32> to vector<24x8xf32>
    %cst_99 = arith.constant dense<0.000000e+00> : vector<24x24xf32>
    %181 = tpu.matmul %178, %179, %cst_99 {dimension_numbers = #tpu.dot_dimension_numbers<[1], [1], [0], [0], [0, 0, 1, 0], [], []>} : vector<24x8xf32>, vector<24x8xf32>, vector<24x24xf32> -> vector<24x24xf32>
    %cst_100 = arith.constant 0.353553385 : f32
    %182 = vector.broadcast %cst_100 : f32 to vector<24x24xf32>
    %183 = arith.mulf %181, %182 : vector<24x24xf32>
    %cst_101 = arith.constant dense<0xFF800000> : vector<24xf32>
    %184 = vector.multi_reduction <maximumf>, %183, %cst_101 [1] : vector<24x24xf32> to vector<24xf32>
    %185 = vector.shape_cast %184 : vector<24xf32> to vector<24x1xf32>
    %186 = vector.broadcast %185 : vector<24x1xf32> to vector<24x24xf32>
    %187 = arith.subf %183, %186 : vector<24x24xf32>
    %188 = math.exp %187 : vector<24x24xf32>
    %cst_102 = arith.constant dense<0.000000e+00> : vector<24xf32>
    %189 = vector.multi_reduction <add>, %188, %cst_102 [1] : vector<24x24xf32> to vector<24xf32>
    %190 = vector.shape_cast %189 : vector<24xf32> to vector<24x1xf32>
    %191 = tpu.reciprocal %190 {approx = true} : vector<24x1xf32> -> vector<24x1xf32>
    %192 = vector.broadcast %191 : vector<24x1xf32> to vector<24x24xf32>
    %193 = arith.mulf %188, %192 : vector<24x24xf32>
    %cst_103 = arith.constant dense<0.000000e+00> : vector<24x8xf32>
    %194 = tpu.matmul %193, %180, %cst_103 {dimension_numbers = #tpu.dot_dimension_numbers<[1], [0], [0], [1], [0, 0, 1, 1], [], []>} : vector<24x24xf32>, vector<24x8xf32>, vector<24x8xf32> -> vector<24x8xf32>
    %c0_104 = arith.constant 0 : index
    %c0_105 = arith.constant 0 : index
    %c0_106 = arith.constant 0 : index
    %195 = vector.load %arg17[%c0_104, %c0_105, %c0_106] : memref<2x24x32xf32, #tpu.memory_space<vmem>>, vector<1x24x8xf32>
    %196 = vector.shape_cast %195 : vector<1x24x8xf32> to vector<24x8xf32>
    %197 = vector.shape_cast %194 : vector<24x8xf32> to vector<1x24x8xf32>
    tpu.vector_store %arg17[%c0_104, %c0_105, %c0_106], %197 {strides = array<i32>} : memref<2x24x32xf32, #tpu.memory_space<vmem>>, vector<1x24x8xf32>,
    %198 = vector.extract_strided_slice %177 {offsets = [0, 8], sizes = [24, 8], strides = [1, 1]} : vector<24x96xf32> to vector<24x8xf32>
    %199 = vector.extract_strided_slice %177 {offsets = [0, 40], sizes = [24, 8], strides = [1, 1]} : vector<24x96xf32> to vector<24x8xf32>
    %200 = vector.extract_strided_slice %177 {offsets = [0, 72], sizes = [24, 8], strides = [1, 1]} : vector<24x96xf32> to vector<24x8xf32>
    %cst_107 = arith.constant dense<0.000000e+00> : vector<24x24xf32>
    %201 = tpu.matmul %198, %199, %cst_107 {dimension_numbers = #tpu.dot_dimension_numbers<[1], [1], [0], [0], [0, 0, 1, 0], [], []>} : vector<24x8xf32>, vector<24x8xf32>, vector<24x24xf32> -> vector<24x24xf32>
    %cst_108 = arith.constant 0.353553385 : f32
    %202 = vector.broadcast %cst_108 : f32 to vector<24x24xf32>
    %203 = arith.mulf %201, %202 : vector<24x24xf32>
    %cst_109 = arith.constant dense<0xFF800000> : vector<24xf32>
    %204 = vector.multi_reduction <maximumf>, %203, %cst_109 [1] : vector<24x24xf32> to vector<24xf32>
    %205 = vector.shape_cast %204 : vector<24xf32> to vector<24x1xf32>
    %206 = vector.broadcast %205 : vector<24x1xf32> to vector<24x24xf32>
    %207 = arith.subf %203, %206 : vector<24x24xf32>
    %208 = math.exp %207 : vector<24x24xf32>
    %cst_110 = arith.constant dense<0.000000e+00> : vector<24xf32>
    %209 = vector.multi_reduction <add>, %208, %cst_110 [1] : vector<24x24xf32> to vector<24xf32>
    %210 = vector.shape_cast %209 : vector<24xf32> to vector<24x1xf32>
    %211 = tpu.reciprocal %210 {approx = true} : vector<24x1xf32> -> vector<24x1xf32>
    %212 = vector.broadcast %211 : vector<24x1xf32> to vector<24x24xf32>
    %213 = arith.mulf %208, %212 : vector<24x24xf32>
    %cst_111 = arith.constant dense<0.000000e+00> : vector<24x8xf32>
    %214 = tpu.matmul %213, %200, %cst_111 {dimension_numbers = #tpu.dot_dimension_numbers<[1], [0], [0], [1], [0, 0, 1, 1], [], []>} : vector<24x24xf32>, vector<24x8xf32>, vector<24x8xf32> -> vector<24x8xf32>
    %c0_112 = arith.constant 0 : index
    %c0_113 = arith.constant 0 : index
    %c8 = arith.constant 8 : index
    %215 = vector.load %arg17[%c0_112, %c0_113, %c8] : memref<2x24x32xf32, #tpu.memory_space<vmem>>, vector<1x24x8xf32>
    %216 = vector.shape_cast %215 : vector<1x24x8xf32> to vector<24x8xf32>
    %217 = vector.shape_cast %214 : vector<24x8xf32> to vector<1x24x8xf32>
    tpu.vector_store %arg17[%c0_112, %c0_113, %c8], %217 {strides = array<i32>} : memref<2x24x32xf32, #tpu.memory_space<vmem>>, vector<1x24x8xf32>,
    %218 = vector.extract_strided_slice %177 {offsets = [0, 16], sizes = [24, 8], strides = [1, 1]} : vector<24x96xf32> to vector<24x8xf32>
    %219 = vector.extract_strided_slice %177 {offsets = [0, 48], sizes = [24, 8], strides = [1, 1]} : vector<24x96xf32> to vector<24x8xf32>
    %220 = vector.extract_strided_slice %177 {offsets = [0, 80], sizes = [24, 8], strides = [1, 1]} : vector<24x96xf32> to vector<24x8xf32>
    %cst_114 = arith.constant dense<0.000000e+00> : vector<24x24xf32>
    %221 = tpu.matmul %218, %219, %cst_114 {dimension_numbers = #tpu.dot_dimension_numbers<[1], [1], [0], [0], [0, 0, 1, 0], [], []>} : vector<24x8xf32>, vector<24x8xf32>, vector<24x24xf32> -> vector<24x24xf32>
    %cst_115 = arith.constant 0.353553385 : f32
    %222 = vector.broadcast %cst_115 : f32 to vector<24x24xf32>
    %223 = arith.mulf %221, %222 : vector<24x24xf32>
    %cst_116 = arith.constant dense<0xFF800000> : vector<24xf32>
    %224 = vector.multi_reduction <maximumf>, %223, %cst_116 [1] : vector<24x24xf32> to vector<24xf32>
    %225 = vector.shape_cast %224 : vector<24xf32> to vector<24x1xf32>
    %226 = vector.broadcast %225 : vector<24x1xf32> to vector<24x24xf32>
    %227 = arith.subf %223, %226 : vector<24x24xf32>
    %228 = math.exp %227 : vector<24x24xf32>
    %cst_117 = arith.constant dense<0.000000e+00> : vector<24xf32>
    %229 = vector.multi_reduction <add>, %228, %cst_117 [1] : vector<24x24xf32> to vector<24xf32>
    %230 = vector.shape_cast %229 : vector<24xf32> to vector<24x1xf32>
    %231 = tpu.reciprocal %230 {approx = true} : vector<24x1xf32> -> vector<24x1xf32>
    %232 = vector.broadcast %231 : vector<24x1xf32> to vector<24x24xf32>
    %233 = arith.mulf %228, %232 : vector<24x24xf32>
    %cst_118 = arith.constant dense<0.000000e+00> : vector<24x8xf32>
    %234 = tpu.matmul %233, %220, %cst_118 {dimension_numbers = #tpu.dot_dimension_numbers<[1], [0], [0], [1], [0, 0, 1, 1], [], []>} : vector<24x24xf32>, vector<24x8xf32>, vector<24x8xf32> -> vector<24x8xf32>
    %c0_119 = arith.constant 0 : index
    %c0_120 = arith.constant 0 : index
    %c16_121 = arith.constant 16 : index
    %235 = vector.load %arg17[%c0_119, %c0_120, %c16_121] : memref<2x24x32xf32, #tpu.memory_space<vmem>>, vector<1x24x8xf32>
    %236 = vector.shape_cast %235 : vector<1x24x8xf32> to vector<24x8xf32>
    %237 = vector.shape_cast %234 : vector<24x8xf32> to vector<1x24x8xf32>
    tpu.vector_store %arg17[%c0_119, %c0_120, %c16_121], %237 {strides = array<i32>} : memref<2x24x32xf32, #tpu.memory_space<vmem>>, vector<1x24x8xf32>,
    %238 = vector.extract_strided_slice %177 {offsets = [0, 24], sizes = [24, 8], strides = [1, 1]} : vector<24x96xf32> to vector<24x8xf32>
    %239 = vector.extract_strided_slice %177 {offsets = [0, 56], sizes = [24, 8], strides = [1, 1]} : vector<24x96xf32> to vector<24x8xf32>
    %240 = vector.extract_strided_slice %177 {offsets = [0, 88], sizes = [24, 8], strides = [1, 1]} : vector<24x96xf32> to vector<24x8xf32>
    %cst_122 = arith.constant dense<0.000000e+00> : vector<24x24xf32>
    %241 = tpu.matmul %238, %239, %cst_122 {dimension_numbers = #tpu.dot_dimension_numbers<[1], [1], [0], [0], [0, 0, 1, 0], [], []>} : vector<24x8xf32>, vector<24x8xf32>, vector<24x24xf32> -> vector<24x24xf32>
    %cst_123 = arith.constant 0.353553385 : f32
    %242 = vector.broadcast %cst_123 : f32 to vector<24x24xf32>
    %243 = arith.mulf %241, %242 : vector<24x24xf32>
    %cst_124 = arith.constant dense<0xFF800000> : vector<24xf32>
    %244 = vector.multi_reduction <maximumf>, %243, %cst_124 [1] : vector<24x24xf32> to vector<24xf32>
    %245 = vector.shape_cast %244 : vector<24xf32> to vector<24x1xf32>
    %246 = vector.broadcast %245 : vector<24x1xf32> to vector<24x24xf32>
    %247 = arith.subf %243, %246 : vector<24x24xf32>
    %248 = math.exp %247 : vector<24x24xf32>
    %cst_125 = arith.constant dense<0.000000e+00> : vector<24xf32>
    %249 = vector.multi_reduction <add>, %248, %cst_125 [1] : vector<24x24xf32> to vector<24xf32>
    %250 = vector.shape_cast %249 : vector<24xf32> to vector<24x1xf32>
    %251 = tpu.reciprocal %250 {approx = true} : vector<24x1xf32> -> vector<24x1xf32>
    %252 = vector.broadcast %251 : vector<24x1xf32> to vector<24x24xf32>
    %253 = arith.mulf %248, %252 : vector<24x24xf32>
    %cst_126 = arith.constant dense<0.000000e+00> : vector<24x8xf32>
    %254 = tpu.matmul %253, %240, %cst_126 {dimension_numbers = #tpu.dot_dimension_numbers<[1], [0], [0], [1], [0, 0, 1, 1], [], []>} : vector<24x24xf32>, vector<24x8xf32>, vector<24x8xf32> -> vector<24x8xf32>
    %c0_127 = arith.constant 0 : index
    %c0_128 = arith.constant 0 : index
    %c24 = arith.constant 24 : index
    %255 = vector.load %arg17[%c0_127, %c0_128, %c24] : memref<2x24x32xf32, #tpu.memory_space<vmem>>, vector<1x24x8xf32>
    %256 = vector.shape_cast %255 : vector<1x24x8xf32> to vector<24x8xf32>
    %257 = vector.shape_cast %254 : vector<24x8xf32> to vector<1x24x8xf32>
    tpu.vector_store %arg17[%c0_127, %c0_128, %c24], %257 {strides = array<i32>} : memref<2x24x32xf32, #tpu.memory_space<vmem>>, vector<1x24x8xf32>,
    %c1_129 = arith.constant 1 : index
    %c0_130 = arith.constant 0 : index
    %c0_131 = arith.constant 0 : index
    %258 = vector.load %arg16[%c1_129, %c0_130, %c0_131] : memref<2x24x96xf32, #tpu.memory_space<vmem>>, vector<1x24x96xf32>
    %259 = vector.shape_cast %258 : vector<1x24x96xf32> to vector<24x96xf32>
    %260 = vector.extract_strided_slice %259 {offsets = [0, 0], sizes = [24, 8], strides = [1, 1]} : vector<24x96xf32> to vector<24x8xf32>
    %261 = vector.extract_strided_slice %259 {offsets = [0, 32], sizes = [24, 8], strides = [1, 1]} : vector<24x96xf32> to vector<24x8xf32>
    %262 = vector.extract_strided_slice %259 {offsets = [0, 64], sizes = [24, 8], strides = [1, 1]} : vector<24x96xf32> to vector<24x8xf32>
    %cst_132 = arith.constant dense<0.000000e+00> : vector<24x24xf32>
    %263 = tpu.matmul %260, %261, %cst_132 {dimension_numbers = #tpu.dot_dimension_numbers<[1], [1], [0], [0], [0, 0, 1, 0], [], []>} : vector<24x8xf32>, vector<24x8xf32>, vector<24x24xf32> -> vector<24x24xf32>
    %cst_133 = arith.constant 0.353553385 : f32
    %264 = vector.broadcast %cst_133 : f32 to vector<24x24xf32>
    %265 = arith.mulf %263, %264 : vector<24x24xf32>
    %cst_134 = arith.constant dense<0xFF800000> : vector<24xf32>
    %266 = vector.multi_reduction <maximumf>, %265, %cst_134 [1] : vector<24x24xf32> to vector<24xf32>
    %267 = vector.shape_cast %266 : vector<24xf32> to vector<24x1xf32>
    %268 = vector.broadcast %267 : vector<24x1xf32> to vector<24x24xf32>
    %269 = arith.subf %265, %268 : vector<24x24xf32>
    %270 = math.exp %269 : vector<24x24xf32>
    %cst_135 = arith.constant dense<0.000000e+00> : vector<24xf32>
    %271 = vector.multi_reduction <add>, %270, %cst_135 [1] : vector<24x24xf32> to vector<24xf32>
    %272 = vector.shape_cast %271 : vector<24xf32> to vector<24x1xf32>
    %273 = tpu.reciprocal %272 {approx = true} : vector<24x1xf32> -> vector<24x1xf32>
    %274 = vector.broadcast %273 : vector<24x1xf32> to vector<24x24xf32>
    %275 = arith.mulf %270, %274 : vector<24x24xf32>
    %cst_136 = arith.constant dense<0.000000e+00> : vector<24x8xf32>
    %276 = tpu.matmul %275, %262, %cst_136 {dimension_numbers = #tpu.dot_dimension_numbers<[1], [0], [0], [1], [0, 0, 1, 1], [], []>} : vector<24x24xf32>, vector<24x8xf32>, vector<24x8xf32> -> vector<24x8xf32>
    %c1_137 = arith.constant 1 : index
    %c0_138 = arith.constant 0 : index
    %c0_139 = arith.constant 0 : index
    %277 = vector.load %arg17[%c1_137, %c0_138, %c0_139] : memref<2x24x32xf32, #tpu.memory_space<vmem>>, vector<1x24x8xf32>
    %278 = vector.shape_cast %277 : vector<1x24x8xf32> to vector<24x8xf32>
    %279 = vector.shape_cast %276 : vector<24x8xf32> to vector<1x24x8xf32>
    tpu.vector_store %arg17[%c1_137, %c0_138, %c0_139], %279 {strides = array<i32>} : memref<2x24x32xf32, #tpu.memory_space<vmem>>, vector<1x24x8xf32>,
    %280 = vector.extract_strided_slice %259 {offsets = [0, 8], sizes = [24, 8], strides = [1, 1]} : vector<24x96xf32> to vector<24x8xf32>
    %281 = vector.extract_strided_slice %259 {offsets = [0, 40], sizes = [24, 8], strides = [1, 1]} : vector<24x96xf32> to vector<24x8xf32>
    %282 = vector.extract_strided_slice %259 {offsets = [0, 72], sizes = [24, 8], strides = [1, 1]} : vector<24x96xf32> to vector<24x8xf32>
    %cst_140 = arith.constant dense<0.000000e+00> : vector<24x24xf32>
    %283 = tpu.matmul %280, %281, %cst_140 {dimension_numbers = #tpu.dot_dimension_numbers<[1], [1], [0], [0], [0, 0, 1, 0], [], []>} : vector<24x8xf32>, vector<24x8xf32>, vector<24x24xf32> -> vector<24x24xf32>
    %cst_141 = arith.constant 0.353553385 : f32
    %284 = vector.broadcast %cst_141 : f32 to vector<24x24xf32>
    %285 = arith.mulf %283, %284 : vector<24x24xf32>
    %cst_142 = arith.constant dense<0xFF800000> : vector<24xf32>
    %286 = vector.multi_reduction <maximumf>, %285, %cst_142 [1] : vector<24x24xf32> to vector<24xf32>
    %287 = vector.shape_cast %286 : vector<24xf32> to vector<24x1xf32>
    %288 = vector.broadcast %287 : vector<24x1xf32> to vector<24x24xf32>
    %289 = arith.subf %285, %288 : vector<24x24xf32>
    %290 = math.exp %289 : vector<24x24xf32>
    %cst_143 = arith.constant dense<0.000000e+00> : vector<24xf32>
    %291 = vector.multi_reduction <add>, %290, %cst_143 [1] : vector<24x24xf32> to vector<24xf32>
    %292 = vector.shape_cast %291 : vector<24xf32> to vector<24x1xf32>
    %293 = tpu.reciprocal %292 {approx = true} : vector<24x1xf32> -> vector<24x1xf32>
    %294 = vector.broadcast %293 : vector<24x1xf32> to vector<24x24xf32>
    %295 = arith.mulf %290, %294 : vector<24x24xf32>
    %cst_144 = arith.constant dense<0.000000e+00> : vector<24x8xf32>
    %296 = tpu.matmul %295, %282, %cst_144 {dimension_numbers = #tpu.dot_dimension_numbers<[1], [0], [0], [1], [0, 0, 1, 1], [], []>} : vector<24x24xf32>, vector<24x8xf32>, vector<24x8xf32> -> vector<24x8xf32>
    %c1_145 = arith.constant 1 : index
    %c0_146 = arith.constant 0 : index
    %c8_147 = arith.constant 8 : index
    %297 = vector.load %arg17[%c1_145, %c0_146, %c8_147] : memref<2x24x32xf32, #tpu.memory_space<vmem>>, vector<1x24x8xf32>
    %298 = vector.shape_cast %297 : vector<1x24x8xf32> to vector<24x8xf32>
    %299 = vector.shape_cast %296 : vector<24x8xf32> to vector<1x24x8xf32>
    tpu.vector_store %arg17[%c1_145, %c0_146, %c8_147], %299 {strides = array<i32>} : memref<2x24x32xf32, #tpu.memory_space<vmem>>, vector<1x24x8xf32>,
    %300 = vector.extract_strided_slice %259 {offsets = [0, 16], sizes = [24, 8], strides = [1, 1]} : vector<24x96xf32> to vector<24x8xf32>
    %301 = vector.extract_strided_slice %259 {offsets = [0, 48], sizes = [24, 8], strides = [1, 1]} : vector<24x96xf32> to vector<24x8xf32>
    %302 = vector.extract_strided_slice %259 {offsets = [0, 80], sizes = [24, 8], strides = [1, 1]} : vector<24x96xf32> to vector<24x8xf32>
    %cst_148 = arith.constant dense<0.000000e+00> : vector<24x24xf32>
    %303 = tpu.matmul %300, %301, %cst_148 {dimension_numbers = #tpu.dot_dimension_numbers<[1], [1], [0], [0], [0, 0, 1, 0], [], []>} : vector<24x8xf32>, vector<24x8xf32>, vector<24x24xf32> -> vector<24x24xf32>
    %cst_149 = arith.constant 0.353553385 : f32
    %304 = vector.broadcast %cst_149 : f32 to vector<24x24xf32>
    %305 = arith.mulf %303, %304 : vector<24x24xf32>
    %cst_150 = arith.constant dense<0xFF800000> : vector<24xf32>
    %306 = vector.multi_reduction <maximumf>, %305, %cst_150 [1] : vector<24x24xf32> to vector<24xf32>
    %307 = vector.shape_cast %306 : vector<24xf32> to vector<24x1xf32>
    %308 = vector.broadcast %307 : vector<24x1xf32> to vector<24x24xf32>
    %309 = arith.subf %305, %308 : vector<24x24xf32>
    %310 = math.exp %309 : vector<24x24xf32>
    %cst_151 = arith.constant dense<0.000000e+00> : vector<24xf32>
    %311 = vector.multi_reduction <add>, %310, %cst_151 [1] : vector<24x24xf32> to vector<24xf32>
    %312 = vector.shape_cast %311 : vector<24xf32> to vector<24x1xf32>
    %313 = tpu.reciprocal %312 {approx = true} : vector<24x1xf32> -> vector<24x1xf32>
    %314 = vector.broadcast %313 : vector<24x1xf32> to vector<24x24xf32>
    %315 = arith.mulf %310, %314 : vector<24x24xf32>
    %cst_152 = arith.constant dense<0.000000e+00> : vector<24x8xf32>
    %316 = tpu.matmul %315, %302, %cst_152 {dimension_numbers = #tpu.dot_dimension_numbers<[1], [0], [0], [1], [0, 0, 1, 1], [], []>} : vector<24x24xf32>, vector<24x8xf32>, vector<24x8xf32> -> vector<24x8xf32>
    %c1_153 = arith.constant 1 : index
    %c0_154 = arith.constant 0 : index
    %c16_155 = arith.constant 16 : index
    %317 = vector.load %arg17[%c1_153, %c0_154, %c16_155] : memref<2x24x32xf32, #tpu.memory_space<vmem>>, vector<1x24x8xf32>
    %318 = vector.shape_cast %317 : vector<1x24x8xf32> to vector<24x8xf32>
    %319 = vector.shape_cast %316 : vector<24x8xf32> to vector<1x24x8xf32>
    tpu.vector_store %arg17[%c1_153, %c0_154, %c16_155], %319 {strides = array<i32>} : memref<2x24x32xf32, #tpu.memory_space<vmem>>, vector<1x24x8xf32>,
    %320 = vector.extract_strided_slice %259 {offsets = [0, 24], sizes = [24, 8], strides = [1, 1]} : vector<24x96xf32> to vector<24x8xf32>
    %321 = vector.extract_strided_slice %259 {offsets = [0, 56], sizes = [24, 8], strides = [1, 1]} : vector<24x96xf32> to vector<24x8xf32>
    %322 = vector.extract_strided_slice %259 {offsets = [0, 88], sizes = [24, 8], strides = [1, 1]} : vector<24x96xf32> to vector<24x8xf32>
    %cst_156 = arith.constant dense<0.000000e+00> : vector<24x24xf32>
    %323 = tpu.matmul %320, %321, %cst_156 {dimension_numbers = #tpu.dot_dimension_numbers<[1], [1], [0], [0], [0, 0, 1, 0], [], []>} : vector<24x8xf32>, vector<24x8xf32>, vector<24x24xf32> -> vector<24x24xf32>
    %cst_157 = arith.constant 0.353553385 : f32
    %324 = vector.broadcast %cst_157 : f32 to vector<24x24xf32>
    %325 = arith.mulf %323, %324 : vector<24x24xf32>
    %cst_158 = arith.constant dense<0xFF800000> : vector<24xf32>
    %326 = vector.multi_reduction <maximumf>, %325, %cst_158 [1] : vector<24x24xf32> to vector<24xf32>
    %327 = vector.shape_cast %326 : vector<24xf32> to vector<24x1xf32>
    %328 = vector.broadcast %327 : vector<24x1xf32> to vector<24x24xf32>
    %329 = arith.subf %325, %328 : vector<24x24xf32>
    %330 = math.exp %329 : vector<24x24xf32>
    %cst_159 = arith.constant dense<0.000000e+00> : vector<24xf32>
    %331 = vector.multi_reduction <add>, %330, %cst_159 [1] : vector<24x24xf32> to vector<24xf32>
    %332 = vector.shape_cast %331 : vector<24xf32> to vector<24x1xf32>
    %333 = tpu.reciprocal %332 {approx = true} : vector<24x1xf32> -> vector<24x1xf32>
    %334 = vector.broadcast %333 : vector<24x1xf32> to vector<24x24xf32>
    %335 = arith.mulf %330, %334 : vector<24x24xf32>
    %cst_160 = arith.constant dense<0.000000e+00> : vector<24x8xf32>
    %336 = tpu.matmul %335, %322, %cst_160 {dimension_numbers = #tpu.dot_dimension_numbers<[1], [0], [0], [1], [0, 0, 1, 1], [], []>} : vector<24x24xf32>, vector<24x8xf32>, vector<24x8xf32> -> vector<24x8xf32>
    %c1_161 = arith.constant 1 : index
    %c0_162 = arith.constant 0 : index
    %c24_163 = arith.constant 24 : index
    %337 = vector.load %arg17[%c1_161, %c0_162, %c24_163] : memref<2x24x32xf32, #tpu.memory_space<vmem>>, vector<1x24x8xf32>
    %338 = vector.shape_cast %337 : vector<1x24x8xf32> to vector<24x8xf32>
    %339 = vector.shape_cast %336 : vector<24x8xf32> to vector<1x24x8xf32>
    tpu.vector_store %arg17[%c1_161, %c0_162, %c24_163], %339 {strides = array<i32>} : memref<2x24x32xf32, #tpu.memory_space<vmem>>, vector<1x24x8xf32>,
    %c0_164 = arith.constant 0 : index
    %c0_165 = arith.constant 0 : index
    %c0_166 = arith.constant 0 : index
    %340 = vector.load %arg17[%c0_164, %c0_165, %c0_166] : memref<2x24x32xf32, #tpu.memory_space<vmem>>, vector<1x16x32xf32>
    %341 = vector.shape_cast %340 : vector<1x16x32xf32> to vector<16x32xf32>
    %c0_167 = arith.constant 0 : index
    %c0_168 = arith.constant 0 : index
    %c0_169 = arith.constant 0 : index
    %342 = vector.load %arg8[%c0_167, %c0_168, %c0_169] : memref<2x32x32xf32, #tpu.memory_space<vmem>>, vector<1x32x32xf32>
    %343 = vector.shape_cast %342 : vector<1x32x32xf32> to vector<32x32xf32>
    %cst_170 = arith.constant dense<0.000000e+00> : vector<16x32xf32>
    %344 = tpu.matmul %341, %343, %cst_170 {dimension_numbers = #tpu.dot_dimension_numbers<[1], [0], [0], [1], [0, 0, 1, 1], [], []>} : vector<16x32xf32>, vector<32x32xf32>, vector<16x32xf32> -> vector<16x32xf32>
    %c0_171 = arith.constant 0 : index
    %c0_172 = arith.constant 0 : index
    %c0_173 = arith.constant 0 : index
    %345 = vector.load %arg9[%c0_171, %c0_172, %c0_173] : memref<2x1x32xf32, #tpu.memory_space<vmem>>, vector<1x1x32xf32>
    %346 = vector.shape_cast %345 : vector<1x1x32xf32> to vector<1x32xf32>
    %347 = vector.broadcast %346 : vector<1x32xf32> to vector<16x32xf32>
    %348 = arith.addf %344, %347 : vector<16x32xf32>
    %c0_174 = arith.constant 0 : index
    %c0_175 = arith.constant 0 : index
    %c0_176 = arith.constant 0 : index
    %349 = vector.load %arg0[%c0_174, %c0_175, %c0_176] : memref<2x16x32xf32, #tpu.memory_space<vmem>>, vector<1x16x32xf32>
    %350 = vector.shape_cast %349 : vector<1x16x32xf32> to vector<16x32xf32>
    %351 = vector.extract_strided_slice %15 {offsets = [0, 64], sizes = [1, 32], strides = [1, 1]} : vector<2x192xf32> to vector<1x32xf32>
    %352 = vector.broadcast %351 : vector<1x32xf32> to vector<16x32xf32>
    %353 = arith.mulf %348, %352 : vector<16x32xf32>
    %354 = arith.addf %350, %353 : vector<16x32xf32>
    %355 = vector.extract_strided_slice %15 {offsets = [0, 96], sizes = [1, 32], strides = [1, 1]} : vector<2x192xf32> to vector<1x32xf32>
    %356 = vector.extract_strided_slice %15 {offsets = [0, 128], sizes = [1, 32], strides = [1, 1]} : vector<2x192xf32> to vector<1x32xf32>
    %cst_177 = arith.constant dense<0.000000e+00> : vector<16xf32>
    %357 = vector.multi_reduction <add>, %354, %cst_177 [1] : vector<16x32xf32> to vector<16xf32>
    %358 = vector.shape_cast %357 : vector<16xf32> to vector<16x1xf32>
    %cst_178 = arith.constant 3.200000e+01 : f32
    %359 = vector.broadcast %cst_178 : f32 to vector<16x1xf32>
    %360 = arith.divf %358, %359 : vector<16x1xf32>
    %361 = vector.broadcast %360 : vector<16x1xf32> to vector<16x32xf32>
    %362 = arith.subf %354, %361 : vector<16x32xf32>
    %363 = arith.mulf %362, %362 : vector<16x32xf32>
    %cst_179 = arith.constant dense<0.000000e+00> : vector<16xf32>
    %364 = vector.multi_reduction <add>, %363, %cst_179 [1] : vector<16x32xf32> to vector<16xf32>
    %365 = vector.shape_cast %364 : vector<16xf32> to vector<16x1xf32>
    %cst_180 = arith.constant 3.200000e+01 : f32
    %366 = vector.broadcast %cst_180 : f32 to vector<16x1xf32>
    %367 = arith.divf %365, %366 : vector<16x1xf32>
    %cst_181 = arith.constant 9.99999997E-7 : f32
    %368 = vector.broadcast %cst_181 : f32 to vector<16x1xf32>
    %369 = arith.addf %367, %368 : vector<16x1xf32>
    %370 = math.rsqrt %369 : vector<16x1xf32>
    %371 = vector.broadcast %370 : vector<16x1xf32> to vector<16x32xf32>
    %372 = arith.mulf %362, %371 : vector<16x32xf32>
    %cst_182 = arith.constant 1.000000e+00 : f32
    %373 = vector.broadcast %cst_182 : f32 to vector<1x32xf32>
    %374 = arith.addf %373, %355 : vector<1x32xf32>
    %375 = vector.broadcast %374 : vector<1x32xf32> to vector<16x32xf32>
    %376 = arith.mulf %372, %375 : vector<16x32xf32>
    %377 = vector.broadcast %356 : vector<1x32xf32> to vector<16x32xf32>
    %378 = arith.addf %376, %377 : vector<16x32xf32>
    %c0_183 = arith.constant 0 : index
    %c0_184 = arith.constant 0 : index
    %c0_185 = arith.constant 0 : index
    %379 = vector.load %arg10[%c0_183, %c0_184, %c0_185] : memref<2x32x128xf32, #tpu.memory_space<vmem>>, vector<1x32x128xf32>
    %380 = vector.shape_cast %379 : vector<1x32x128xf32> to vector<32x128xf32>
    %cst_186 = arith.constant dense<0.000000e+00> : vector<16x128xf32>
    %381 = tpu.matmul %378, %380, %cst_186 {dimension_numbers = #tpu.dot_dimension_numbers<[1], [0], [0], [1], [0, 0, 1, 1], [], []>} : vector<16x32xf32>, vector<32x128xf32>, vector<16x128xf32> -> vector<16x128xf32>
    %c0_187 = arith.constant 0 : index
    %c0_188 = arith.constant 0 : index
    %c0_189 = arith.constant 0 : index
    %382 = vector.load %arg11[%c0_187, %c0_188, %c0_189] : memref<2x1x128xf32, #tpu.memory_space<vmem>>, vector<1x1x128xf32>
    %383 = vector.shape_cast %382 : vector<1x1x128xf32> to vector<1x128xf32>
    %384 = vector.broadcast %383 : vector<1x128xf32> to vector<16x128xf32>
    %385 = arith.addf %381, %384 : vector<16x128xf32>
    %cst_190 = arith.constant 5.000000e-01 : f32
    %386 = vector.broadcast %cst_190 : f32 to vector<16x128xf32>
    %387 = arith.mulf %386, %385 : vector<16x128xf32>
    %cst_191 = arith.constant 4.471500e-02 : f32
    %388 = vector.broadcast %cst_191 : f32 to vector<16x128xf32>
    %389 = arith.mulf %388, %385 : vector<16x128xf32>
    %390 = arith.mulf %389, %385 : vector<16x128xf32>
    %391 = arith.mulf %390, %385 : vector<16x128xf32>
    %392 = arith.addf %385, %391 : vector<16x128xf32>
    %cst_192 = arith.constant 0.797884583 : f32
    %393 = vector.broadcast %cst_192 : f32 to vector<16x128xf32>
    %394 = arith.mulf %393, %392 : vector<16x128xf32>
    %395 = math.tanh %394 : vector<16x128xf32>
    %cst_193 = arith.constant 1.000000e+00 : f32
    %396 = vector.broadcast %cst_193 : f32 to vector<16x128xf32>
    %397 = arith.addf %396, %395 : vector<16x128xf32>
    %398 = arith.mulf %387, %397 : vector<16x128xf32>
    %c0_194 = arith.constant 0 : index
    %c0_195 = arith.constant 0 : index
    %c0_196 = arith.constant 0 : index
    %399 = vector.load %arg12[%c0_194, %c0_195, %c0_196] : memref<2x128x32xf32, #tpu.memory_space<vmem>>, vector<1x128x32xf32>
    %400 = vector.shape_cast %399 : vector<1x128x32xf32> to vector<128x32xf32>
    %cst_197 = arith.constant dense<0.000000e+00> : vector<16x32xf32>
    %401 = tpu.matmul %398, %400, %cst_197 {dimension_numbers = #tpu.dot_dimension_numbers<[1], [0], [0], [1], [0, 0, 1, 1], [], []>} : vector<16x128xf32>, vector<128x32xf32>, vector<16x32xf32> -> vector<16x32xf32>
    %c0_198 = arith.constant 0 : index
    %c0_199 = arith.constant 0 : index
    %c0_200 = arith.constant 0 : index
    %402 = vector.load %arg13[%c0_198, %c0_199, %c0_200] : memref<2x1x32xf32, #tpu.memory_space<vmem>>, vector<1x1x32xf32>
    %403 = vector.shape_cast %402 : vector<1x1x32xf32> to vector<1x32xf32>
    %404 = vector.broadcast %403 : vector<1x32xf32> to vector<16x32xf32>
    %405 = arith.addf %401, %404 : vector<16x32xf32>
    %406 = vector.extract_strided_slice %15 {offsets = [0, 160], sizes = [1, 32], strides = [1, 1]} : vector<2x192xf32> to vector<1x32xf32>
    %407 = vector.broadcast %406 : vector<1x32xf32> to vector<16x32xf32>
    %408 = arith.mulf %405, %407 : vector<16x32xf32>
    %409 = arith.addf %354, %408 : vector<16x32xf32>
    %c0_201 = arith.constant 0 : index
    %c0_202 = arith.constant 0 : index
    %c0_203 = arith.constant 0 : index
    %410 = vector.load %arg14[%c0_201, %c0_202, %c0_203] : memref<2x16x32xf32, #tpu.memory_space<vmem>>, vector<1x16x32xf32>
    %411 = vector.shape_cast %410 : vector<1x16x32xf32> to vector<16x32xf32>
    %412 = vector.shape_cast %409 : vector<16x32xf32> to vector<1x16x32xf32>
    tpu.vector_store %arg14[%c0_201, %c0_202, %c0_203], %412 {strides = array<i32>} : memref<2x16x32xf32, #tpu.memory_space<vmem>>, vector<1x16x32xf32>,
    %c1_204 = arith.constant 1 : index
    %c0_205 = arith.constant 0 : index
    %c0_206 = arith.constant 0 : index
    %413 = vector.load %arg17[%c1_204, %c0_205, %c0_206] : memref<2x24x32xf32, #tpu.memory_space<vmem>>, vector<1x16x32xf32>
    %414 = vector.shape_cast %413 : vector<1x16x32xf32> to vector<16x32xf32>
    %c0_207 = arith.constant 0 : index
    %c0_208 = arith.constant 0 : index
    %c0_209 = arith.constant 0 : index
    %415 = vector.load %arg8[%c0_207, %c0_208, %c0_209] : memref<2x32x32xf32, #tpu.memory_space<vmem>>, vector<1x32x32xf32>
    %416 = vector.shape_cast %415 : vector<1x32x32xf32> to vector<32x32xf32>
    %cst_210 = arith.constant dense<0.000000e+00> : vector<16x32xf32>
    %417 = tpu.matmul %414, %416, %cst_210 {dimension_numbers = #tpu.dot_dimension_numbers<[1], [0], [0], [1], [0, 0, 1, 1], [], []>} : vector<16x32xf32>, vector<32x32xf32>, vector<16x32xf32> -> vector<16x32xf32>
    %c0_211 = arith.constant 0 : index
    %c0_212 = arith.constant 0 : index
    %c0_213 = arith.constant 0 : index
    %418 = vector.load %arg9[%c0_211, %c0_212, %c0_213] : memref<2x1x32xf32, #tpu.memory_space<vmem>>, vector<1x1x32xf32>
    %419 = vector.shape_cast %418 : vector<1x1x32xf32> to vector<1x32xf32>
    %420 = vector.broadcast %419 : vector<1x32xf32> to vector<16x32xf32>
    %421 = arith.addf %417, %420 : vector<16x32xf32>
    %c1_214 = arith.constant 1 : index
    %c0_215 = arith.constant 0 : index
    %c0_216 = arith.constant 0 : index
    %422 = vector.load %arg0[%c1_214, %c0_215, %c0_216] : memref<2x16x32xf32, #tpu.memory_space<vmem>>, vector<1x16x32xf32>
    %423 = vector.shape_cast %422 : vector<1x16x32xf32> to vector<16x32xf32>
    %424 = vector.extract_strided_slice %15 {offsets = [1, 64], sizes = [1, 32], strides = [1, 1]} : vector<2x192xf32> to vector<1x32xf32>
    %425 = vector.broadcast %424 : vector<1x32xf32> to vector<16x32xf32>
    %426 = arith.mulf %421, %425 : vector<16x32xf32>
    %427 = arith.addf %423, %426 : vector<16x32xf32>
    %428 = vector.extract_strided_slice %15 {offsets = [1, 96], sizes = [1, 32], strides = [1, 1]} : vector<2x192xf32> to vector<1x32xf32>
    %429 = vector.extract_strided_slice %15 {offsets = [1, 128], sizes = [1, 32], strides = [1, 1]} : vector<2x192xf32> to vector<1x32xf32>
    %cst_217 = arith.constant dense<0.000000e+00> : vector<16xf32>
    %430 = vector.multi_reduction <add>, %427, %cst_217 [1] : vector<16x32xf32> to vector<16xf32>
    %431 = vector.shape_cast %430 : vector<16xf32> to vector<16x1xf32>
    %cst_218 = arith.constant 3.200000e+01 : f32
    %432 = vector.broadcast %cst_218 : f32 to vector<16x1xf32>
    %433 = arith.divf %431, %432 : vector<16x1xf32>
    %434 = vector.broadcast %433 : vector<16x1xf32> to vector<16x32xf32>
    %435 = arith.subf %427, %434 : vector<16x32xf32>
    %436 = arith.mulf %435, %435 : vector<16x32xf32>
    %cst_219 = arith.constant dense<0.000000e+00> : vector<16xf32>
    %437 = vector.multi_reduction <add>, %436, %cst_219 [1] : vector<16x32xf32> to vector<16xf32>
    %438 = vector.shape_cast %437 : vector<16xf32> to vector<16x1xf32>
    %cst_220 = arith.constant 3.200000e+01 : f32
    %439 = vector.broadcast %cst_220 : f32 to vector<16x1xf32>
    %440 = arith.divf %438, %439 : vector<16x1xf32>
    %cst_221 = arith.constant 9.99999997E-7 : f32
    %441 = vector.broadcast %cst_221 : f32 to vector<16x1xf32>
    %442 = arith.addf %440, %441 : vector<16x1xf32>
    %443 = math.rsqrt %442 : vector<16x1xf32>
    %444 = vector.broadcast %443 : vector<16x1xf32> to vector<16x32xf32>
    %445 = arith.mulf %435, %444 : vector<16x32xf32>
    %cst_222 = arith.constant 1.000000e+00 : f32
    %446 = vector.broadcast %cst_222 : f32 to vector<1x32xf32>
    %447 = arith.addf %446, %428 : vector<1x32xf32>
    %448 = vector.broadcast %447 : vector<1x32xf32> to vector<16x32xf32>
    %449 = arith.mulf %445, %448 : vector<16x32xf32>
    %450 = vector.broadcast %429 : vector<1x32xf32> to vector<16x32xf32>
    %451 = arith.addf %449, %450 : vector<16x32xf32>
    %c0_223 = arith.constant 0 : index
    %c0_224 = arith.constant 0 : index
    %c0_225 = arith.constant 0 : index
    %452 = vector.load %arg10[%c0_223, %c0_224, %c0_225] : memref<2x32x128xf32, #tpu.memory_space<vmem>>, vector<1x32x128xf32>
    %453 = vector.shape_cast %452 : vector<1x32x128xf32> to vector<32x128xf32>
    %cst_226 = arith.constant dense<0.000000e+00> : vector<16x128xf32>
    %454 = tpu.matmul %451, %453, %cst_226 {dimension_numbers = #tpu.dot_dimension_numbers<[1], [0], [0], [1], [0, 0, 1, 1], [], []>} : vector<16x32xf32>, vector<32x128xf32>, vector<16x128xf32> -> vector<16x128xf32>
    %c0_227 = arith.constant 0 : index
    %c0_228 = arith.constant 0 : index
    %c0_229 = arith.constant 0 : index
    %455 = vector.load %arg11[%c0_227, %c0_228, %c0_229] : memref<2x1x128xf32, #tpu.memory_space<vmem>>, vector<1x1x128xf32>
    %456 = vector.shape_cast %455 : vector<1x1x128xf32> to vector<1x128xf32>
    %457 = vector.broadcast %456 : vector<1x128xf32> to vector<16x128xf32>
    %458 = arith.addf %454, %457 : vector<16x128xf32>
    %cst_230 = arith.constant 5.000000e-01 : f32
    %459 = vector.broadcast %cst_230 : f32 to vector<16x128xf32>
    %460 = arith.mulf %459, %458 : vector<16x128xf32>
    %cst_231 = arith.constant 4.471500e-02 : f32
    %461 = vector.broadcast %cst_231 : f32 to vector<16x128xf32>
    %462 = arith.mulf %461, %458 : vector<16x128xf32>
    %463 = arith.mulf %462, %458 : vector<16x128xf32>
    %464 = arith.mulf %463, %458 : vector<16x128xf32>
    %465 = arith.addf %458, %464 : vector<16x128xf32>
    %cst_232 = arith.constant 0.797884583 : f32
    %466 = vector.broadcast %cst_232 : f32 to vector<16x128xf32>
    %467 = arith.mulf %466, %465 : vector<16x128xf32>
    %468 = math.tanh %467 : vector<16x128xf32>
    %cst_233 = arith.constant 1.000000e+00 : f32
    %469 = vector.broadcast %cst_233 : f32 to vector<16x128xf32>
    %470 = arith.addf %469, %468 : vector<16x128xf32>
    %471 = arith.mulf %460, %470 : vector<16x128xf32>
    %c0_234 = arith.constant 0 : index
    %c0_235 = arith.constant 0 : index
    %c0_236 = arith.constant 0 : index
    %472 = vector.load %arg12[%c0_234, %c0_235, %c0_236] : memref<2x128x32xf32, #tpu.memory_space<vmem>>, vector<1x128x32xf32>
    %473 = vector.shape_cast %472 : vector<1x128x32xf32> to vector<128x32xf32>
    %cst_237 = arith.constant dense<0.000000e+00> : vector<16x32xf32>
    %474 = tpu.matmul %471, %473, %cst_237 {dimension_numbers = #tpu.dot_dimension_numbers<[1], [0], [0], [1], [0, 0, 1, 1], [], []>} : vector<16x128xf32>, vector<128x32xf32>, vector<16x32xf32> -> vector<16x32xf32>
    %c0_238 = arith.constant 0 : index
    %c0_239 = arith.constant 0 : index
    %c0_240 = arith.constant 0 : index
    %475 = vector.load %arg13[%c0_238, %c0_239, %c0_240] : memref<2x1x32xf32, #tpu.memory_space<vmem>>, vector<1x1x32xf32>
    %476 = vector.shape_cast %475 : vector<1x1x32xf32> to vector<1x32xf32>
    %477 = vector.broadcast %476 : vector<1x32xf32> to vector<16x32xf32>
    %478 = arith.addf %474, %477 : vector<16x32xf32>
    %479 = vector.extract_strided_slice %15 {offsets = [1, 160], sizes = [1, 32], strides = [1, 1]} : vector<2x192xf32> to vector<1x32xf32>
    %480 = vector.broadcast %479 : vector<1x32xf32> to vector<16x32xf32>
    %481 = arith.mulf %478, %480 : vector<16x32xf32>
    %482 = arith.addf %427, %481 : vector<16x32xf32>
    %c1_241 = arith.constant 1 : index
    %c0_242 = arith.constant 0 : index
    %c0_243 = arith.constant 0 : index
    %483 = vector.load %arg14[%c1_241, %c0_242, %c0_243] : memref<2x16x32xf32, #tpu.memory_space<vmem>>, vector<1x16x32xf32>
    %484 = vector.shape_cast %483 : vector<1x16x32xf32> to vector<16x32xf32>
    %485 = vector.shape_cast %482 : vector<16x32xf32> to vector<1x16x32xf32>
    tpu.vector_store %arg14[%c1_241, %c0_242, %c0_243], %485 {strides = array<i32>} : memref<2x16x32xf32, #tpu.memory_space<vmem>>, vector<1x16x32xf32>,
    %c0_244 = arith.constant 0 : index
    %c16_245 = arith.constant 16 : index
    %c0_246 = arith.constant 0 : index
    %486 = vector.load %arg17[%c0_244, %c16_245, %c0_246] : memref<2x24x32xf32, #tpu.memory_space<vmem>>, vector<1x8x32xf32>
    %487 = vector.shape_cast %486 : vector<1x8x32xf32> to vector<8x32xf32>
    %c1_247 = arith.constant 1 : index
    %c0_248 = arith.constant 0 : index
    %c0_249 = arith.constant 0 : index
    %488 = vector.load %arg8[%c1_247, %c0_248, %c0_249] : memref<2x32x32xf32, #tpu.memory_space<vmem>>, vector<1x32x32xf32>
    %489 = vector.shape_cast %488 : vector<1x32x32xf32> to vector<32x32xf32>
    %cst_250 = arith.constant dense<0.000000e+00> : vector<8x32xf32>
    %490 = tpu.matmul %487, %489, %cst_250 {dimension_numbers = #tpu.dot_dimension_numbers<[1], [0], [0], [1], [0, 0, 1, 1], [], []>} : vector<8x32xf32>, vector<32x32xf32>, vector<8x32xf32> -> vector<8x32xf32>
    %c1_251 = arith.constant 1 : index
    %c0_252 = arith.constant 0 : index
    %c0_253 = arith.constant 0 : index
    %491 = vector.load %arg9[%c1_251, %c0_252, %c0_253] : memref<2x1x32xf32, #tpu.memory_space<vmem>>, vector<1x1x32xf32>
    %492 = vector.shape_cast %491 : vector<1x1x32xf32> to vector<1x32xf32>
    %493 = vector.broadcast %492 : vector<1x32xf32> to vector<8x32xf32>
    %494 = arith.addf %490, %493 : vector<8x32xf32>
    %c0_254 = arith.constant 0 : index
    %c0_255 = arith.constant 0 : index
    %c0_256 = arith.constant 0 : index
    %495 = vector.load %arg1[%c0_254, %c0_255, %c0_256] : memref<2x8x32xf32, #tpu.memory_space<vmem>>, vector<1x8x32xf32>
    %496 = vector.shape_cast %495 : vector<1x8x32xf32> to vector<8x32xf32>
    %497 = vector.extract_strided_slice %31 {offsets = [0, 64], sizes = [1, 32], strides = [1, 1]} : vector<2x192xf32> to vector<1x32xf32>
    %498 = vector.broadcast %497 : vector<1x32xf32> to vector<8x32xf32>
    %499 = arith.mulf %494, %498 : vector<8x32xf32>
    %500 = arith.addf %496, %499 : vector<8x32xf32>
    %501 = vector.extract_strided_slice %31 {offsets = [0, 96], sizes = [1, 32], strides = [1, 1]} : vector<2x192xf32> to vector<1x32xf32>
    %502 = vector.extract_strided_slice %31 {offsets = [0, 128], sizes = [1, 32], strides = [1, 1]} : vector<2x192xf32> to vector<1x32xf32>
    %cst_257 = arith.constant dense<0.000000e+00> : vector<8xf32>
    %503 = vector.multi_reduction <add>, %500, %cst_257 [1] : vector<8x32xf32> to vector<8xf32>
    %504 = vector.shape_cast %503 : vector<8xf32> to vector<8x1xf32>
    %cst_258 = arith.constant 3.200000e+01 : f32
    %505 = vector.broadcast %cst_258 : f32 to vector<8x1xf32>
    %506 = arith.divf %504, %505 : vector<8x1xf32>
    %507 = vector.broadcast %506 : vector<8x1xf32> to vector<8x32xf32>
    %508 = arith.subf %500, %507 : vector<8x32xf32>
    %509 = arith.mulf %508, %508 : vector<8x32xf32>
    %cst_259 = arith.constant dense<0.000000e+00> : vector<8xf32>
    %510 = vector.multi_reduction <add>, %509, %cst_259 [1] : vector<8x32xf32> to vector<8xf32>
    %511 = vector.shape_cast %510 : vector<8xf32> to vector<8x1xf32>
    %cst_260 = arith.constant 3.200000e+01 : f32
    %512 = vector.broadcast %cst_260 : f32 to vector<8x1xf32>
    %513 = arith.divf %511, %512 : vector<8x1xf32>
    %cst_261 = arith.constant 9.99999997E-7 : f32
    %514 = vector.broadcast %cst_261 : f32 to vector<8x1xf32>
    %515 = arith.addf %513, %514 : vector<8x1xf32>
    %516 = math.rsqrt %515 : vector<8x1xf32>
    %517 = vector.broadcast %516 : vector<8x1xf32> to vector<8x32xf32>
    %518 = arith.mulf %508, %517 : vector<8x32xf32>
    %cst_262 = arith.constant 1.000000e+00 : f32
    %519 = vector.broadcast %cst_262 : f32 to vector<1x32xf32>
    %520 = arith.addf %519, %501 : vector<1x32xf32>
    %521 = vector.broadcast %520 : vector<1x32xf32> to vector<8x32xf32>
    %522 = arith.mulf %518, %521 : vector<8x32xf32>
    %523 = vector.broadcast %502 : vector<1x32xf32> to vector<8x32xf32>
    %524 = arith.addf %522, %523 : vector<8x32xf32>
    %c1_263 = arith.constant 1 : index
    %c0_264 = arith.constant 0 : index
    %c0_265 = arith.constant 0 : index
    %525 = vector.load %arg10[%c1_263, %c0_264, %c0_265] : memref<2x32x128xf32, #tpu.memory_space<vmem>>, vector<1x32x128xf32>
    %526 = vector.shape_cast %525 : vector<1x32x128xf32> to vector<32x128xf32>
    %cst_266 = arith.constant dense<0.000000e+00> : vector<8x128xf32>
    %527 = tpu.matmul %524, %526, %cst_266 {dimension_numbers = #tpu.dot_dimension_numbers<[1], [0], [0], [1], [0, 0, 1, 1], [], []>} : vector<8x32xf32>, vector<32x128xf32>, vector<8x128xf32> -> vector<8x128xf32>
    %c1_267 = arith.constant 1 : index
    %c0_268 = arith.constant 0 : index
    %c0_269 = arith.constant 0 : index
    %528 = vector.load %arg11[%c1_267, %c0_268, %c0_269] : memref<2x1x128xf32, #tpu.memory_space<vmem>>, vector<1x1x128xf32>
    %529 = vector.shape_cast %528 : vector<1x1x128xf32> to vector<1x128xf32>
    %530 = vector.broadcast %529 : vector<1x128xf32> to vector<8x128xf32>
    %531 = arith.addf %527, %530 : vector<8x128xf32>
    %cst_270 = arith.constant 5.000000e-01 : f32
    %532 = vector.broadcast %cst_270 : f32 to vector<8x128xf32>
    %533 = arith.mulf %532, %531 : vector<8x128xf32>
    %cst_271 = arith.constant 4.471500e-02 : f32
    %534 = vector.broadcast %cst_271 : f32 to vector<8x128xf32>
    %535 = arith.mulf %534, %531 : vector<8x128xf32>
    %536 = arith.mulf %535, %531 : vector<8x128xf32>
    %537 = arith.mulf %536, %531 : vector<8x128xf32>
    %538 = arith.addf %531, %537 : vector<8x128xf32>
    %cst_272 = arith.constant 0.797884583 : f32
    %539 = vector.broadcast %cst_272 : f32 to vector<8x128xf32>
    %540 = arith.mulf %539, %538 : vector<8x128xf32>
    %541 = math.tanh %540 : vector<8x128xf32>
    %cst_273 = arith.constant 1.000000e+00 : f32
    %542 = vector.broadcast %cst_273 : f32 to vector<8x128xf32>
    %543 = arith.addf %542, %541 : vector<8x128xf32>
    %544 = arith.mulf %533, %543 : vector<8x128xf32>
    %c1_274 = arith.constant 1 : index
    %c0_275 = arith.constant 0 : index
    %c0_276 = arith.constant 0 : index
    %545 = vector.load %arg12[%c1_274, %c0_275, %c0_276] : memref<2x128x32xf32, #tpu.memory_space<vmem>>, vector<1x128x32xf32>
    %546 = vector.shape_cast %545 : vector<1x128x32xf32> to vector<128x32xf32>
    %cst_277 = arith.constant dense<0.000000e+00> : vector<8x32xf32>
    %547 = tpu.matmul %544, %546, %cst_277 {dimension_numbers = #tpu.dot_dimension_numbers<[1], [0], [0], [1], [0, 0, 1, 1], [], []>} : vector<8x128xf32>, vector<128x32xf32>, vector<8x32xf32> -> vector<8x32xf32>
    %c1_278 = arith.constant 1 : index
    %c0_279 = arith.constant 0 : index
    %c0_280 = arith.constant 0 : index
    %548 = vector.load %arg13[%c1_278, %c0_279, %c0_280] : memref<2x1x32xf32, #tpu.memory_space<vmem>>, vector<1x1x32xf32>
    %549 = vector.shape_cast %548 : vector<1x1x32xf32> to vector<1x32xf32>
    %550 = vector.broadcast %549 : vector<1x32xf32> to vector<8x32xf32>
    %551 = arith.addf %547, %550 : vector<8x32xf32>
    %552 = vector.extract_strided_slice %31 {offsets = [0, 160], sizes = [1, 32], strides = [1, 1]} : vector<2x192xf32> to vector<1x32xf32>
    %553 = vector.broadcast %552 : vector<1x32xf32> to vector<8x32xf32>
    %554 = arith.mulf %551, %553 : vector<8x32xf32>
    %555 = arith.addf %500, %554 : vector<8x32xf32>
    %c0_281 = arith.constant 0 : index
    %c0_282 = arith.constant 0 : index
    %c0_283 = arith.constant 0 : index
    %556 = vector.load %arg15[%c0_281, %c0_282, %c0_283] : memref<2x8x32xf32, #tpu.memory_space<vmem>>, vector<1x8x32xf32>
    %557 = vector.shape_cast %556 : vector<1x8x32xf32> to vector<8x32xf32>
    %558 = vector.shape_cast %555 : vector<8x32xf32> to vector<1x8x32xf32>
    tpu.vector_store %arg15[%c0_281, %c0_282, %c0_283], %558 {strides = array<i32>} : memref<2x8x32xf32, #tpu.memory_space<vmem>>, vector<1x8x32xf32>,
    %c1_284 = arith.constant 1 : index
    %c16_285 = arith.constant 16 : index
    %c0_286 = arith.constant 0 : index
    %559 = vector.load %arg17[%c1_284, %c16_285, %c0_286] : memref<2x24x32xf32, #tpu.memory_space<vmem>>, vector<1x8x32xf32>
    %560 = vector.shape_cast %559 : vector<1x8x32xf32> to vector<8x32xf32>
    %c1_287 = arith.constant 1 : index
    %c0_288 = arith.constant 0 : index
    %c0_289 = arith.constant 0 : index
    %561 = vector.load %arg8[%c1_287, %c0_288, %c0_289] : memref<2x32x32xf32, #tpu.memory_space<vmem>>, vector<1x32x32xf32>
    %562 = vector.shape_cast %561 : vector<1x32x32xf32> to vector<32x32xf32>
    %cst_290 = arith.constant dense<0.000000e+00> : vector<8x32xf32>
    %563 = tpu.matmul %560, %562, %cst_290 {dimension_numbers = #tpu.dot_dimension_numbers<[1], [0], [0], [1], [0, 0, 1, 1], [], []>} : vector<8x32xf32>, vector<32x32xf32>, vector<8x32xf32> -> vector<8x32xf32>
    %c1_291 = arith.constant 1 : index
    %c0_292 = arith.constant 0 : index
    %c0_293 = arith.constant 0 : index
    %564 = vector.load %arg9[%c1_291, %c0_292, %c0_293] : memref<2x1x32xf32, #tpu.memory_space<vmem>>, vector<1x1x32xf32>
    %565 = vector.shape_cast %564 : vector<1x1x32xf32> to vector<1x32xf32>
    %566 = vector.broadcast %565 : vector<1x32xf32> to vector<8x32xf32>
    %567 = arith.addf %563, %566 : vector<8x32xf32>
    %c1_294 = arith.constant 1 : index
    %c0_295 = arith.constant 0 : index
    %c0_296 = arith.constant 0 : index
    %568 = vector.load %arg1[%c1_294, %c0_295, %c0_296] : memref<2x8x32xf32, #tpu.memory_space<vmem>>, vector<1x8x32xf32>
    %569 = vector.shape_cast %568 : vector<1x8x32xf32> to vector<8x32xf32>
    %570 = vector.extract_strided_slice %31 {offsets = [1, 64], sizes = [1, 32], strides = [1, 1]} : vector<2x192xf32> to vector<1x32xf32>
    %571 = vector.broadcast %570 : vector<1x32xf32> to vector<8x32xf32>
    %572 = arith.mulf %567, %571 : vector<8x32xf32>
    %573 = arith.addf %569, %572 : vector<8x32xf32>
    %574 = vector.extract_strided_slice %31 {offsets = [1, 96], sizes = [1, 32], strides = [1, 1]} : vector<2x192xf32> to vector<1x32xf32>
    %575 = vector.extract_strided_slice %31 {offsets = [1, 128], sizes = [1, 32], strides = [1, 1]} : vector<2x192xf32> to vector<1x32xf32>
    %cst_297 = arith.constant dense<0.000000e+00> : vector<8xf32>
    %576 = vector.multi_reduction <add>, %573, %cst_297 [1] : vector<8x32xf32> to vector<8xf32>
    %577 = vector.shape_cast %576 : vector<8xf32> to vector<8x1xf32>
    %cst_298 = arith.constant 3.200000e+01 : f32
    %578 = vector.broadcast %cst_298 : f32 to vector<8x1xf32>
    %579 = arith.divf %577, %578 : vector<8x1xf32>
    %580 = vector.broadcast %579 : vector<8x1xf32> to vector<8x32xf32>
    %581 = arith.subf %573, %580 : vector<8x32xf32>
    %582 = arith.mulf %581, %581 : vector<8x32xf32>
    %cst_299 = arith.constant dense<0.000000e+00> : vector<8xf32>
    %583 = vector.multi_reduction <add>, %582, %cst_299 [1] : vector<8x32xf32> to vector<8xf32>
    %584 = vector.shape_cast %583 : vector<8xf32> to vector<8x1xf32>
    %cst_300 = arith.constant 3.200000e+01 : f32
    %585 = vector.broadcast %cst_300 : f32 to vector<8x1xf32>
    %586 = arith.divf %584, %585 : vector<8x1xf32>
    %cst_301 = arith.constant 9.99999997E-7 : f32
    %587 = vector.broadcast %cst_301 : f32 to vector<8x1xf32>
    %588 = arith.addf %586, %587 : vector<8x1xf32>
    %589 = math.rsqrt %588 : vector<8x1xf32>
    %590 = vector.broadcast %589 : vector<8x1xf32> to vector<8x32xf32>
    %591 = arith.mulf %581, %590 : vector<8x32xf32>
    %cst_302 = arith.constant 1.000000e+00 : f32
    %592 = vector.broadcast %cst_302 : f32 to vector<1x32xf32>
    %593 = arith.addf %592, %574 : vector<1x32xf32>
    %594 = vector.broadcast %593 : vector<1x32xf32> to vector<8x32xf32>
    %595 = arith.mulf %591, %594 : vector<8x32xf32>
    %596 = vector.broadcast %575 : vector<1x32xf32> to vector<8x32xf32>
    %597 = arith.addf %595, %596 : vector<8x32xf32>
    %c1_303 = arith.constant 1 : index
    %c0_304 = arith.constant 0 : index
    %c0_305 = arith.constant 0 : index
    %598 = vector.load %arg10[%c1_303, %c0_304, %c0_305] : memref<2x32x128xf32, #tpu.memory_space<vmem>>, vector<1x32x128xf32>
    %599 = vector.shape_cast %598 : vector<1x32x128xf32> to vector<32x128xf32>
    %cst_306 = arith.constant dense<0.000000e+00> : vector<8x128xf32>
    %600 = tpu.matmul %597, %599, %cst_306 {dimension_numbers = #tpu.dot_dimension_numbers<[1], [0], [0], [1], [0, 0, 1, 1], [], []>} : vector<8x32xf32>, vector<32x128xf32>, vector<8x128xf32> -> vector<8x128xf32>
    %c1_307 = arith.constant 1 : index
    %c0_308 = arith.constant 0 : index
    %c0_309 = arith.constant 0 : index
    %601 = vector.load %arg11[%c1_307, %c0_308, %c0_309] : memref<2x1x128xf32, #tpu.memory_space<vmem>>, vector<1x1x128xf32>
    %602 = vector.shape_cast %601 : vector<1x1x128xf32> to vector<1x128xf32>
    %603 = vector.broadcast %602 : vector<1x128xf32> to vector<8x128xf32>
    %604 = arith.addf %600, %603 : vector<8x128xf32>
    %cst_310 = arith.constant 5.000000e-01 : f32
    %605 = vector.broadcast %cst_310 : f32 to vector<8x128xf32>
    %606 = arith.mulf %605, %604 : vector<8x128xf32>
    %cst_311 = arith.constant 4.471500e-02 : f32
    %607 = vector.broadcast %cst_311 : f32 to vector<8x128xf32>
    %608 = arith.mulf %607, %604 : vector<8x128xf32>
    %609 = arith.mulf %608, %604 : vector<8x128xf32>
    %610 = arith.mulf %609, %604 : vector<8x128xf32>
    %611 = arith.addf %604, %610 : vector<8x128xf32>
    %cst_312 = arith.constant 0.797884583 : f32
    %612 = vector.broadcast %cst_312 : f32 to vector<8x128xf32>
    %613 = arith.mulf %612, %611 : vector<8x128xf32>
    %614 = math.tanh %613 : vector<8x128xf32>
    %cst_313 = arith.constant 1.000000e+00 : f32
    %615 = vector.broadcast %cst_313 : f32 to vector<8x128xf32>
    %616 = arith.addf %615, %614 : vector<8x128xf32>
    %617 = arith.mulf %606, %616 : vector<8x128xf32>
    %c1_314 = arith.constant 1 : index
    %c0_315 = arith.constant 0 : index
    %c0_316 = arith.constant 0 : index
    %618 = vector.load %arg12[%c1_314, %c0_315, %c0_316] : memref<2x128x32xf32, #tpu.memory_space<vmem>>, vector<1x128x32xf32>
    %619 = vector.shape_cast %618 : vector<1x128x32xf32> to vector<128x32xf32>
    %cst_317 = arith.constant dense<0.000000e+00> : vector<8x32xf32>
    %620 = tpu.matmul %617, %619, %cst_317 {dimension_numbers = #tpu.dot_dimension_numbers<[1], [0], [0], [1], [0, 0, 1, 1], [], []>} : vector<8x128xf32>, vector<128x32xf32>, vector<8x32xf32> -> vector<8x32xf32>
    %c1_318 = arith.constant 1 : index
    %c0_319 = arith.constant 0 : index
    %c0_320 = arith.constant 0 : index
    %621 = vector.load %arg13[%c1_318, %c0_319, %c0_320] : memref<2x1x32xf32, #tpu.memory_space<vmem>>, vector<1x1x32xf32>
    %622 = vector.shape_cast %621 : vector<1x1x32xf32> to vector<1x32xf32>
    %623 = vector.broadcast %622 : vector<1x32xf32> to vector<8x32xf32>
    %624 = arith.addf %620, %623 : vector<8x32xf32>
    %625 = vector.extract_strided_slice %31 {offsets = [1, 160], sizes = [1, 32], strides = [1, 1]} : vector<2x192xf32> to vector<1x32xf32>
    %626 = vector.broadcast %625 : vector<1x32xf32> to vector<8x32xf32>
    %627 = arith.mulf %624, %626 : vector<8x32xf32>
    %628 = arith.addf %573, %627 : vector<8x32xf32>
    %c1_321 = arith.constant 1 : index
    %c0_322 = arith.constant 0 : index
    %c0_323 = arith.constant 0 : index
    %629 = vector.load %arg15[%c1_321, %c0_322, %c0_323] : memref<2x8x32xf32, #tpu.memory_space<vmem>>, vector<1x8x32xf32>
    %630 = vector.shape_cast %629 : vector<1x8x32xf32> to vector<8x32xf32>
    %631 = vector.shape_cast %628 : vector<8x32xf32> to vector<1x8x32xf32>
    tpu.vector_store %arg15[%c1_321, %c0_322, %c0_323], %631 {strides = array<i32>} : memref<2x8x32xf32, #tpu.memory_space<vmem>>, vector<1x8x32xf32>,
    return
  }
}

</mosaic_0001>

<llo_original>
// kernel: tpu_custom_call.1
$region0: #{tpu_custom_call.1}
  #allocation0 [shape = 'u32[]', space=smem, size = 0x4, offset = 0x4, fixed_abs, tag = 'smem constant byte address 0x4 - core index']
  #allocation1 [shape = 'u32[72,128]{1,0:T(1,128)}', space=vmem, size = 0x9000, scoped, tag = 'internal scratch']
  #allocation2 [shape = 'f32[2,24,96]{2,1,0:T(8,128)}', space=vmem, size = 0x6000, scoped, tag = 'scratch operand']
  #allocation3 [shape = 'f32[2,24,32]{2,1,0:T(8,128)}', space=vmem, size = 0x6000, scoped, tag = 'scratch operand']
  %s0 = inlined_call_operand.hbm [shape: f32[2,16,32], index: 0, kind: input, shape index: {}]
  %s1 = inlined_call_operand.hbm [shape: f32[2,8,32], index: 1, kind: input, shape index: {}]
  %s2 = inlined_call_operand.hbm [shape: f32[2,32], index: 2, kind: input, shape index: {}]
  %s3 = inlined_call_operand.hbm [shape: f32[2,32], index: 3, kind: input, shape index: {}]
  %s4 = inlined_call_operand.vmem [shape: f32[2,32,192], index: 4, kind: input, shape index: {}]
  %s5 = inlined_call_operand.hbm [shape: f32[2,1,192], index: 5, kind: input, shape index: {}]
  %s6 = inlined_call_operand.vmem [shape: f32[2,32,96], index: 6, kind: input, shape index: {}]
  %s7 = inlined_call_operand.vmem [shape: f32[2,1,96], index: 7, kind: input, shape index: {}]
  %s8 = inlined_call_operand.vmem [shape: f32[2,32,32], index: 8, kind: input, shape index: {}]
  %s9 = inlined_call_operand.vmem [shape: f32[2,1,32], index: 9, kind: input, shape index: {}]
  %s10 = inlined_call_operand.vmem [shape: f32[2,32,128], index: 10, kind: input, shape index: {}]
  %s11 = inlined_call_operand.vmem [shape: f32[2,1,128], index: 11, kind: input, shape index: {}]
  %s12 = inlined_call_operand.vmem [shape: f32[2,128,32], index: 12, kind: input, shape index: {}]
  %s13 = inlined_call_operand.vmem [shape: f32[2,1,32], index: 13, kind: input, shape index: {}]
  %s14 = inlined_call_operand.hbm [shape: f32[2,16,32], index: 14, kind: output, shape index: {0}]
  %s15 = inlined_call_operand.hbm [shape: f32[2,8,32], index: 15, kind: output, shape index: {1}]
  %16 = xla_tuple %s14, %s15
  %s17 = sld [smem:[#allocation0]]
  $region94: #{tpu_custom_call.1} parent=0
    _
  %s19 = ssub.s32 1, %s17
  %s20 = scalar_select 0, %s19, %s17
  $region1: #{tpu_custom_call.1} parent=0
    #allocation4 [shape = 'u8[16384]{0}', space=vmem, size = 0x4000, scoped, tag = 'input window, operand 0, single buffered']
    #allocation5 [shape = 's32[1]{0}', space=sflag, size = 0x4, scoped, tag = 'scoped memory for tpu_custom_call.1']
    #allocation6 [shape = 's32[1]{0}', space=sflag, size = 0x4, scoped, tag = 'scoped memory for tpu_custom_call.1']
    #allocation7 [shape = 'u8[8192]{0}', space=vmem, size = 0x2000, scoped, tag = 'input window, operand 1, single buffered']
    #allocation8 [shape = 's32[1]{0}', space=sflag, size = 0x4, scoped, tag = 'scoped memory for tpu_custom_call.1']
    #allocation9 [shape = 'u8[1024]{0}', space=vmem, size = 0x400, scoped, tag = 'input window, operand 2, single buffered']
    #allocation10 [shape = 'u8[1024]{0}', space=vmem, size = 0x400, scoped, tag = 'input window, operand 3, single buffered']
    #allocation11 [shape = 's32[1]{0}', space=sflag, size = 0x4, scoped, tag = 'scoped memory for tpu_custom_call.1']
    #allocation12 [shape = 'u8[2048]{0}', space=vmem, size = 0x800, scoped, tag = 'input window, operand 5, single buffered']
    #allocation13 [shape = 'u8[16384]{0}', space=vmem, size = 0x4000, scoped, tag = 'output window, operand 0, single buffered']
    #allocation14 [shape = 'u8[8192]{0}', space=vmem, size = 0x2000, scoped, tag = 'output window, operand 1, single buffered']
    #allocation15 [shape = 's32[1]{0}', space=sflag, size = 0x4, scoped, tag = 'scoped memory for tpu_custom_call.1']
    %21 = vsyncpa [#allocation5], 0
    %22 = vsyncpa [#allocation8], 0
    %23 = vsyncpa [#allocation11], 0
    %24 = vsyncpa [#allocation6], 0
    %25 = vsyncpa [#allocation15], 0
    // Predicated region
    $region2: #{tpu_custom_call.1} parent=1 // pred_check
      _
    $region3: #{tpu_custom_call.1} parent=1 // pred_check_branch
      %27 = sbr.rel (0) target = $region5
    $region4: #{tpu_custom_call.1} parent=1 // pred_region
      %29 = vsyncadd [#allocation5], 0
      %s30 = sshll.u32 %s0, 4
      %s31 = int_to_ptr.hbm [resolvable:$true] %s30
      %s32 = sshll.u32 [#allocation4], 4
      %s33 = int_to_ptr.vmem [resolvable:$true] %s32
      %38 = dma.hbm_to_vmem [thread:$0]  %s31, 512, %s33, [#allocation5], 128, 128, 8
    $region5: #{tpu_custom_call.1} parent=1 // pred_fallthru
      _
    // Predicated region
    $region6: #{tpu_custom_call.1} parent=1 // pred_check
      _
    $region7: #{tpu_custom_call.1} parent=1 // pred_check_branch
      %40 = sbr.rel (0) target = $region9
    $region8: #{tpu_custom_call.1} parent=1 // pred_region
      %42 = vsyncadd [#allocation8], 0
      %s43 = sshll.u32 %s1, 4
      %s44 = int_to_ptr.hbm [resolvable:$true] %s43
      %s45 = sshll.u32 [#allocation7], 4
      %s46 = int_to_ptr.vmem [resolvable:$true] %s45
      %51 = dma.hbm_to_vmem [thread:$0]  %s44, 256, %s46, [#allocation8], 128, 128, 8
    $region9: #{tpu_custom_call.1} parent=1 // pred_fallthru
      _
    // Predicated region
    $region10: #{tpu_custom_call.1} parent=1 // pred_check
      _
    $region11: #{tpu_custom_call.1} parent=1 // pred_check_branch
      %53 = sbr.rel (0) target = $region13
    $region12: #{tpu_custom_call.1} parent=1 // pred_region
      %55 = vsyncadd [#allocation8], 0
      %s57 = sshll.u32 %s2, 4
      %s58 = int_to_ptr.hbm [resolvable:$true] %s57
      %s59 = sshll.u32 [#allocation9], 4
      %s60 = int_to_ptr.vmem [resolvable:$true] %s59
      %62 = dma.hbm_to_vmem [thread:$0]  %s58, 32, %s60, [#allocation8]
    $region13: #{tpu_custom_call.1} parent=1 // pred_fallthru
      _
    // Predicated region
    $region14: #{tpu_custom_call.1} parent=1 // pred_check
      _
    $region15: #{tpu_custom_call.1} parent=1 // pred_check_branch
      %64 = sbr.rel (0) target = $region17
    $region16: #{tpu_custom_call.1} parent=1 // pred_region
      %66 = vsyncadd [#allocation11], 0
      %s68 = sshll.u32 %s3, 4
      %s69 = int_to_ptr.hbm [resolvable:$true] %s68
      %s70 = sshll.u32 [#allocation10], 4
      %s71 = int_to_ptr.vmem [resolvable:$true] %s70
      %73 = dma.hbm_to_vmem [thread:$0]  %s69, 32, %s71, [#allocation11]
    $region17: #{tpu_custom_call.1} parent=1 // pred_fallthru
      _
    // Predicated region
    $region18: #{tpu_custom_call.1} parent=1 // pred_check
      _
    $region19: #{tpu_custom_call.1} parent=1 // pred_check_branch
      %75 = sbr.rel (0) target = $region21
    $region20: #{tpu_custom_call.1} parent=1 // pred_region
      _
    $region21: #{tpu_custom_call.1} parent=1 // pred_fallthru
      _
    // Predicated region
    $region22: #{tpu_custom_call.1} parent=1 // pred_check
      _
    $region23: #{tpu_custom_call.1} parent=1 // pred_check_branch
      %77 = sbr.rel (0) target = $region25
    $region24: #{tpu_custom_call.1} parent=1 // pred_region
      %79 = vsyncadd [#allocation11], 0
      %s80 = sshll.u32 %s5, 4
      %s81 = int_to_ptr.hbm [resolvable:$true] %s80
      %s82 = sshll.u32 [#allocation12], 4
      %s83 = int_to_ptr.vmem [resolvable:$true] %s82
      %88 = dma.hbm_to_vmem [thread:$0]  %s81, 64, %s83, [#allocation11], 32, 32, 2
    $region25: #{tpu_custom_call.1} parent=1 // pred_fallthru
      _
    // Predicated region
    $region26: #{tpu_custom_call.1} parent=1 // pred_check
      _
    $region27: #{tpu_custom_call.1} parent=1 // pred_check_branch
      %90 = sbr.rel (0) target = $region29
    $region28: #{tpu_custom_call.1} parent=1 // pred_region
      _
    $region29: #{tpu_custom_call.1} parent=1 // pred_fallthru
      _
    // Predicated region
    $region30: #{tpu_custom_call.1} parent=1 // pred_check
      _
    $region31: #{tpu_custom_call.1} parent=1 // pred_check_branch
      %92 = sbr.rel (0) target = $region33
    $region32: #{tpu_custom_call.1} parent=1 // pred_region
      _
    $region33: #{tpu_custom_call.1} parent=1 // pred_fallthru
      _
    // Predicated region
    $region34: #{tpu_custom_call.1} parent=1 // pred_check
      _
    $region35: #{tpu_custom_call.1} parent=1 // pred_check_branch
      %94 = sbr.rel (0) target = $region37
    $region36: #{tpu_custom_call.1} parent=1 // pred_region
      _
    $region37: #{tpu_custom_call.1} parent=1 // pred_fallthru
      _
    // Predicated region
    $region38: #{tpu_custom_call.1} parent=1 // pred_check
      _
    $region39: #{tpu_custom_call.1} parent=1 // pred_check_branch
      %96 = sbr.rel (0) target = $region41
    $region40: #{tpu_custom_call.1} parent=1 // pred_region
      _
    $region41: #{tpu_custom_call.1} parent=1 // pred_fallthru
      _
    // Predicated region
    $region42: #{tpu_custom_call.1} parent=1 // pred_check
      _
    $region43: #{tpu_custom_call.1} parent=1 // pred_check_branch
      %98 = sbr.rel (0) target = $region45
    $region44: #{tpu_custom_call.1} parent=1 // pred_region
      _
    $region45: #{tpu_custom_call.1} parent=1 // pred_fallthru
      _
    // Predicated region
    $region46: #{tpu_custom_call.1} parent=1 // pred_check
      _
    $region47: #{tpu_custom_call.1} parent=1 // pred_check_branch
      %100 = sbr.rel (0) target = $region49
    $region48: #{tpu_custom_call.1} parent=1 // pred_region
      _
    $region49: #{tpu_custom_call.1} parent=1 // pred_fallthru
      _
    // Predicated region
    $region50: #{tpu_custom_call.1} parent=1 // pred_check
      _
    $region51: #{tpu_custom_call.1} parent=1 // pred_check_branch
      %102 = sbr.rel (0) target = $region53
    $region52: #{tpu_custom_call.1} parent=1 // pred_region
      _
    $region53: #{tpu_custom_call.1} parent=1 // pred_fallthru
      _
    // Predicated region
    $region54: #{tpu_custom_call.1} parent=1 // pred_check
      _
    $region55: #{tpu_custom_call.1} parent=1 // pred_check_branch
      %104 = sbr.rel (0) target = $region57
    $region56: #{tpu_custom_call.1} parent=1 // pred_region
      _
    $region57: #{tpu_custom_call.1} parent=1 // pred_fallthru
      _
    // Predicated region
    $region58: #{tpu_custom_call.1} parent=1 // pred_check
      _
    $region59: #{tpu_custom_call.1} parent=1 // pred_check_branch
      %106 = sbr.rel (0) target = $region61
    $region60: #{tpu_custom_call.1} parent=1 // pred_region
      %108 = dma.done [#allocation5], 512
    $region61: #{tpu_custom_call.1} parent=1 // pred_fallthru
      _
    // Predicated region
    $region62: #{tpu_custom_call.1} parent=1 // pred_check
      _
    $region63: #{tpu_custom_call.1} parent=1 // pred_check_branch
      %110 = sbr.rel (0) target = $region65
    $region64: #{tpu_custom_call.1} parent=1 // pred_region
      %112 = dma.done [#allocation8], 256
    $region65: #{tpu_custom_call.1} parent=1 // pred_fallthru
      _
    // Predicated region
    $region66: #{tpu_custom_call.1} parent=1 // pred_check
      _
    $region67: #{tpu_custom_call.1} parent=1 // pred_check_branch
      %114 = sbr.rel (0) target = $region69
    $region68: #{tpu_custom_call.1} parent=1 // pred_region
      %116 = dma.done [#allocation8], 32
    $region69: #{tpu_custom_call.1} parent=1 // pred_fallthru
      _
    // Predicated region
    $region70: #{tpu_custom_call.1} parent=1 // pred_check
      _
    $region71: #{tpu_custom_call.1} parent=1 // pred_check_branch
      %118 = sbr.rel (0) target = $region73
    $region72: #{tpu_custom_call.1} parent=1 // pred_region
      %120 = dma.done [#allocation11], 32
    $region73: #{tpu_custom_call.1} parent=1 // pred_fallthru
      _
    // Predicated region
    $region74: #{tpu_custom_call.1} parent=1 // pred_check
      _
    $region75: #{tpu_custom_call.1} parent=1 // pred_check_branch
      %122 = sbr.rel (0) target = $region77
    $region76: #{tpu_custom_call.1} parent=1 // pred_region
      %124 = dma.done [#allocation11], 64
    $region77: #{tpu_custom_call.1} parent=1 // pred_fallthru
      _
    %v125 = vld [vmem:[#allocation9] sm:$0x3]
    %v126 = vsub.f32 0.0, %v125
    %v127 = vmul.f32 %v126, 1.442695
    %v128 = vpow.pop %v127
    %v129 = vadd.f32 %v128, 1.0
    %v130 = vrcp.pop %v129
    %v131 = vmul.f32 %v129, %v130
    %v132 = vsub.f32 1.0, %v131
    %v133 = vmul.f32 %v130, %v132
    %v134 = vadd.f32 %v130, %v133
    %vm135 = vweird.f32 %v129
    %vm136 = vweird.f32 %v130
    %vm137 = vmor %vm135, %vm136
    %v138 = vsel %vm137, %v130, %v134
    %v139 = vand.u32 2147483647, %v129
    %vm140 = vcmp.eq.f32.partialorder %v139, 8.507059e+37
    %v141 = vand.u32 %v129, 2147483648
    %v142 = vor.u32 1.1754944e-38, %v141
    %v143 = vsel %vm140, %v142, %v138
    %v144 = vmul.f32 1.0, %v143
    %v145 = vmul.f32 %v125, %v144
    %v146 = vld [vmem:[%s4] sm:$0xff]
    %v147 = vld [vmem:[%s4 + $0x8] sm:$0xff]
    %v148 = vld [vmem:[%s4 + $0x10] sm:$0xff]
    %v149 = vld [vmem:[%s4 + $0x18] sm:$0xff]
    %v150 = vld [vmem:[%s4 + $0x20] sm:$0xff]
    %v151 = vld [vmem:[%s4 + $0x28] sm:$0xff]
    %v152 = vld [vmem:[%s4 + $0x30] sm:$0xff]
    %v153 = vld [vmem:[%s4 + $0x38] sm:$0xff]
    %v154 = vld [vmem:[#allocation12] sm:$0x3]
    %v156 = vperm.slane %v154, 0
    %v157 = vperm.slane %v154, 1
    %vm160 = vcmask 261120
    %v162 = vsel %vm160, %v145, 0
    %164 = vmatpush.msra.mxu0 0.0
    %165 = vmatpush.msra.mxu0 0.0
    %166 = vmatpush.msra.mxu0 0.0
    %167 = vmatpush.msra.mxu0 0.0
    %168 = vmatpush.msra.mxu0 0.0
    %169 = vmatpush.msra.mxu0 0.0
    %170 = vmatpush.msra.mxu0 0.0
    %171 = vmatpush.msra.mxu0 0.0
    %172 = vmatpush.msra.mxu0 0.0
    %173 = vmatpush.msra.mxu0 0.0
    %174 = vmatpush.msra.mxu0 0.0
    %175 = vmatpush.msra.mxu0 0.0
    %176 = vmatpush.msra.mxu0 %v152
    %177 = vmatpush.msra.mxu0 %v150
    %178 = vmatpush.msra.mxu0 %v148
    %179 = vmatpush.msra.mxu0 %v146
    %180 = vmatmul.f32.gmra.mxu0 %v162
    %v181 = vpop.f32.mrf.mxu0
    %v182 = vadd.f32 %v156, %v181
    %183 = vdwg.mxu0
    %184 = vmatpush.msra.mxu0 0.0
    %185 = vmatpush.msra.mxu0 0.0
    %186 = vmatpush.msra.mxu0 0.0
    %187 = vmatpush.msra.mxu0 0.0
    %188 = vmatpush.msra.mxu0 0.0
    %189 = vmatpush.msra.mxu0 0.0
    %190 = vmatpush.msra.mxu0 0.0
    %191 = vmatpush.msra.mxu0 0.0
    %192 = vmatpush.msra.mxu0 0.0
    %193 = vmatpush.msra.mxu0 0.0
    %194 = vmatpush.msra.mxu0 0.0
    %195 = vmatpush.msra.mxu0 0.0
    %196 = vmatpush.msra.mxu0 %v153
    %197 = vmatpush.msra.mxu0 %v151
    %198 = vmatpush.msra.mxu0 %v149
    %199 = vmatpush.msra.mxu0 %v147
    %200 = vmatmul.f32.gmra.mxu0 %v162
    %v201 = vpop.f32.mrf.mxu0
    %v202 = vadd.f32 %v157, %v201
    %203 = vdwg.mxu0
    %v204 = vld [vmem:[#allocation10] sm:$0x3]
    %v205 = vsub.f32 0.0, %v204
    %v206 = vmul.f32 %v205, 1.442695
    %v207 = vpow.pop %v206
    %v208 = vadd.f32 %v207, 1.0
    %v209 = vrcp.pop %v208
    %v210 = vmul.f32 %v208, %v209
    %v211 = vsub.f32 1.0, %v210
    %v212 = vmul.f32 %v209, %v211
    %v213 = vadd.f32 %v209, %v212
    %vm214 = vweird.f32 %v208
    %vm215 = vweird.f32 %v209
    %vm216 = vmor %vm214, %vm215
    %v217 = vsel %vm216, %v209, %v213
    %v218 = vand.u32 2147483647, %v208
    %vm219 = vcmp.eq.f32.partialorder %v218, 8.507059e+37
    %v220 = vand.u32 %v208, 2147483648
    %v221 = vor.u32 1.1754944e-38, %v220
    %v222 = vsel %vm219, %v221, %v217
    %v223 = vmul.f32 1.0, %v222
    %v224 = vmul.f32 %v204, %v223
    %s225 = scalar_lea.vmem %s4, 64
    %v226 = vld [vmem:[%s225] sm:$0xff]
    %v227 = vld [vmem:[%s225 + $0x8] sm:$0xff]
    %v228 = vld [vmem:[%s225 + $0x10] sm:$0xff]
    %v229 = vld [vmem:[%s225 + $0x18] sm:$0xff]
    %v230 = vld [vmem:[%s225 + $0x20] sm:$0xff]
    %v231 = vld [vmem:[%s225 + $0x28] sm:$0xff]
    %v232 = vld [vmem:[%s225 + $0x30] sm:$0xff]
    %v233 = vld [vmem:[%s225 + $0x38] sm:$0xff]
    %s234 = scalar_lea.vmem [#allocation12], 2
    %v235 = vld [vmem:[%s234] sm:$0x3]
    %v237 = vperm.slane %v235, 0
    %v238 = vperm.slane %v235, 1
    %v242 = vsel %vm160, %v224, 0
    %244 = vmatpush.msra.mxu0 0.0
    %245 = vmatpush.msra.mxu0 0.0
    %246 = vmatpush.msra.mxu0 0.0
    %247 = vmatpush.msra.mxu0 0.0
    %248 = vmatpush.msra.mxu0 0.0
    %249 = vmatpush.msra.mxu0 0.0
    %250 = vmatpush.msra.mxu0 0.0
    %251 = vmatpush.msra.mxu0 0.0
    %252 = vmatpush.msra.mxu0 0.0
    %253 = vmatpush.msra.mxu0 0.0
    %254 = vmatpush.msra.mxu0 0.0
    %255 = vmatpush.msra.mxu0 0.0
    %256 = vmatpush.msra.mxu0 %v232
    %257 = vmatpush.msra.mxu0 %v230
    %258 = vmatpush.msra.mxu0 %v228
    %259 = vmatpush.msra.mxu0 %v226
    %260 = vmatmul.f32.gmra.mxu0 %v242
    %v261 = vpop.f32.mrf.mxu0
    %v262 = vadd.f32 %v237, %v261
    %263 = vdwg.mxu0
    %264 = vmatpush.msra.mxu0 0.0
    %265 = vmatpush.msra.mxu0 0.0
    %266 = vmatpush.msra.mxu0 0.0
    %267 = vmatpush.msra.mxu0 0.0
    %268 = vmatpush.msra.mxu0 0.0
    %269 = vmatpush.msra.mxu0 0.0
    %270 = vmatpush.msra.mxu0 0.0
    %271 = vmatpush.msra.mxu0 0.0
    %272 = vmatpush.msra.mxu0 0.0
    %273 = vmatpush.msra.mxu0 0.0
    %274 = vmatpush.msra.mxu0 0.0
    %275 = vmatpush.msra.mxu0 0.0
    %276 = vmatpush.msra.mxu0 %v233
    %277 = vmatpush.msra.mxu0 %v231
    %278 = vmatpush.msra.mxu0 %v229
    %279 = vmatpush.msra.mxu0 %v227
    %280 = vmatmul.f32.gmra.mxu0 %v242
    %v281 = vpop.f32.mrf.mxu0
    %v282 = vadd.f32 %v238, %v281
    %283 = vdwg.mxu0
    %v284 = vld [vmem:[#allocation4] sm:$0xff]
    %v285 = vld [vmem:[#allocation4 + $0x8] sm:$0xff]
    %v286 = vsel %vm160, %v284, 0.0
    %287 = vadd.xlane.f32.xlu0 %v286
    %v288 = vpop.xlane.xlu0 %287
    %v289 = vsel %vm160, %v285, 0.0
    %290 = vadd.xlane.f32.xlu0 %v289
    %v291 = vpop.xlane.xlu0 %290
    %v292 = vrcp.pop 32.0
    %v293 = vmul.f32 32.0, %v292
    %v294 = vsub.f32 1.0, %v293
    %v295 = vmul.f32 %v292, %v294
    %v296 = vadd.f32 %v292, %v295
    %vm297 = vweird.f32 %v292
    %v298 = vsel %vm297, %v292, %v296
    %v299 = vmul.f32 %v288, %v298
    %v300 = vmul.f32 %v291, %v298
    %v301 = vsub.f32 %v284, %v299
    %v302 = vsub.f32 %v285, %v300
    %v303 = vmul.f32 %v301, %v301
    %v304 = vmul.f32 %v302, %v302
    %v305 = vsel %vm160, %v303, 0.0
    %306 = vadd.xlane.f32.xlu0 %v305
    %v307 = vpop.xlane.xlu0 %306
    %v308 = vsel %vm160, %v304, 0.0
    %309 = vadd.xlane.f32.xlu0 %v308
    %v310 = vpop.xlane.xlu0 %309
    %v311 = vmul.f32 %v307, %v298
    %v312 = vmul.f32 %v310, %v298
    %v313 = vadd.f32 %v311, 1e-06
    %v314 = vadd.f32 %v312, 1e-06
    %v315 = vrsqrt.pop %v313
    %v316 = vmul.f32 %v315, %v313
    %v317 = vmul.f32 %v316, %v315
    %v318 = vmul.f32 0.5, %v317
    %v319 = vsub.f32 1.5, %v318
    %v320 = vmul.f32 %v315, %v319
    %vm321 = vweird.f32 %v313
    %vm322 = vweird.f32 %v315
    %vm323 = vmor %vm321, %vm322
    %v324 = vsel %vm323, %v315, %v320
    %v325 = vrsqrt.pop %v314
    %v326 = vmul.f32 %v325, %v314
    %v327 = vmul.f32 %v326, %v325
    %v328 = vmul.f32 0.5, %v327
    %v329 = vsub.f32 1.5, %v328
    %v330 = vmul.f32 %v325, %v329
    %vm331 = vweird.f32 %v314
    %vm332 = vweird.f32 %v325
    %vm333 = vmor %vm331, %vm332
    %v334 = vsel %vm333, %v325, %v330
    %v335 = vmul.f32 %v301, %v324
    %v336 = vmul.f32 %v302, %v334
    %v337 = vadd.f32 %v182, 1.0
    %v338 = vperm.slane %v337, 0
    %v339 = vmul.f32 %v335, %v338
    %v340 = vmul.f32 %v336, %v338
    %v341 = vperm.slane %v182, 0
    %343 = vrot.lane.b32.xlu0 %v341, 96
    %v344 = vpop.permute.xlu0 %343
    %v346 = vadd.f32 %v339, %v344
    %v347 = vadd.f32 %v340, %v344
    %v348 = vld [vmem:[%s6] sm:$0xff]
    %v349 = vld [vmem:[%s6 + $0x8] sm:$0xff]
    %v350 = vld [vmem:[%s6 + $0x10] sm:$0xff]
    %v351 = vld [vmem:[%s6 + $0x18] sm:$0xff]
    %v352 = vld [vmem:[%s7] sm:$0x1]
    %v354 = vperm.slane %v352, 0
    %v357 = vsel %vm160, %v346, 0
    %v360 = vsel %vm160, %v347, 0
    %362 = vmatpush.msra.mxu0 0.0
    %363 = vmatpush.msra.mxu0 0.0
    %364 = vmatpush.msra.mxu0 0.0
    %365 = vmatpush.msra.mxu0 0.0
    %366 = vmatpush.msra.mxu0 0.0
    %367 = vmatpush.msra.mxu0 0.0
    %368 = vmatpush.msra.mxu0 0.0
    %369 = vmatpush.msra.mxu0 0.0
    %370 = vmatpush.msra.mxu0 0.0
    %371 = vmatpush.msra.mxu0 0.0
    %372 = vmatpush.msra.mxu0 0.0
    %373 = vmatpush.msra.mxu0 0.0
    %374 = vmatpush.msra.mxu0 %v351
    %375 = vmatpush.msra.mxu0 %v350
    %376 = vmatpush.msra.mxu0 %v349
    %377 = vmatpush.msra.mxu0 %v348
    %378 = vmatmul.f32.gmra.mxu0 %v357
    %v379 = vpop.f32.mrf.mxu0
    %v380 = vadd.f32 %v354, %v379
    %381 = vmatmul.f32.gmra.mxu0 %v360
    %v382 = vpop.f32.mrf.mxu0
    %v383 = vadd.f32 %v354, %v382
    %384 = vdwg.mxu0
    %vm385 = vcmask 785408
    %386 = vst.msk [vmem:[#allocation2] sm:$0xff] %vm385, %v380
    %387 = vst.msk [vmem:[#allocation2 + $0x8] sm:$0xff] %vm385, %v383
    %s388 = scalar_lea.vmem [#allocation4], 16
    %v389 = vld [vmem:[%s388] sm:$0xff]
    %v390 = vld [vmem:[%s388 + $0x8] sm:$0xff]
    %v391 = vsel %vm160, %v389, 0.0
    %392 = vadd.xlane.f32.xlu0 %v391
    %v393 = vpop.xlane.xlu0 %392
    %v394 = vsel %vm160, %v390, 0.0
    %395 = vadd.xlane.f32.xlu0 %v394
    %v396 = vpop.xlane.xlu0 %395
    %v397 = vmul.f32 %v393, %v298
    %v398 = vmul.f32 %v396, %v298
    %v399 = vsub.f32 %v389, %v397
    %v400 = vsub.f32 %v390, %v398
    %v401 = vmul.f32 %v399, %v399
    %v402 = vmul.f32 %v400, %v400
    %v403 = vsel %vm160, %v401, 0.0
    %404 = vadd.xlane.f32.xlu0 %v403
    %v405 = vpop.xlane.xlu0 %404
    %v406 = vsel %vm160, %v402, 0.0
    %407 = vadd.xlane.f32.xlu0 %v406
    %v408 = vpop.xlane.xlu0 %407
    %v409 = vmul.f32 %v405, %v298
    %v410 = vmul.f32 %v408, %v298
    %v411 = vadd.f32 %v409, 1e-06
    %v412 = vadd.f32 %v410, 1e-06
    %v413 = vrsqrt.pop %v411
    %v414 = vmul.f32 %v413, %v411
    %v415 = vmul.f32 %v414, %v413
    %v416 = vmul.f32 0.5, %v415
    %v417 = vsub.f32 1.5, %v416
    %v418 = vmul.f32 %v413, %v417
    %vm419 = vweird.f32 %v411
    %vm420 = vweird.f32 %v413
    %vm421 = vmor %vm419, %vm420
    %v422 = vsel %vm421, %v413, %v418
    %v423 = vrsqrt.pop %v412
    %v424 = vmul.f32 %v423, %v412
    %v425 = vmul.f32 %v424, %v423
    %v426 = vmul.f32 0.5, %v425
    %v427 = vsub.f32 1.5, %v426
    %v428 = vmul.f32 %v423, %v427
    %vm429 = vweird.f32 %v412
    %vm430 = vweird.f32 %v423
    %vm431 = vmor %vm429, %vm430
    %v432 = vsel %vm431, %v423, %v428
    %v433 = vmul.f32 %v399, %v422
    %v434 = vmul.f32 %v400, %v432
    %v435 = vperm.slane %v337, 1
    %v436 = vmul.f32 %v433, %v435
    %v437 = vmul.f32 %v434, %v435
    %v438 = vperm.slane %v182, 1
    %440 = vrot.lane.b32.xlu0 %v438, 96
    %v441 = vpop.permute.xlu0 %440
    %v443 = vadd.f32 %v436, %v441
    %v444 = vadd.f32 %v437, %v441
    %v445 = vld [vmem:[%s6] sm:$0xff]
    %v446 = vld [vmem:[%s6 + $0x8] sm:$0xff]
    %v447 = vld [vmem:[%s6 + $0x10] sm:$0xff]
    %v448 = vld [vmem:[%s6 + $0x18] sm:$0xff]
    %v449 = vld [vmem:[%s7] sm:$0x1]
    %v451 = vperm.slane %v449, 0
    %v454 = vsel %vm160, %v443, 0
    %v457 = vsel %vm160, %v444, 0
    %459 = vmatpush.msra.mxu0 0.0
    %460 = vmatpush.msra.mxu0 0.0
    %461 = vmatpush.msra.mxu0 0.0
    %462 = vmatpush.msra.mxu0 0.0
    %463 = vmatpush.msra.mxu0 0.0
    %464 = vmatpush.msra.mxu0 0.0
    %465 = vmatpush.msra.mxu0 0.0
    %466 = vmatpush.msra.mxu0 0.0
    %467 = vmatpush.msra.mxu0 0.0
    %468 = vmatpush.msra.mxu0 0.0
    %469 = vmatpush.msra.mxu0 0.0
    %470 = vmatpush.msra.mxu0 0.0
    %471 = vmatpush.msra.mxu0 %v448
    %472 = vmatpush.msra.mxu0 %v447
    %473 = vmatpush.msra.mxu0 %v446
    %474 = vmatpush.msra.mxu0 %v445
    %475 = vmatmul.f32.gmra.mxu0 %v454
    %v476 = vpop.f32.mrf.mxu0
    %v477 = vadd.f32 %v451, %v476
    %478 = vmatmul.f32.gmra.mxu0 %v457
    %v479 = vpop.f32.mrf.mxu0
    %v480 = vadd.f32 %v451, %v479
    %481 = vdwg.mxu0
    %s482 = scalar_lea.vmem [#allocation2], 24
    %483 = vst.msk [vmem:[%s482] sm:$0xff] %vm385, %v477
    %484 = vst.msk [vmem:[%s482 + $0x8] sm:$0xff] %vm385, %v480
    %v485 = vld [vmem:[#allocation7] sm:$0xff]
    %v486 = vsel %vm160, %v485, 0.0
    %487 = vadd.xlane.f32.xlu0 %v486
    %v488 = vpop.xlane.xlu0 %487
    %v489 = vmul.f32 %v488, %v298
    %v490 = vsub.f32 %v485, %v489
    %v491 = vmul.f32 %v490, %v490
    %v492 = vsel %vm160, %v491, 0.0
    %493 = vadd.xlane.f32.xlu0 %v492
    %v494 = vpop.xlane.xlu0 %493
    %v495 = vmul.f32 %v494, %v298
    %v496 = vadd.f32 %v495, 1e-06
    %v497 = vrsqrt.pop %v496
    %v498 = vmul.f32 %v497, %v496
    %v499 = vmul.f32 %v498, %v497
    %v500 = vmul.f32 0.5, %v499
    %v501 = vsub.f32 1.5, %v500
    %v502 = vmul.f32 %v497, %v501
    %vm503 = vweird.f32 %v496
    %vm504 = vweird.f32 %v497
    %vm505 = vmor %vm503, %vm504
    %v506 = vsel %vm505, %v497, %v502
    %v507 = vmul.f32 %v490, %v506
    %v508 = vadd.f32 %v262, 1.0
    %v509 = vperm.slane %v508, 0
    %v510 = vmul.f32 %v507, %v509
    %v511 = vperm.slane %v262, 0
    %513 = vrot.lane.b32.xlu0 %v511, 96
    %v514 = vpop.permute.xlu0 %513
    %v516 = vadd.f32 %v510, %v514
    %s517 = scalar_lea.vmem %s6, 32
    %v518 = vld [vmem:[%s517] sm:$0xff]
    %v519 = vld [vmem:[%s517 + $0x8] sm:$0xff]
    %v520 = vld [vmem:[%s517 + $0x10] sm:$0xff]
    %v521 = vld [vmem:[%s517 + $0x18] sm:$0xff]
    %s522 = scalar_lea.vmem %s7, 1
    %v523 = vld [vmem:[%s522] sm:$0x1]
    %v525 = vperm.slane %v523, 0
    %v528 = vsel %vm160, %v516, 0
    %530 = vmatpush.msra.mxu0 0.0
    %531 = vmatpush.msra.mxu0 0.0
    %532 = vmatpush.msra.mxu0 0.0
    %533 = vmatpush.msra.mxu0 0.0
    %534 = vmatpush.msra.mxu0 0.0
    %535 = vmatpush.msra.mxu0 0.0
    %536 = vmatpush.msra.mxu0 0.0
    %537 = vmatpush.msra.mxu0 0.0
    %538 = vmatpush.msra.mxu0 0.0
    %539 = vmatpush.msra.mxu0 0.0
    %540 = vmatpush.msra.mxu0 0.0
    %541 = vmatpush.msra.mxu0 0.0
    %542 = vmatpush.msra.mxu0 %v521
    %543 = vmatpush.msra.mxu0 %v520
    %544 = vmatpush.msra.mxu0 %v519
    %545 = vmatpush.msra.mxu0 %v518
    %546 = vmatmul.f32.gmra.mxu0 %v528
    %v547 = vpop.f32.mrf.mxu0
    %v548 = vadd.f32 %v525, %v547
    %549 = vdwg.mxu0
    %550 = vst.msk [vmem:[#allocation2 + $0x10] sm:$0xff] %vm385, %v548
    %s551 = scalar_lea.vmem [#allocation7], 8
    %v552 = vld [vmem:[%s551] sm:$0xff]
    %v553 = vsel %vm160, %v552, 0.0
    %554 = vadd.xlane.f32.xlu0 %v553
    %v555 = vpop.xlane.xlu0 %554
    %v556 = vmul.f32 %v555, %v298
    %v557 = vsub.f32 %v552, %v556
    %v558 = vmul.f32 %v557, %v557
    %v559 = vsel %vm160, %v558, 0.0
    %560 = vadd.xlane.f32.xlu0 %v559
    %v561 = vpop.xlane.xlu0 %560
    %v562 = vmul.f32 %v561, %v298
    %v563 = vadd.f32 %v562, 1e-06
    %v564 = vrsqrt.pop %v563
    %v565 = vmul.f32 %v564, %v563
    %v566 = vmul.f32 %v565, %v564
    %v567 = vmul.f32 0.5, %v566
    %v568 = vsub.f32 1.5, %v567
    %v569 = vmul.f32 %v564, %v568
    %vm570 = vweird.f32 %v563
    %vm571 = vweird.f32 %v564
    %vm572 = vmor %vm570, %vm571
    %v573 = vsel %vm572, %v564, %v569
    %v574 = vmul.f32 %v557, %v573
    %v575 = vperm.slane %v508, 1
    %v576 = vmul.f32 %v574, %v575
    %v577 = vperm.slane %v262, 1
    %579 = vrot.lane.b32.xlu0 %v577, 96
    %v580 = vpop.permute.xlu0 %579
    %v582 = vadd.f32 %v576, %v580
    %v583 = vld [vmem:[%s517] sm:$0xff]
    %v584 = vld [vmem:[%s517 + $0x8] sm:$0xff]
    %v585 = vld [vmem:[%s517 + $0x10] sm:$0xff]
    %v586 = vld [vmem:[%s517 + $0x18] sm:$0xff]
    %v587 = vld [vmem:[%s522] sm:$0x1]
    %v589 = vperm.slane %v587, 0
    %v592 = vsel %vm160, %v582, 0
    %594 = vmatpush.msra.mxu0 0.0
    %595 = vmatpush.msra.mxu0 0.0
    %596 = vmatpush.msra.mxu0 0.0
    %597 = vmatpush.msra.mxu0 0.0
    %598 = vmatpush.msra.mxu0 0.0
    %599 = vmatpush.msra.mxu0 0.0
    %600 = vmatpush.msra.mxu0 0.0
    %601 = vmatpush.msra.mxu0 0.0
    %602 = vmatpush.msra.mxu0 0.0
    %603 = vmatpush.msra.mxu0 0.0
    %604 = vmatpush.msra.mxu0 0.0
    %605 = vmatpush.msra.mxu0 0.0
    %606 = vmatpush.msra.mxu0 %v586
    %607 = vmatpush.msra.mxu0 %v585
    %608 = vmatpush.msra.mxu0 %v584
    %609 = vmatpush.msra.mxu0 %v583
    %610 = vmatmul.f32.gmra.mxu0 %v592
    %v611 = vpop.f32.mrf.mxu0
    %v612 = vadd.f32 %v589, %v611
    %613 = vdwg.mxu0
    %614 = vst.msk [vmem:[%s482 + $0x10] sm:$0xff] %vm385, %v612
    %v615 = vld [vmem:[#allocation2] sm:$0xff]
    %v616 = vld [vmem:[#allocation2 + $0x8] sm:$0xff]
    %v617 = vld [vmem:[#allocation2 + $0x10] sm:$0xff]
    %621 = vrot.lane.b32.xlu0 %v615, 96
    %v622 = vpop.permute.xlu0 %621
    %623 = vrot.lane.b32.xlu0 %v616, 96
    %v624 = vpop.permute.xlu0 %623
    %625 = vrot.lane.b32.xlu0 %v617, 96
    %v626 = vpop.permute.xlu0 %625
    %vm627 = vcmask 64512
    %v628 = vsel %vm627, %v615, 0
    %v630 = vsel %vm627, %v616, 0
    %v632 = vsel %vm627, %v617, 0
    %v634 = vsel %vm627, %v622, 0
    %v636 = vsel %vm627, %v624, 0
    %v638 = vsel %vm627, %v626, 0
    %640 = vmatpush.xpose.msra.mxu0 0.0
    %641 = vmatpush.xpose.msra.mxu0 0.0
    %642 = vmatpush.xpose.msra.mxu0 0.0
    %643 = vmatpush.xpose.msra.mxu0 0.0
    %644 = vmatpush.xpose.msra.mxu0 0.0
    %645 = vmatpush.xpose.msra.mxu0 0.0
    %646 = vmatpush.xpose.msra.mxu0 0.0
    %647 = vmatpush.xpose.msra.mxu0 0.0
    %648 = vmatpush.xpose.msra.mxu0 0.0
    %649 = vmatpush.xpose.msra.mxu0 0.0
    %650 = vmatpush.xpose.msra.mxu0 0.0
    %651 = vmatpush.xpose.msra.mxu0 0.0
    %652 = vmatpush.xpose.msra.mxu0 0.0
    %653 = vmatpush.xpose.msra.mxu0 %v638
    %654 = vmatpush.xpose.msra.mxu0 %v636
    %655 = vmatpush.xpose.msra.mxu0 %v634
    %656 = vmatmul.f32.gmra.mxu0 %v628
    %v657 = vpop.f32.mrf.mxu0
    %v658 = vadd.f32 0.0, %v657
    %659 = vmatmul.f32.gmra.mxu0 %v630
    %v660 = vpop.f32.mrf.mxu0
    %v661 = vadd.f32 0.0, %v660
    %662 = vmatmul.f32.gmra.mxu0 %v632
    %v663 = vpop.f32.mrf.mxu0
    %v664 = vadd.f32 0.0, %v663
    %665 = vdwg.mxu0
    %v666 = vmul.f32 %v658, 0.35355338
    %v667 = vmul.f32 %v661, 0.35355338
    %v668 = vmul.f32 %v664, 0.35355338
    %vm669 = vcmask 195584
    %v670 = vsel %vm669, %v666, -inf
    %671 = vmax.xlane.f32.xlu0 %v670
    %v672 = vpop.xlane.xlu0 %671
    %v673 = vsel %vm669, %v667, -inf
    %674 = vmax.xlane.f32.xlu0 %v673
    %v675 = vpop.xlane.xlu0 %674
    %v676 = vsel %vm669, %v668, -inf
    %677 = vmax.xlane.f32.xlu0 %v676
    %v678 = vpop.xlane.xlu0 %677
    %v679 = vsub.f32 %v666, %v672
    %v680 = vsub.f32 %v667, %v675
    %v681 = vsub.f32 %v668, %v678
    %v682 = vmul.f32 %v679, 1.442695
    %v683 = vpow.pop %v682
    %v684 = vmul.f32 %v680, 1.442695
    %v685 = vpow.pop %v684
    %v686 = vmul.f32 %v681, 1.442695
    %v687 = vpow.pop %v686
    %v688 = vsel %vm669, %v683, 0.0
    %689 = vadd.xlane.f32.xlu0 %v688
    %v690 = vpop.xlane.xlu0 %689
    %v691 = vsel %vm669, %v685, 0.0
    %692 = vadd.xlane.f32.xlu0 %v691
    %v693 = vpop.xlane.xlu0 %692
    %v694 = vsel %vm669, %v687, 0.0
    %695 = vadd.xlane.f32.xlu0 %v694
    %v696 = vpop.xlane.xlu0 %695
    %v697 = vrcp.pop %v690
    %v698 = vrcp.pop %v693
    %v699 = vrcp.pop %v696
    %v700 = vmul.f32 %v683, %v697
    %v701 = vmul.f32 %v685, %v698
    %v702 = vmul.f32 %v687, %v699
    %703 = vrot.lane.b32.xlu0 %v615, 64
    %v704 = vpop.permute.xlu0 %703
    %705 = vrot.lane.b32.xlu0 %v616, 64
    %v706 = vpop.permute.xlu0 %705
    %707 = vrot.lane.b32.xlu0 %v617, 64
    %v708 = vpop.permute.xlu0 %707
    %v713 = vsel %vm669, %v700, 0
    %v716 = vsel %vm669, %v701, 0
    %v719 = vsel %vm669, %v702, 0
    %721 = vmatpush.msra.mxu0 0.0
    %722 = vmatpush.msra.mxu0 0.0
    %723 = vmatpush.msra.mxu0 0.0
    %724 = vmatpush.msra.mxu0 0.0
    %725 = vmatpush.msra.mxu0 0.0
    %726 = vmatpush.msra.mxu0 0.0
    %727 = vmatpush.msra.mxu0 0.0
    %728 = vmatpush.msra.mxu0 0.0
    %729 = vmatpush.msra.mxu0 0.0
    %730 = vmatpush.msra.mxu0 0.0
    %731 = vmatpush.msra.mxu0 0.0
    %732 = vmatpush.msra.mxu0 0.0
    %733 = vmatpush.msra.mxu0 0.0
    %734 = vmatpush.msra.mxu0 %v708
    %735 = vmatpush.msra.mxu0 %v706
    %736 = vmatpush.msra.mxu0 %v704
    %737 = vmatmul.f32.gmra.mxu0 %v713
    %v738 = vpop.f32.mrf.mxu0
    %v739 = vadd.f32 0.0, %v738
    %740 = vmatmul.f32.gmra.mxu0 %v716
    %v741 = vpop.f32.mrf.mxu0
    %v742 = vadd.f32 0.0, %v741
    %743 = vmatmul.f32.gmra.mxu0 %v719
    %v744 = vpop.f32.mrf.mxu0
    %v745 = vadd.f32 0.0, %v744
    %746 = vdwg.mxu0
    %747 = vst.msk [vmem:[#allocation3] sm:$0xff] %vm627, %v739
    %748 = vst.msk [vmem:[#allocation3 + $0x8] sm:$0xff] %vm627, %v742
    %749 = vst.msk [vmem:[#allocation3 + $0x10] sm:$0xff] %vm627, %v745
    %750 = vrot.lane.b32.xlu0 %v615, 120
    %v751 = vpop.permute.xlu0 %750
    %752 = vrot.lane.b32.xlu0 %v616, 120
    %v753 = vpop.permute.xlu0 %752
    %754 = vrot.lane.b32.xlu0 %v617, 120
    %v755 = vpop.permute.xlu0 %754
    %756 = vrot.lane.b32.xlu0 %v615, 88
    %v757 = vpop.permute.xlu0 %756
    %758 = vrot.lane.b32.xlu0 %v616, 88
    %v759 = vpop.permute.xlu0 %758
    %760 = vrot.lane.b32.xlu0 %v617, 88
    %v761 = vpop.permute.xlu0 %760
    %v762 = vsel %vm627, %v751, 0
    %v764 = vsel %vm627, %v753, 0
    %v766 = vsel %vm627, %v755, 0
    %v768 = vsel %vm627, %v757, 0
    %v770 = vsel %vm627, %v759, 0
    %v772 = vsel %vm627, %v761, 0
    %774 = vmatpush.xpose.msra.mxu0 0.0
    %775 = vmatpush.xpose.msra.mxu0 0.0
    %776 = vmatpush.xpose.msra.mxu0 0.0
    %777 = vmatpush.xpose.msra.mxu0 0.0
    %778 = vmatpush.xpose.msra.mxu0 0.0
    %779 = vmatpush.xpose.msra.mxu0 0.0
    %780 = vmatpush.xpose.msra.mxu0 0.0
    %781 = vmatpush.xpose.msra.mxu0 0.0
    %782 = vmatpush.xpose.msra.mxu0 0.0
    %783 = vmatpush.xpose.msra.mxu0 0.0
    %784 = vmatpush.xpose.msra.mxu0 0.0
    %785 = vmatpush.xpose.msra.mxu0 0.0
    %786 = vmatpush.xpose.msra.mxu0 0.0
    %787 = vmatpush.xpose.msra.mxu0 %v772
    %788 = vmatpush.xpose.msra.mxu0 %v770
    %789 = vmatpush.xpose.msra.mxu0 %v768
    %790 = vmatmul.f32.gmra.mxu0 %v762
    %v791 = vpop.f32.mrf.mxu0
    %v792 = vadd.f32 0.0, %v791
    %793 = vmatmul.f32.gmra.mxu0 %v764
    %v794 = vpop.f32.mrf.mxu0
    %v795 = vadd.f32 0.0, %v794
    %796 = vmatmul.f32.gmra.mxu0 %v766
    %v797 = vpop.f32.mrf.mxu0
    %v798 = vadd.f32 0.0, %v797
    %799 = vdwg.mxu0
    %v800 = vmul.f32 %v792, 0.35355338
    %v801 = vmul.f32 %v795, 0.35355338
    %v802 = vmul.f32 %v798, 0.35355338
    %v803 = vsel %vm669, %v800, -inf
    %804 = vmax.xlane.f32.xlu0 %v803
    %v805 = vpop.xlane.xlu0 %804
    %v806 = vsel %vm669, %v801, -inf
    %807 = vmax.xlane.f32.xlu0 %v806
    %v808 = vpop.xlane.xlu0 %807
    %v809 = vsel %vm669, %v802, -inf
    %810 = vmax.xlane.f32.xlu0 %v809
    %v811 = vpop.xlane.xlu0 %810
    %v812 = vsub.f32 %v800, %v805
    %v813 = vsub.f32 %v801, %v808
    %v814 = vsub.f32 %v802, %v811
    %v815 = vmul.f32 %v812, 1.442695
    %v816 = vpow.pop %v815
    %v817 = vmul.f32 %v813, 1.442695
    %v818 = vpow.pop %v817
    %v819 = vmul.f32 %v814, 1.442695
    %v820 = vpow.pop %v819
    %v821 = vsel %vm669, %v816, 0.0
    %822 = vadd.xlane.f32.xlu0 %v821
    %v823 = vpop.xlane.xlu0 %822
    %v824 = vsel %vm669, %v818, 0.0
    %825 = vadd.xlane.f32.xlu0 %v824
    %v826 = vpop.xlane.xlu0 %825
    %v827 = vsel %vm669, %v820, 0.0
    %828 = vadd.xlane.f32.xlu0 %v827
    %v829 = vpop.xlane.xlu0 %828
    %v830 = vrcp.pop %v823
    %v831 = vrcp.pop %v826
    %v832 = vrcp.pop %v829
    %v833 = vmul.f32 %v816, %v830
    %v834 = vmul.f32 %v818, %v831
    %v835 = vmul.f32 %v820, %v832
    %836 = vrot.lane.b32.xlu0 %v615, 56
    %v837 = vpop.permute.xlu0 %836
    %838 = vrot.lane.b32.xlu0 %v616, 56
    %v839 = vpop.permute.xlu0 %838
    %840 = vrot.lane.b32.xlu0 %v617, 56
    %v841 = vpop.permute.xlu0 %840
    %v846 = vsel %vm669, %v833, 0
    %v849 = vsel %vm669, %v834, 0
    %v852 = vsel %vm669, %v835, 0
    %854 = vmatpush.msra.mxu0 0.0
    %855 = vmatpush.msra.mxu0 0.0
    %856 = vmatpush.msra.mxu0 0.0
    %857 = vmatpush.msra.mxu0 0.0
    %858 = vmatpush.msra.mxu0 0.0
    %859 = vmatpush.msra.mxu0 0.0
    %860 = vmatpush.msra.mxu0 0.0
    %861 = vmatpush.msra.mxu0 0.0
    %862 = vmatpush.msra.mxu0 0.0
    %863 = vmatpush.msra.mxu0 0.0
    %864 = vmatpush.msra.mxu0 0.0
    %865 = vmatpush.msra.mxu0 0.0
    %866 = vmatpush.msra.mxu0 0.0
    %867 = vmatpush.msra.mxu0 %v841
    %868 = vmatpush.msra.mxu0 %v839
    %869 = vmatpush.msra.mxu0 %v837
    %870 = vmatmul.f32.gmra.mxu0 %v846
    %v871 = vpop.f32.mrf.mxu0
    %v872 = vadd.f32 0.0, %v871
    %873 = vmatmul.f32.gmra.mxu0 %v849
    %v874 = vpop.f32.mrf.mxu0
    %v875 = vadd.f32 0.0, %v874
    %876 = vmatmul.f32.gmra.mxu0 %v852
    %v877 = vpop.f32.mrf.mxu0
    %v878 = vadd.f32 0.0, %v877
    %879 = vdwg.mxu0
    %883 = vrot.lane.b32.xlu0 %v872, 8
    %v884 = vpop.permute.xlu0 %883
    %885 = vrot.lane.b32.xlu0 %v875, 8
    %v886 = vpop.permute.xlu0 %885
    %887 = vrot.lane.b32.xlu0 %v878, 8
    %v888 = vpop.permute.xlu0 %887
    %vm892 = vcmask 130112
    %893 = vst.msk [vmem:[#allocation3] sm:$0xff] %vm892, %v884
    %894 = vst.msk [vmem:[#allocation3 + $0x8] sm:$0xff] %vm892, %v886
    %895 = vst.msk [vmem:[#allocation3 + $0x10] sm:$0xff] %vm892, %v888
    %896 = vrot.lane.b32.xlu0 %v615, 112
    %v897 = vpop.permute.xlu0 %896
    %898 = vrot.lane.b32.xlu0 %v616, 112
    %v899 = vpop.permute.xlu0 %898
    %900 = vrot.lane.b32.xlu0 %v617, 112
    %v901 = vpop.permute.xlu0 %900
    %902 = vrot.lane.b32.xlu0 %v615, 80
    %v903 = vpop.permute.xlu0 %902
    %904 = vrot.lane.b32.xlu0 %v616, 80
    %v905 = vpop.permute.xlu0 %904
    %906 = vrot.lane.b32.xlu0 %v617, 80
    %v907 = vpop.permute.xlu0 %906
    %v908 = vsel %vm627, %v897, 0
    %v910 = vsel %vm627, %v899, 0
    %v912 = vsel %vm627, %v901, 0
    %v914 = vsel %vm627, %v903, 0
    %v916 = vsel %vm627, %v905, 0
    %v918 = vsel %vm627, %v907, 0
    %920 = vmatpush.xpose.msra.mxu0 0.0
    %921 = vmatpush.xpose.msra.mxu0 0.0
    %922 = vmatpush.xpose.msra.mxu0 0.0
    %923 = vmatpush.xpose.msra.mxu0 0.0
    %924 = vmatpush.xpose.msra.mxu0 0.0
    %925 = vmatpush.xpose.msra.mxu0 0.0
    %926 = vmatpush.xpose.msra.mxu0 0.0
    %927 = vmatpush.xpose.msra.mxu0 0.0
    %928 = vmatpush.xpose.msra.mxu0 0.0
    %929 = vmatpush.xpose.msra.mxu0 0.0
    %930 = vmatpush.xpose.msra.mxu0 0.0
    %931 = vmatpush.xpose.msra.mxu0 0.0
    %932 = vmatpush.xpose.msra.mxu0 0.0
    %933 = vmatpush.xpose.msra.mxu0 %v918
    %934 = vmatpush.xpose.msra.mxu0 %v916
    %935 = vmatpush.xpose.msra.mxu0 %v914
    %936 = vmatmul.f32.gmra.mxu0 %v908
    %v937 = vpop.f32.mrf.mxu0
    %v938 = vadd.f32 0.0, %v937
    %939 = vmatmul.f32.gmra.mxu0 %v910
    %v940 = vpop.f32.mrf.mxu0
    %v941 = vadd.f32 0.0, %v940
    %942 = vmatmul.f32.gmra.mxu0 %v912
    %v943 = vpop.f32.mrf.mxu0
    %v944 = vadd.f32 0.0, %v943
    %945 = vdwg.mxu0
    %v946 = vmul.f32 %v938, 0.35355338
    %v947 = vmul.f32 %v941, 0.35355338
    %v948 = vmul.f32 %v944, 0.35355338
    %v949 = vsel %vm669, %v946, -inf
    %950 = vmax.xlane.f32.xlu0 %v949
    %v951 = vpop.xlane.xlu0 %950
    %v952 = vsel %vm669, %v947, -inf
    %953 = vmax.xlane.f32.xlu0 %v952
    %v954 = vpop.xlane.xlu0 %953
    %v955 = vsel %vm669, %v948, -inf
    %956 = vmax.xlane.f32.xlu0 %v955
    %v957 = vpop.xlane.xlu0 %956
    %v958 = vsub.f32 %v946, %v951
    %v959 = vsub.f32 %v947, %v954
    %v960 = vsub.f32 %v948, %v957
    %v961 = vmul.f32 %v958, 1.442695
    %v962 = vpow.pop %v961
    %v963 = vmul.f32 %v959, 1.442695
    %v964 = vpow.pop %v963
    %v965 = vmul.f32 %v960, 1.442695
    %v966 = vpow.pop %v965
    %v967 = vsel %vm669, %v962, 0.0
    %968 = vadd.xlane.f32.xlu0 %v967
    %v969 = vpop.xlane.xlu0 %968
    %v970 = vsel %vm669, %v964, 0.0
    %971 = vadd.xlane.f32.xlu0 %v970
    %v972 = vpop.xlane.xlu0 %971
    %v973 = vsel %vm669, %v966, 0.0
    %974 = vadd.xlane.f32.xlu0 %v973
    %v975 = vpop.xlane.xlu0 %974
    %v976 = vrcp.pop %v969
    %v977 = vrcp.pop %v972
    %v978 = vrcp.pop %v975
    %v979 = vmul.f32 %v962, %v976
    %v980 = vmul.f32 %v964, %v977
    %v981 = vmul.f32 %v966, %v978
    %982 = vrot.lane.b32.xlu0 %v615, 48
    %v983 = vpop.permute.xlu0 %982
    %984 = vrot.lane.b32.xlu0 %v616, 48
    %v985 = vpop.permute.xlu0 %984
    %986 = vrot.lane.b32.xlu0 %v617, 48
    %v987 = vpop.permute.xlu0 %986
    %v992 = vsel %vm669, %v979, 0
    %v995 = vsel %vm669, %v980, 0
    %v998 = vsel %vm669, %v981, 0
    %1000 = vmatpush.msra.mxu0 0.0
    %1001 = vmatpush.msra.mxu0 0.0
    %1002 = vmatpush.msra.mxu0 0.0
    %1003 = vmatpush.msra.mxu0 0.0
    %1004 = vmatpush.msra.mxu0 0.0
    %1005 = vmatpush.msra.mxu0 0.0
    %1006 = vmatpush.msra.mxu0 0.0
    %1007 = vmatpush.msra.mxu0 0.0
    %1008 = vmatpush.msra.mxu0 0.0
    %1009 = vmatpush.msra.mxu0 0.0
    %1010 = vmatpush.msra.mxu0 0.0
    %1011 = vmatpush.msra.mxu0 0.0
    %1012 = vmatpush.msra.mxu0 0.0
    %1013 = vmatpush.msra.mxu0 %v987
    %1014 = vmatpush.msra.mxu0 %v985
    %1015 = vmatpush.msra.mxu0 %v983
    %1016 = vmatmul.f32.gmra.mxu0 %v992
    %v1017 = vpop.f32.mrf.mxu0
    %v1018 = vadd.f32 0.0, %v1017
    %1019 = vmatmul.f32.gmra.mxu0 %v995
    %v1020 = vpop.f32.mrf.mxu0
    %v1021 = vadd.f32 0.0, %v1020
    %1022 = vmatmul.f32.gmra.mxu0 %v998
    %v1023 = vpop.f32.mrf.mxu0
    %v1024 = vadd.f32 0.0, %v1023
    %1025 = vdwg.mxu0
    %1029 = vrot.lane.b32.xlu0 %v1018, 16
    %v1030 = vpop.permute.xlu0 %1029
    %1031 = vrot.lane.b32.xlu0 %v1021, 16
    %v1032 = vpop.permute.xlu0 %1031
    %1033 = vrot.lane.b32.xlu0 %v1024, 16
    %v1034 = vpop.permute.xlu0 %1033
    %vm1038 = vcmask 195712
    %1039 = vst.msk [vmem:[#allocation3] sm:$0xff] %vm1038, %v1030
    %1040 = vst.msk [vmem:[#allocation3 + $0x8] sm:$0xff] %vm1038, %v1032
    %1041 = vst.msk [vmem:[#allocation3 + $0x10] sm:$0xff] %vm1038, %v1034
    %1042 = vrot.lane.b32.xlu0 %v615, 104
    %v1043 = vpop.permute.xlu0 %1042
    %1044 = vrot.lane.b32.xlu0 %v616, 104
    %v1045 = vpop.permute.xlu0 %1044
    %1046 = vrot.lane.b32.xlu0 %v617, 104
    %v1047 = vpop.permute.xlu0 %1046
    %1048 = vrot.lane.b32.xlu0 %v615, 72
    %v1049 = vpop.permute.xlu0 %1048
    %1050 = vrot.lane.b32.xlu0 %v616, 72
    %v1051 = vpop.permute.xlu0 %1050
    %1052 = vrot.lane.b32.xlu0 %v617, 72
    %v1053 = vpop.permute.xlu0 %1052
    %v1054 = vsel %vm627, %v1043, 0
    %v1056 = vsel %vm627, %v1045, 0
    %v1058 = vsel %vm627, %v1047, 0
    %v1060 = vsel %vm627, %v1049, 0
    %v1062 = vsel %vm627, %v1051, 0
    %v1064 = vsel %vm627, %v1053, 0
    %1066 = vmatpush.xpose.msra.mxu0 0.0
    %1067 = vmatpush.xpose.msra.mxu0 0.0
    %1068 = vmatpush.xpose.msra.mxu0 0.0
    %1069 = vmatpush.xpose.msra.mxu0 0.0
    %1070 = vmatpush.xpose.msra.mxu0 0.0
    %1071 = vmatpush.xpose.msra.mxu0 0.0
    %1072 = vmatpush.xpose.msra.mxu0 0.0
    %1073 = vmatpush.xpose.msra.mxu0 0.0
    %1074 = vmatpush.xpose.msra.mxu0 0.0
    %1075 = vmatpush.xpose.msra.mxu0 0.0
    %1076 = vmatpush.xpose.msra.mxu0 0.0
    %1077 = vmatpush.xpose.msra.mxu0 0.0
    %1078 = vmatpush.xpose.msra.mxu0 0.0
    %1079 = vmatpush.xpose.msra.mxu0 %v1064
    %1080 = vmatpush.xpose.msra.mxu0 %v1062
    %1081 = vmatpush.xpose.msra.mxu0 %v1060
    %1082 = vmatmul.f32.gmra.mxu0 %v1054
    %v1083 = vpop.f32.mrf.mxu0
    %v1084 = vadd.f32 0.0, %v1083
    %1085 = vmatmul.f32.gmra.mxu0 %v1056
    %v1086 = vpop.f32.mrf.mxu0
    %v1087 = vadd.f32 0.0, %v1086
    %1088 = vmatmul.f32.gmra.mxu0 %v1058
    %v1089 = vpop.f32.mrf.mxu0
    %v1090 = vadd.f32 0.0, %v1089
    %1091 = vdwg.mxu0
    %v1092 = vmul.f32 %v1084, 0.35355338
    %v1093 = vmul.f32 %v1087, 0.35355338
    %v1094 = vmul.f32 %v1090, 0.35355338
    %v1095 = vsel %vm669, %v1092, -inf
    %1096 = vmax.xlane.f32.xlu0 %v1095
    %v1097 = vpop.xlane.xlu0 %1096
    %v1098 = vsel %vm669, %v1093, -inf
    %1099 = vmax.xlane.f32.xlu0 %v1098
    %v1100 = vpop.xlane.xlu0 %1099
    %v1101 = vsel %vm669, %v1094, -inf
    %1102 = vmax.xlane.f32.xlu0 %v1101
    %v1103 = vpop.xlane.xlu0 %1102
    %v1104 = vsub.f32 %v1092, %v1097
    %v1105 = vsub.f32 %v1093, %v1100
    %v1106 = vsub.f32 %v1094, %v1103
    %v1107 = vmul.f32 %v1104, 1.442695
    %v1108 = vpow.pop %v1107
    %v1109 = vmul.f32 %v1105, 1.442695
    %v1110 = vpow.pop %v1109
    %v1111 = vmul.f32 %v1106, 1.442695
    %v1112 = vpow.pop %v1111
    %v1113 = vsel %vm669, %v1108, 0.0
    %1114 = vadd.xlane.f32.xlu0 %v1113
    %v1115 = vpop.xlane.xlu0 %1114
    %v1116 = vsel %vm669, %v1110, 0.0
    %1117 = vadd.xlane.f32.xlu0 %v1116
    %v1118 = vpop.xlane.xlu0 %1117
    %v1119 = vsel %vm669, %v1112, 0.0
    %1120 = vadd.xlane.f32.xlu0 %v1119
    %v1121 = vpop.xlane.xlu0 %1120
    %v1122 = vrcp.pop %v1115
    %v1123 = vrcp.pop %v1118
    %v1124 = vrcp.pop %v1121
    %v1125 = vmul.f32 %v1108, %v1122
    %v1126 = vmul.f32 %v1110, %v1123
    %v1127 = vmul.f32 %v1112, %v1124
    %1128 = vrot.lane.b32.xlu0 %v615, 40
    %v1129 = vpop.permute.xlu0 %1128
    %1130 = vrot.lane.b32.xlu0 %v616, 40
    %v1131 = vpop.permute.xlu0 %1130
    %1132 = vrot.lane.b32.xlu0 %v617, 40
    %v1133 = vpop.permute.xlu0 %1132
    %v1138 = vsel %vm669, %v1125, 0
    %v1141 = vsel %vm669, %v1126, 0
    %v1144 = vsel %vm669, %v1127, 0
    %1146 = vmatpush.msra.mxu0 0.0
    %1147 = vmatpush.msra.mxu0 0.0
    %1148 = vmatpush.msra.mxu0 0.0
    %1149 = vmatpush.msra.mxu0 0.0
    %1150 = vmatpush.msra.mxu0 0.0
    %1151 = vmatpush.msra.mxu0 0.0
    %1152 = vmatpush.msra.mxu0 0.0
    %1153 = vmatpush.msra.mxu0 0.0
    %1154 = vmatpush.msra.mxu0 0.0
    %1155 = vmatpush.msra.mxu0 0.0
    %1156 = vmatpush.msra.mxu0 0.0
    %1157 = vmatpush.msra.mxu0 0.0
    %1158 = vmatpush.msra.mxu0 0.0
    %1159 = vmatpush.msra.mxu0 %v1133
    %1160 = vmatpush.msra.mxu0 %v1131
    %1161 = vmatpush.msra.mxu0 %v1129
    %1162 = vmatmul.f32.gmra.mxu0 %v1138
    %v1163 = vpop.f32.mrf.mxu0
    %v1164 = vadd.f32 0.0, %v1163
    %1165 = vmatmul.f32.gmra.mxu0 %v1141
    %v1166 = vpop.f32.mrf.mxu0
    %v1167 = vadd.f32 0.0, %v1166
    %1168 = vmatmul.f32.gmra.mxu0 %v1144
    %v1169 = vpop.f32.mrf.mxu0
    %v1170 = vadd.f32 0.0, %v1169
    %1171 = vdwg.mxu0
    %1175 = vrot.lane.b32.xlu0 %v1164, 24
    %v1176 = vpop.permute.xlu0 %1175
    %1177 = vrot.lane.b32.xlu0 %v1167, 24
    %v1178 = vpop.permute.xlu0 %1177
    %1179 = vrot.lane.b32.xlu0 %v1170, 24
    %v1180 = vpop.permute.xlu0 %1179
    %vm1184 = vcmask 261312
    %1185 = vst.msk [vmem:[#allocation3] sm:$0xff] %vm1184, %v1176
    %1186 = vst.msk [vmem:[#allocation3 + $0x8] sm:$0xff] %vm1184, %v1178
    %1187 = vst.msk [vmem:[#allocation3 + $0x10] sm:$0xff] %vm1184, %v1180
    %v1188 = vld [vmem:[%s482] sm:$0xff]
    %v1189 = vld [vmem:[%s482 + $0x8] sm:$0xff]
    %v1190 = vld [vmem:[%s482 + $0x10] sm:$0xff]
    %1194 = vrot.lane.b32.xlu0 %v1188, 96
    %v1195 = vpop.permute.xlu0 %1194
    %1196 = vrot.lane.b32.xlu0 %v1189, 96
    %v1197 = vpop.permute.xlu0 %1196
    %1198 = vrot.lane.b32.xlu0 %v1190, 96
    %v1199 = vpop.permute.xlu0 %1198
    %v1200 = vsel %vm627, %v1188, 0
    %v1202 = vsel %vm627, %v1189, 0
    %v1204 = vsel %vm627, %v1190, 0
    %v1206 = vsel %vm627, %v1195, 0
    %v1208 = vsel %vm627, %v1197, 0
    %v1210 = vsel %vm627, %v1199, 0
    %1212 = vmatpush.xpose.msra.mxu0 0.0
    %1213 = vmatpush.xpose.msra.mxu0 0.0
    %1214 = vmatpush.xpose.msra.mxu0 0.0
    %1215 = vmatpush.xpose.msra.mxu0 0.0
    %1216 = vmatpush.xpose.msra.mxu0 0.0
    %1217 = vmatpush.xpose.msra.mxu0 0.0
    %1218 = vmatpush.xpose.msra.mxu0 0.0
    %1219 = vmatpush.xpose.msra.mxu0 0.0
    %1220 = vmatpush.xpose.msra.mxu0 0.0
    %1221 = vmatpush.xpose.msra.mxu0 0.0
    %1222 = vmatpush.xpose.msra.mxu0 0.0
    %1223 = vmatpush.xpose.msra.mxu0 0.0
    %1224 = vmatpush.xpose.msra.mxu0 0.0
    %1225 = vmatpush.xpose.msra.mxu0 %v1210
    %1226 = vmatpush.xpose.msra.mxu0 %v1208
    %1227 = vmatpush.xpose.msra.mxu0 %v1206
    %1228 = vmatmul.f32.gmra.mxu0 %v1200
    %v1229 = vpop.f32.mrf.mxu0
    %v1230 = vadd.f32 0.0, %v1229
    %1231 = vmatmul.f32.gmra.mxu0 %v1202
    %v1232 = vpop.f32.mrf.mxu0
    %v1233 = vadd.f32 0.0, %v1232
    %1234 = vmatmul.f32.gmra.mxu0 %v1204
    %v1235 = vpop.f32.mrf.mxu0
    %v1236 = vadd.f32 0.0, %v1235
    %1237 = vdwg.mxu0
    %v1238 = vmul.f32 %v1230, 0.35355338
    %v1239 = vmul.f32 %v1233, 0.35355338
    %v1240 = vmul.f32 %v1236, 0.35355338
    %v1241 = vsel %vm669, %v1238, -inf
    %1242 = vmax.xlane.f32.xlu0 %v1241
    %v1243 = vpop.xlane.xlu0 %1242
    %v1244 = vsel %vm669, %v1239, -inf
    %1245 = vmax.xlane.f32.xlu0 %v1244
    %v1246 = vpop.xlane.xlu0 %1245
    %v1247 = vsel %vm669, %v1240, -inf
    %1248 = vmax.xlane.f32.xlu0 %v1247
    %v1249 = vpop.xlane.xlu0 %1248
    %v1250 = vsub.f32 %v1238, %v1243
    %v1251 = vsub.f32 %v1239, %v1246
    %v1252 = vsub.f32 %v1240, %v1249
    %v1253 = vmul.f32 %v1250, 1.442695
    %v1254 = vpow.pop %v1253
    %v1255 = vmul.f32 %v1251, 1.442695
    %v1256 = vpow.pop %v1255
    %v1257 = vmul.f32 %v1252, 1.442695
    %v1258 = vpow.pop %v1257
    %v1259 = vsel %vm669, %v1254, 0.0
    %1260 = vadd.xlane.f32.xlu0 %v1259
    %v1261 = vpop.xlane.xlu0 %1260
    %v1262 = vsel %vm669, %v1256, 0.0
    %1263 = vadd.xlane.f32.xlu0 %v1262
    %v1264 = vpop.xlane.xlu0 %1263
    %v1265 = vsel %vm669, %v1258, 0.0
    %1266 = vadd.xlane.f32.xlu0 %v1265
    %v1267 = vpop.xlane.xlu0 %1266
    %v1268 = vrcp.pop %v1261
    %v1269 = vrcp.pop %v1264
    %v1270 = vrcp.pop %v1267
    %v1271 = vmul.f32 %v1254, %v1268
    %v1272 = vmul.f32 %v1256, %v1269
    %v1273 = vmul.f32 %v1258, %v1270
    %1274 = vrot.lane.b32.xlu0 %v1188, 64
    %v1275 = vpop.permute.xlu0 %1274
    %1276 = vrot.lane.b32.xlu0 %v1189, 64
    %v1277 = vpop.permute.xlu0 %1276
    %1278 = vrot.lane.b32.xlu0 %v1190, 64
    %v1279 = vpop.permute.xlu0 %1278
    %v1284 = vsel %vm669, %v1271, 0
    %v1287 = vsel %vm669, %v1272, 0
    %v1290 = vsel %vm669, %v1273, 0
    %1292 = vmatpush.msra.mxu0 0.0
    %1293 = vmatpush.msra.mxu0 0.0
    %1294 = vmatpush.msra.mxu0 0.0
    %1295 = vmatpush.msra.mxu0 0.0
    %1296 = vmatpush.msra.mxu0 0.0
    %1297 = vmatpush.msra.mxu0 0.0
    %1298 = vmatpush.msra.mxu0 0.0
    %1299 = vmatpush.msra.mxu0 0.0
    %1300 = vmatpush.msra.mxu0 0.0
    %1301 = vmatpush.msra.mxu0 0.0
    %1302 = vmatpush.msra.mxu0 0.0
    %1303 = vmatpush.msra.mxu0 0.0
    %1304 = vmatpush.msra.mxu0 0.0
    %1305 = vmatpush.msra.mxu0 %v1279
    %1306 = vmatpush.msra.mxu0 %v1277
    %1307 = vmatpush.msra.mxu0 %v1275
    %1308 = vmatmul.f32.gmra.mxu0 %v1284
    %v1309 = vpop.f32.mrf.mxu0
    %v1310 = vadd.f32 0.0, %v1309
    %1311 = vmatmul.f32.gmra.mxu0 %v1287
    %v1312 = vpop.f32.mrf.mxu0
    %v1313 = vadd.f32 0.0, %v1312
    %1314 = vmatmul.f32.gmra.mxu0 %v1290
    %v1315 = vpop.f32.mrf.mxu0
    %v1316 = vadd.f32 0.0, %v1315
    %1317 = vdwg.mxu0
    %s1318 = scalar_lea.vmem [#allocation3], 24
    %1319 = vst.msk [vmem:[%s1318] sm:$0xff] %vm627, %v1310
    %1320 = vst.msk [vmem:[%s1318 + $0x8] sm:$0xff] %vm627, %v1313
    %1321 = vst.msk [vmem:[%s1318 + $0x10] sm:$0xff] %vm627, %v1316
    %1322 = vrot.lane.b32.xlu0 %v1188, 120
    %v1323 = vpop.permute.xlu0 %1322
    %1324 = vrot.lane.b32.xlu0 %v1189, 120
    %v1325 = vpop.permute.xlu0 %1324
    %1326 = vrot.lane.b32.xlu0 %v1190, 120
    %v1327 = vpop.permute.xlu0 %1326
    %1328 = vrot.lane.b32.xlu0 %v1188, 88
    %v1329 = vpop.permute.xlu0 %1328
    %1330 = vrot.lane.b32.xlu0 %v1189, 88
    %v1331 = vpop.permute.xlu0 %1330
    %1332 = vrot.lane.b32.xlu0 %v1190, 88
    %v1333 = vpop.permute.xlu0 %1332
    %v1334 = vsel %vm627, %v1323, 0
    %v1336 = vsel %vm627, %v1325, 0
    %v1338 = vsel %vm627, %v1327, 0
    %v1340 = vsel %vm627, %v1329, 0
    %v1342 = vsel %vm627, %v1331, 0
    %v1344 = vsel %vm627, %v1333, 0
    %1346 = vmatpush.xpose.msra.mxu0 0.0
    %1347 = vmatpush.xpose.msra.mxu0 0.0
    %1348 = vmatpush.xpose.msra.mxu0 0.0
    %1349 = vmatpush.xpose.msra.mxu0 0.0
    %1350 = vmatpush.xpose.msra.mxu0 0.0
    %1351 = vmatpush.xpose.msra.mxu0 0.0
    %1352 = vmatpush.xpose.msra.mxu0 0.0
    %1353 = vmatpush.xpose.msra.mxu0 0.0
    %1354 = vmatpush.xpose.msra.mxu0 0.0
    %1355 = vmatpush.xpose.msra.mxu0 0.0
    %1356 = vmatpush.xpose.msra.mxu0 0.0
    %1357 = vmatpush.xpose.msra.mxu0 0.0
    %1358 = vmatpush.xpose.msra.mxu0 0.0
    %1359 = vmatpush.xpose.msra.mxu0 %v1344
    %1360 = vmatpush.xpose.msra.mxu0 %v1342
    %1361 = vmatpush.xpose.msra.mxu0 %v1340
    %1362 = vmatmul.f32.gmra.mxu0 %v1334
    %v1363 = vpop.f32.mrf.mxu0
    %v1364 = vadd.f32 0.0, %v1363
    %1365 = vmatmul.f32.gmra.mxu0 %v1336
    %v1366 = vpop.f32.mrf.mxu0
    %v1367 = vadd.f32 0.0, %v1366
    %1368 = vmatmul.f32.gmra.mxu0 %v1338
    %v1369 = vpop.f32.mrf.mxu0
    %v1370 = vadd.f32 0.0, %v1369
    %1371 = vdwg.mxu0
    %v1372 = vmul.f32 %v1364, 0.35355338
    %v1373 = vmul.f32 %v1367, 0.35355338
    %v1374 = vmul.f32 %v1370, 0.35355338
    %v1375 = vsel %vm669, %v1372, -inf
    %1376 = vmax.xlane.f32.xlu0 %v1375
    %v1377 = vpop.xlane.xlu0 %1376
    %v1378 = vsel %vm669, %v1373, -inf
    %1379 = vmax.xlane.f32.xlu0 %v1378
    %v1380 = vpop.xlane.xlu0 %1379
    %v1381 = vsel %vm669, %v1374, -inf
    %1382 = vmax.xlane.f32.xlu0 %v1381
    %v1383 = vpop.xlane.xlu0 %1382
    %v1384 = vsub.f32 %v1372, %v1377
    %v1385 = vsub.f32 %v1373, %v1380
    %v1386 = vsub.f32 %v1374, %v1383
    %v1387 = vmul.f32 %v1384, 1.442695
    %v1388 = vpow.pop %v1387
    %v1389 = vmul.f32 %v1385, 1.442695
    %v1390 = vpow.pop %v1389
    %v1391 = vmul.f32 %v1386, 1.442695
    %v1392 = vpow.pop %v1391
    %v1393 = vsel %vm669, %v1388, 0.0
    %1394 = vadd.xlane.f32.xlu0 %v1393
    %v1395 = vpop.xlane.xlu0 %1394
    %v1396 = vsel %vm669, %v1390, 0.0
    %1397 = vadd.xlane.f32.xlu0 %v1396
    %v1398 = vpop.xlane.xlu0 %1397
    %v1399 = vsel %vm669, %v1392, 0.0
    %1400 = vadd.xlane.f32.xlu0 %v1399
    %v1401 = vpop.xlane.xlu0 %1400
    %v1402 = vrcp.pop %v1395
    %v1403 = vrcp.pop %v1398
    %v1404 = vrcp.pop %v1401
    %v1405 = vmul.f32 %v1388, %v1402
    %v1406 = vmul.f32 %v1390, %v1403
    %v1407 = vmul.f32 %v1392, %v1404
    %1408 = vrot.lane.b32.xlu0 %v1188, 56
    %v1409 = vpop.permute.xlu0 %1408
    %1410 = vrot.lane.b32.xlu0 %v1189, 56
    %v1411 = vpop.permute.xlu0 %1410
    %1412 = vrot.lane.b32.xlu0 %v1190, 56
    %v1413 = vpop.permute.xlu0 %1412
    %v1418 = vsel %vm669, %v1405, 0
    %v1421 = vsel %vm669, %v1406, 0
    %v1424 = vsel %vm669, %v1407, 0
    %1426 = vmatpush.msra.mxu0 0.0
    %1427 = vmatpush.msra.mxu0 0.0
    %1428 = vmatpush.msra.mxu0 0.0
    %1429 = vmatpush.msra.mxu0 0.0
    %1430 = vmatpush.msra.mxu0 0.0
    %1431 = vmatpush.msra.mxu0 0.0
    %1432 = vmatpush.msra.mxu0 0.0
    %1433 = vmatpush.msra.mxu0 0.0
    %1434 = vmatpush.msra.mxu0 0.0
    %1435 = vmatpush.msra.mxu0 0.0
    %1436 = vmatpush.msra.mxu0 0.0
    %1437 = vmatpush.msra.mxu0 0.0
    %1438 = vmatpush.msra.mxu0 0.0
    %1439 = vmatpush.msra.mxu0 %v1413
    %1440 = vmatpush.msra.mxu0 %v1411
    %1441 = vmatpush.msra.mxu0 %v1409
    %1442 = vmatmul.f32.gmra.mxu0 %v1418
    %v1443 = vpop.f32.mrf.mxu0
    %v1444 = vadd.f32 0.0, %v1443
    %1445 = vmatmul.f32.gmra.mxu0 %v1421
    %v1446 = vpop.f32.mrf.mxu0
    %v1447 = vadd.f32 0.0, %v1446
    %1448 = vmatmul.f32.gmra.mxu0 %v1424
    %v1449 = vpop.f32.mrf.mxu0
    %v1450 = vadd.f32 0.0, %v1449
    %1451 = vdwg.mxu0
    %1455 = vrot.lane.b32.xlu0 %v1444, 8
    %v1456 = vpop.permute.xlu0 %1455
    %1457 = vrot.lane.b32.xlu0 %v1447, 8
    %v1458 = vpop.permute.xlu0 %1457
    %1459 = vrot.lane.b32.xlu0 %v1450, 8
    %v1460 = vpop.permute.xlu0 %1459
    %1464 = vst.msk [vmem:[%s1318] sm:$0xff] %vm892, %v1456
    %1465 = vst.msk [vmem:[%s1318 + $0x8] sm:$0xff] %vm892, %v1458
    %1466 = vst.msk [vmem:[%s1318 + $0x10] sm:$0xff] %vm892, %v1460
    %1467 = vrot.lane.b32.xlu0 %v1188, 112
    %v1468 = vpop.permute.xlu0 %1467
    %1469 = vrot.lane.b32.xlu0 %v1189, 112
    %v1470 = vpop.permute.xlu0 %1469
    %1471 = vrot.lane.b32.xlu0 %v1190, 112
    %v1472 = vpop.permute.xlu0 %1471
    %1473 = vrot.lane.b32.xlu0 %v1188, 80
    %v1474 = vpop.permute.xlu0 %1473
    %1475 = vrot.lane.b32.xlu0 %v1189, 80
    %v1476 = vpop.permute.xlu0 %1475
    %1477 = vrot.lane.b32.xlu0 %v1190, 80
    %v1478 = vpop.permute.xlu0 %1477
    %v1479 = vsel %vm627, %v1468, 0
    %v1481 = vsel %vm627, %v1470, 0
    %v1483 = vsel %vm627, %v1472, 0
    %v1485 = vsel %vm627, %v1474, 0
    %v1487 = vsel %vm627, %v1476, 0
    %v1489 = vsel %vm627, %v1478, 0
    %1491 = vmatpush.xpose.msra.mxu0 0.0
    %1492 = vmatpush.xpose.msra.mxu0 0.0
    %1493 = vmatpush.xpose.msra.mxu0 0.0
    %1494 = vmatpush.xpose.msra.mxu0 0.0
    %1495 = vmatpush.xpose.msra.mxu0 0.0
    %1496 = vmatpush.xpose.msra.mxu0 0.0
    %1497 = vmatpush.xpose.msra.mxu0 0.0
    %1498 = vmatpush.xpose.msra.mxu0 0.0
    %1499 = vmatpush.xpose.msra.mxu0 0.0
    %1500 = vmatpush.xpose.msra.mxu0 0.0
    %1501 = vmatpush.xpose.msra.mxu0 0.0
    %1502 = vmatpush.xpose.msra.mxu0 0.0
    %1503 = vmatpush.xpose.msra.mxu0 0.0
    %1504 = vmatpush.xpose.msra.mxu0 %v1489
    %1505 = vmatpush.xpose.msra.mxu0 %v1487
    %1506 = vmatpush.xpose.msra.mxu0 %v1485
    %1507 = vmatmul.f32.gmra.mxu0 %v1479
    %v1508 = vpop.f32.mrf.mxu0
    %v1509 = vadd.f32 0.0, %v1508
    %1510 = vmatmul.f32.gmra.mxu0 %v1481
    %v1511 = vpop.f32.mrf.mxu0
    %v1512 = vadd.f32 0.0, %v1511
    %1513 = vmatmul.f32.gmra.mxu0 %v1483
    %v1514 = vpop.f32.mrf.mxu0
    %v1515 = vadd.f32 0.0, %v1514
    %1516 = vdwg.mxu0
    %v1517 = vmul.f32 %v1509, 0.35355338
    %v1518 = vmul.f32 %v1512, 0.35355338
    %v1519 = vmul.f32 %v1515, 0.35355338
    %v1520 = vsel %vm669, %v1517, -inf
    %1521 = vmax.xlane.f32.xlu0 %v1520
    %v1522 = vpop.xlane.xlu0 %1521
    %v1523 = vsel %vm669, %v1518, -inf
    %1524 = vmax.xlane.f32.xlu0 %v1523
    %v1525 = vpop.xlane.xlu0 %1524
    %v1526 = vsel %vm669, %v1519, -inf
    %1527 = vmax.xlane.f32.xlu0 %v1526
    %v1528 = vpop.xlane.xlu0 %1527
    %v1529 = vsub.f32 %v1517, %v1522
    %v1530 = vsub.f32 %v1518, %v1525
    %v1531 = vsub.f32 %v1519, %v1528
    %v1532 = vmul.f32 %v1529, 1.442695
    %v1533 = vpow.pop %v1532
    %v1534 = vmul.f32 %v1530, 1.442695
    %v1535 = vpow.pop %v1534
    %v1536 = vmul.f32 %v1531, 1.442695
    %v1537 = vpow.pop %v1536
    %v1538 = vsel %vm669, %v1533, 0.0
    %1539 = vadd.xlane.f32.xlu0 %v1538
    %v1540 = vpop.xlane.xlu0 %1539
    %v1541 = vsel %vm669, %v1535, 0.0
    %1542 = vadd.xlane.f32.xlu0 %v1541
    %v1543 = vpop.xlane.xlu0 %1542
    %v1544 = vsel %vm669, %v1537, 0.0
    %1545 = vadd.xlane.f32.xlu0 %v1544
    %v1546 = vpop.xlane.xlu0 %1545
    %v1547 = vrcp.pop %v1540
    %v1548 = vrcp.pop %v1543
    %v1549 = vrcp.pop %v1546
    %v1550 = vmul.f32 %v1533, %v1547
    %v1551 = vmul.f32 %v1535, %v1548
    %v1552 = vmul.f32 %v1537, %v1549
    %1553 = vrot.lane.b32.xlu0 %v1188, 48
    %v1554 = vpop.permute.xlu0 %1553
    %1555 = vrot.lane.b32.xlu0 %v1189, 48
    %v1556 = vpop.permute.xlu0 %1555
    %1557 = vrot.lane.b32.xlu0 %v1190, 48
    %v1558 = vpop.permute.xlu0 %1557
    %v1563 = vsel %vm669, %v1550, 0
    %v1566 = vsel %vm669, %v1551, 0
    %v1569 = vsel %vm669, %v1552, 0
    %1571 = vmatpush.msra.mxu0 0.0
    %1572 = vmatpush.msra.mxu0 0.0
    %1573 = vmatpush.msra.mxu0 0.0
    %1574 = vmatpush.msra.mxu0 0.0
    %1575 = vmatpush.msra.mxu0 0.0
    %1576 = vmatpush.msra.mxu0 0.0
    %1577 = vmatpush.msra.mxu0 0.0
    %1578 = vmatpush.msra.mxu0 0.0
    %1579 = vmatpush.msra.mxu0 0.0
    %1580 = vmatpush.msra.mxu0 0.0
    %1581 = vmatpush.msra.mxu0 0.0
    %1582 = vmatpush.msra.mxu0 0.0
    %1583 = vmatpush.msra.mxu0 0.0
    %1584 = vmatpush.msra.mxu0 %v1558
    %1585 = vmatpush.msra.mxu0 %v1556
    %1586 = vmatpush.msra.mxu0 %v1554
    %1587 = vmatmul.f32.gmra.mxu0 %v1563
    %v1588 = vpop.f32.mrf.mxu0
    %v1589 = vadd.f32 0.0, %v1588
    %1590 = vmatmul.f32.gmra.mxu0 %v1566
    %v1591 = vpop.f32.mrf.mxu0
    %v1592 = vadd.f32 0.0, %v1591
    %1593 = vmatmul.f32.gmra.mxu0 %v1569
    %v1594 = vpop.f32.mrf.mxu0
    %v1595 = vadd.f32 0.0, %v1594
    %1596 = vdwg.mxu0
    %1600 = vrot.lane.b32.xlu0 %v1589, 16
    %v1601 = vpop.permute.xlu0 %1600
    %1602 = vrot.lane.b32.xlu0 %v1592, 16
    %v1603 = vpop.permute.xlu0 %1602
    %1604 = vrot.lane.b32.xlu0 %v1595, 16
    %v1605 = vpop.permute.xlu0 %1604
    %1609 = vst.msk [vmem:[%s1318] sm:$0xff] %vm1038, %v1601
    %1610 = vst.msk [vmem:[%s1318 + $0x8] sm:$0xff] %vm1038, %v1603
    %1611 = vst.msk [vmem:[%s1318 + $0x10] sm:$0xff] %vm1038, %v1605
    %1612 = vrot.lane.b32.xlu0 %v1188, 104
    %v1613 = vpop.permute.xlu0 %1612
    %1614 = vrot.lane.b32.xlu0 %v1189, 104
    %v1615 = vpop.permute.xlu0 %1614
    %1616 = vrot.lane.b32.xlu0 %v1190, 104
    %v1617 = vpop.permute.xlu0 %1616
    %1618 = vrot.lane.b32.xlu0 %v1188, 72
    %v1619 = vpop.permute.xlu0 %1618
    %1620 = vrot.lane.b32.xlu0 %v1189, 72
    %v1621 = vpop.permute.xlu0 %1620
    %1622 = vrot.lane.b32.xlu0 %v1190, 72
    %v1623 = vpop.permute.xlu0 %1622
    %v1624 = vsel %vm627, %v1613, 0
    %v1626 = vsel %vm627, %v1615, 0
    %v1628 = vsel %vm627, %v1617, 0
    %v1630 = vsel %vm627, %v1619, 0
    %v1632 = vsel %vm627, %v1621, 0
    %v1634 = vsel %vm627, %v1623, 0
    %1636 = vmatpush.xpose.msra.mxu0 0.0
    %1637 = vmatpush.xpose.msra.mxu0 0.0
    %1638 = vmatpush.xpose.msra.mxu0 0.0
    %1639 = vmatpush.xpose.msra.mxu0 0.0
    %1640 = vmatpush.xpose.msra.mxu0 0.0
    %1641 = vmatpush.xpose.msra.mxu0 0.0
    %1642 = vmatpush.xpose.msra.mxu0 0.0
    %1643 = vmatpush.xpose.msra.mxu0 0.0
    %1644 = vmatpush.xpose.msra.mxu0 0.0
    %1645 = vmatpush.xpose.msra.mxu0 0.0
    %1646 = vmatpush.xpose.msra.mxu0 0.0
    %1647 = vmatpush.xpose.msra.mxu0 0.0
    %1648 = vmatpush.xpose.msra.mxu0 0.0
    %1649 = vmatpush.xpose.msra.mxu0 %v1634
    %1650 = vmatpush.xpose.msra.mxu0 %v1632
    %1651 = vmatpush.xpose.msra.mxu0 %v1630
    %1652 = vmatmul.f32.gmra.mxu0 %v1624
    %v1653 = vpop.f32.mrf.mxu0
    %v1654 = vadd.f32 0.0, %v1653
    %1655 = vmatmul.f32.gmra.mxu0 %v1626
    %v1656 = vpop.f32.mrf.mxu0
    %v1657 = vadd.f32 0.0, %v1656
    %1658 = vmatmul.f32.gmra.mxu0 %v1628
    %v1659 = vpop.f32.mrf.mxu0
    %v1660 = vadd.f32 0.0, %v1659
    %1661 = vdwg.mxu0
    %v1662 = vmul.f32 %v1654, 0.35355338
    %v1663 = vmul.f32 %v1657, 0.35355338
    %v1664 = vmul.f32 %v1660, 0.35355338
    %v1665 = vsel %vm669, %v1662, -inf
    %1666 = vmax.xlane.f32.xlu0 %v1665
    %v1667 = vpop.xlane.xlu0 %1666
    %v1668 = vsel %vm669, %v1663, -inf
    %1669 = vmax.xlane.f32.xlu0 %v1668
    %v1670 = vpop.xlane.xlu0 %1669
    %v1671 = vsel %vm669, %v1664, -inf
    %1672 = vmax.xlane.f32.xlu0 %v1671
    %v1673 = vpop.xlane.xlu0 %1672
    %v1674 = vsub.f32 %v1662, %v1667
    %v1675 = vsub.f32 %v1663, %v1670
    %v1676 = vsub.f32 %v1664, %v1673
    %v1677 = vmul.f32 %v1674, 1.442695
    %v1678 = vpow.pop %v1677
    %v1679 = vmul.f32 %v1675, 1.442695
    %v1680 = vpow.pop %v1679
    %v1681 = vmul.f32 %v1676, 1.442695
    %v1682 = vpow.pop %v1681
    %v1683 = vsel %vm669, %v1678, 0.0
    %1684 = vadd.xlane.f32.xlu0 %v1683
    %v1685 = vpop.xlane.xlu0 %1684
    %v1686 = vsel %vm669, %v1680, 0.0
    %1687 = vadd.xlane.f32.xlu0 %v1686
    %v1688 = vpop.xlane.xlu0 %1687
    %v1689 = vsel %vm669, %v1682, 0.0
    %1690 = vadd.xlane.f32.xlu0 %v1689
    %v1691 = vpop.xlane.xlu0 %1690
    %v1692 = vrcp.pop %v1685
    %v1693 = vrcp.pop %v1688
    %v1694 = vrcp.pop %v1691
    %v1695 = vmul.f32 %v1678, %v1692
    %v1696 = vmul.f32 %v1680, %v1693
    %v1697 = vmul.f32 %v1682, %v1694
    %1698 = vrot.lane.b32.xlu0 %v1188, 40
    %v1699 = vpop.permute.xlu0 %1698
    %1700 = vrot.lane.b32.xlu0 %v1189, 40
    %v1701 = vpop.permute.xlu0 %1700
    %1702 = vrot.lane.b32.xlu0 %v1190, 40
    %v1703 = vpop.permute.xlu0 %1702
    %v1708 = vsel %vm669, %v1695, 0
    %v1711 = vsel %vm669, %v1696, 0
    %v1714 = vsel %vm669, %v1697, 0
    %1716 = vmatpush.msra.mxu0 0.0
    %1717 = vmatpush.msra.mxu0 0.0
    %1718 = vmatpush.msra.mxu0 0.0
    %1719 = vmatpush.msra.mxu0 0.0
    %1720 = vmatpush.msra.mxu0 0.0
    %1721 = vmatpush.msra.mxu0 0.0
    %1722 = vmatpush.msra.mxu0 0.0
    %1723 = vmatpush.msra.mxu0 0.0
    %1724 = vmatpush.msra.mxu0 0.0
    %1725 = vmatpush.msra.mxu0 0.0
    %1726 = vmatpush.msra.mxu0 0.0
    %1727 = vmatpush.msra.mxu0 0.0
    %1728 = vmatpush.msra.mxu0 0.0
    %1729 = vmatpush.msra.mxu0 %v1703
    %1730 = vmatpush.msra.mxu0 %v1701
    %1731 = vmatpush.msra.mxu0 %v1699
    %1732 = vmatmul.f32.gmra.mxu0 %v1708
    %v1733 = vpop.f32.mrf.mxu0
    %v1734 = vadd.f32 0.0, %v1733
    %1735 = vmatmul.f32.gmra.mxu0 %v1711
    %v1736 = vpop.f32.mrf.mxu0
    %v1737 = vadd.f32 0.0, %v1736
    %1738 = vmatmul.f32.gmra.mxu0 %v1714
    %v1739 = vpop.f32.mrf.mxu0
    %v1740 = vadd.f32 0.0, %v1739
    %1741 = vdwg.mxu0
    %1745 = vrot.lane.b32.xlu0 %v1734, 24
    %v1746 = vpop.permute.xlu0 %1745
    %1747 = vrot.lane.b32.xlu0 %v1737, 24
    %v1748 = vpop.permute.xlu0 %1747
    %1749 = vrot.lane.b32.xlu0 %v1740, 24
    %v1750 = vpop.permute.xlu0 %1749
    %1754 = vst.msk [vmem:[%s1318] sm:$0xff] %vm1184, %v1746
    %1755 = vst.msk [vmem:[%s1318 + $0x8] sm:$0xff] %vm1184, %v1748
    %1756 = vst.msk [vmem:[%s1318 + $0x10] sm:$0xff] %vm1184, %v1750
    %v1757 = vld [vmem:[#allocation3] sm:$0xff]
    %v1758 = vld [vmem:[#allocation3 + $0x8] sm:$0xff]
    %v1759 = vld [vmem:[%s8] sm:$0xff]
    %v1760 = vld [vmem:[%s8 + $0x8] sm:$0xff]
    %v1761 = vld [vmem:[%s8 + $0x10] sm:$0xff]
    %v1762 = vld [vmem:[%s8 + $0x18] sm:$0xff]
    %v1763 = vld [vmem:[%s9] sm:$0x1]
    %v1765 = vperm.slane %v1763, 0
    %v1768 = vsel %vm160, %v1757, 0
    %v1771 = vsel %vm160, %v1758, 0
    %1773 = vmatpush.msra.mxu0 0.0
    %1774 = vmatpush.msra.mxu0 0.0
    %1775 = vmatpush.msra.mxu0 0.0
    %1776 = vmatpush.msra.mxu0 0.0
    %1777 = vmatpush.msra.mxu0 0.0
    %1778 = vmatpush.msra.mxu0 0.0
    %1779 = vmatpush.msra.mxu0 0.0
    %1780 = vmatpush.msra.mxu0 0.0
    %1781 = vmatpush.msra.mxu0 0.0
    %1782 = vmatpush.msra.mxu0 0.0
    %1783 = vmatpush.msra.mxu0 0.0
    %1784 = vmatpush.msra.mxu0 0.0
    %1785 = vmatpush.msra.mxu0 %v1762
    %1786 = vmatpush.msra.mxu0 %v1761
    %1787 = vmatpush.msra.mxu0 %v1760
    %1788 = vmatpush.msra.mxu0 %v1759
    %1789 = vmatmul.f32.gmra.mxu0 %v1768
    %v1790 = vpop.f32.mrf.mxu0
    %v1791 = vadd.f32 %v1765, %v1790
    %1792 = vmatmul.f32.gmra.mxu0 %v1771
    %v1793 = vpop.f32.mrf.mxu0
    %v1794 = vadd.f32 %v1765, %v1793
    %1795 = vdwg.mxu0
    %v1796 = vld [vmem:[#allocation4] sm:$0xff]
    %v1797 = vld [vmem:[#allocation4 + $0x8] sm:$0xff]
    %1798 = vrot.lane.b32.xlu0 %v341, 64
    %v1799 = vpop.permute.xlu0 %1798
    %v1801 = vmul.f32 %v1791, %v1799
    %v1802 = vmul.f32 %v1794, %v1799
    %v1803 = vadd.f32 %v1796, %v1801
    %v1804 = vadd.f32 %v1797, %v1802
    %v1805 = vsel %vm160, %v1803, 0.0
    %1806 = vadd.xlane.f32.xlu0 %v1805
    %v1807 = vpop.xlane.xlu0 %1806
    %v1808 = vsel %vm160, %v1804, 0.0
    %1809 = vadd.xlane.f32.xlu0 %v1808
    %v1810 = vpop.xlane.xlu0 %1809
    %v1811 = vmul.f32 %v1807, %v298
    %v1812 = vmul.f32 %v1810, %v298
    %v1813 = vsub.f32 %v1803, %v1811
    %v1814 = vsub.f32 %v1804, %v1812
    %v1815 = vmul.f32 %v1813, %v1813
    %v1816 = vmul.f32 %v1814, %v1814
    %v1817 = vsel %vm160, %v1815, 0.0
    %1818 = vadd.xlane.f32.xlu0 %v1817
    %v1819 = vpop.xlane.xlu0 %1818
    %v1820 = vsel %vm160, %v1816, 0.0
    %1821 = vadd.xlane.f32.xlu0 %v1820
    %v1822 = vpop.xlane.xlu0 %1821
    %v1823 = vmul.f32 %v1819, %v298
    %v1824 = vmul.f32 %v1822, %v298
    %v1825 = vadd.f32 %v1823, 1e-06
    %v1826 = vadd.f32 %v1824, 1e-06
    %v1827 = vrsqrt.pop %v1825
    %v1828 = vmul.f32 %v1827, %v1825
    %v1829 = vmul.f32 %v1828, %v1827
    %v1830 = vmul.f32 0.5, %v1829
    %v1831 = vsub.f32 1.5, %v1830
    %v1832 = vmul.f32 %v1827, %v1831
    %vm1833 = vweird.f32 %v1825
    %vm1834 = vweird.f32 %v1827
    %vm1835 = vmor %vm1833, %vm1834
    %v1836 = vsel %vm1835, %v1827, %v1832
    %v1837 = vrsqrt.pop %v1826
    %v1838 = vmul.f32 %v1837, %v1826
    %v1839 = vmul.f32 %v1838, %v1837
    %v1840 = vmul.f32 0.5, %v1839
    %v1841 = vsub.f32 1.5, %v1840
    %v1842 = vmul.f32 %v1837, %v1841
    %vm1843 = vweird.f32 %v1826
    %vm1844 = vweird.f32 %v1837
    %vm1845 = vmor %vm1843, %vm1844
    %v1846 = vsel %vm1845, %v1837, %v1842
    %v1847 = vmul.f32 %v1813, %v1836
    %v1848 = vmul.f32 %v1814, %v1846
    %1850 = vrot.lane.b32.xlu0 %v338, 32
    %v1851 = vpop.permute.xlu0 %1850
    %v1853 = vmul.f32 %v1847, %v1851
    %v1854 = vmul.f32 %v1848, %v1851
    %v1855 = vperm.slane %v202, 0
    %v1856 = vadd.f32 %v1853, %v1855
    %v1857 = vadd.f32 %v1854, %v1855
    %v1858 = vld [vmem:[%s10] sm:$0xff]
    %v1859 = vld [vmem:[%s10 + $0x8] sm:$0xff]
    %v1860 = vld [vmem:[%s10 + $0x10] sm:$0xff]
    %v1861 = vld [vmem:[%s10 + $0x18] sm:$0xff]
    %v1862 = vld [vmem:[%s11] sm:$0x1]
    %v1864 = vperm.slane %v1862, 0
    %v1867 = vsel %vm160, %v1856, 0
    %v1870 = vsel %vm160, %v1857, 0
    %1872 = vmatpush.msra.mxu0 0.0
    %1873 = vmatpush.msra.mxu0 0.0
    %1874 = vmatpush.msra.mxu0 0.0
    %1875 = vmatpush.msra.mxu0 0.0
    %1876 = vmatpush.msra.mxu0 0.0
    %1877 = vmatpush.msra.mxu0 0.0
    %1878 = vmatpush.msra.mxu0 0.0
    %1879 = vmatpush.msra.mxu0 0.0
    %1880 = vmatpush.msra.mxu0 0.0
    %1881 = vmatpush.msra.mxu0 0.0
    %1882 = vmatpush.msra.mxu0 0.0
    %1883 = vmatpush.msra.mxu0 0.0
    %1884 = vmatpush.msra.mxu0 %v1861
    %1885 = vmatpush.msra.mxu0 %v1860
    %1886 = vmatpush.msra.mxu0 %v1859
    %1887 = vmatpush.msra.mxu0 %v1858
    %1888 = vmatmul.f32.gmra.mxu0 %v1867
    %v1889 = vpop.f32.mrf.mxu0
    %v1890 = vadd.f32 %v1864, %v1889
    %1891 = vmatmul.f32.gmra.mxu0 %v1870
    %v1892 = vpop.f32.mrf.mxu0
    %v1893 = vadd.f32 %v1864, %v1892
    %1894 = vdwg.mxu0
    %v1895 = vmul.f32 %v1890, 0.5
    %v1896 = vmul.f32 %v1893, 0.5
    %v1897 = vmul.f32 %v1890, 0.044715
    %v1898 = vmul.f32 %v1893, 0.044715
    %v1899 = vmul.f32 %v1897, %v1890
    %v1900 = vmul.f32 %v1898, %v1893
    %v1901 = vmul.f32 %v1899, %v1890
    %v1902 = vmul.f32 %v1900, %v1893
    %v1903 = vadd.f32 %v1890, %v1901
    %v1904 = vadd.f32 %v1893, %v1902
    %v1905 = vmul.f32 %v1903, 0.7978846
    %v1906 = vmul.f32 %v1904, 0.7978846
    %v1907 = vtanh.pop %v1905
    %v1908 = vtanh.pop %v1906
    %v1909 = vadd.f32 %v1907, 1.0
    %v1910 = vadd.f32 %v1908, 1.0
    %v1911 = vmul.f32 %v1895, %v1909
    %v1912 = vmul.f32 %v1896, %v1910
    %v1913 = vld [vmem:[%s12] sm:$0xff]
    %v1914 = vld [vmem:[%s12 + $0x8] sm:$0xff]
    %v1915 = vld [vmem:[%s12 + $0x10] sm:$0xff]
    %v1916 = vld [vmem:[%s12 + $0x18] sm:$0xff]
    %v1917 = vld [vmem:[%s12 + $0x20] sm:$0xff]
    %v1918 = vld [vmem:[%s12 + $0x28] sm:$0xff]
    %v1919 = vld [vmem:[%s12 + $0x30] sm:$0xff]
    %v1920 = vld [vmem:[%s12 + $0x38] sm:$0xff]
    %v1921 = vld [vmem:[%s12 + $0x40] sm:$0xff]
    %v1922 = vld [vmem:[%s12 + $0x48] sm:$0xff]
    %v1923 = vld [vmem:[%s12 + $0x50] sm:$0xff]
    %v1924 = vld [vmem:[%s12 + $0x58] sm:$0xff]
    %v1925 = vld [vmem:[%s12 + $0x60] sm:$0xff]
    %v1926 = vld [vmem:[%s12 + $0x68] sm:$0xff]
    %v1927 = vld [vmem:[%s12 + $0x70] sm:$0xff]
    %v1928 = vld [vmem:[%s12 + $0x78] sm:$0xff]
    %v1929 = vld [vmem:[%s13] sm:$0x1]
    %v1931 = vperm.slane %v1929, 0
    %1933 = vmatpush.msra.mxu0 %v1928
    %1934 = vmatpush.msra.mxu0 %v1927
    %1935 = vmatpush.msra.mxu0 %v1926
    %1936 = vmatpush.msra.mxu0 %v1925
    %1937 = vmatpush.msra.mxu0 %v1924
    %1938 = vmatpush.msra.mxu0 %v1923
    %1939 = vmatpush.msra.mxu0 %v1922
    %1940 = vmatpush.msra.mxu0 %v1921
    %1941 = vmatpush.msra.mxu0 %v1920
    %1942 = vmatpush.msra.mxu0 %v1919
    %1943 = vmatpush.msra.mxu0 %v1918
    %1944 = vmatpush.msra.mxu0 %v1917
    %1945 = vmatpush.msra.mxu0 %v1916
    %1946 = vmatpush.msra.mxu0 %v1915
    %1947 = vmatpush.msra.mxu0 %v1914
    %1948 = vmatpush.msra.mxu0 %v1913
    %1949 = vmatmul.f32.gmra.mxu0 %v1911
    %v1950 = vpop.f32.mrf.mxu0
    %v1951 = vadd.f32 %v1931, %v1950
    %1952 = vmatmul.f32.gmra.mxu0 %v1912
    %v1953 = vpop.f32.mrf.mxu0
    %v1954 = vadd.f32 %v1931, %v1953
    %1955 = vdwg.mxu0
    %1957 = vrot.lane.b32.xlu0 %v1855, 96
    %v1958 = vpop.permute.xlu0 %1957
    %v1960 = vmul.f32 %v1951, %v1958
    %v1961 = vmul.f32 %v1954, %v1958
    %v1962 = vadd.f32 %v1803, %v1960
    %v1963 = vadd.f32 %v1804, %v1961
    %1964 = vst.msk [vmem:[#allocation13] sm:$0xff] %vm160, %v1962
    %1965 = vst.msk [vmem:[#allocation13 + $0x8] sm:$0xff] %vm160, %v1963
    %v1966 = vld [vmem:[%s1318] sm:$0xff]
    %v1967 = vld [vmem:[%s1318 + $0x8] sm:$0xff]
    %v1968 = vld [vmem:[%s8] sm:$0xff]
    %v1969 = vld [vmem:[%s8 + $0x8] sm:$0xff]
    %v1970 = vld [vmem:[%s8 + $0x10] sm:$0xff]
    %v1971 = vld [vmem:[%s8 + $0x18] sm:$0xff]
    %v1972 = vld [vmem:[%s9] sm:$0x1]
    %v1974 = vperm.slane %v1972, 0
    %v1977 = vsel %vm160, %v1966, 0
    %v1980 = vsel %vm160, %v1967, 0
    %1982 = vmatpush.msra.mxu0 0.0
    %1983 = vmatpush.msra.mxu0 0.0
    %1984 = vmatpush.msra.mxu0 0.0
    %1985 = vmatpush.msra.mxu0 0.0
    %1986 = vmatpush.msra.mxu0 0.0
    %1987 = vmatpush.msra.mxu0 0.0
    %1988 = vmatpush.msra.mxu0 0.0
    %1989 = vmatpush.msra.mxu0 0.0
    %1990 = vmatpush.msra.mxu0 0.0
    %1991 = vmatpush.msra.mxu0 0.0
    %1992 = vmatpush.msra.mxu0 0.0
    %1993 = vmatpush.msra.mxu0 0.0
    %1994 = vmatpush.msra.mxu0 %v1971
    %1995 = vmatpush.msra.mxu0 %v1970
    %1996 = vmatpush.msra.mxu0 %v1969
    %1997 = vmatpush.msra.mxu0 %v1968
    %1998 = vmatmul.f32.gmra.mxu0 %v1977
    %v1999 = vpop.f32.mrf.mxu0
    %v2000 = vadd.f32 %v1974, %v1999
    %2001 = vmatmul.f32.gmra.mxu0 %v1980
    %v2002 = vpop.f32.mrf.mxu0
    %v2003 = vadd.f32 %v1974, %v2002
    %2004 = vdwg.mxu0
    %v2005 = vld [vmem:[%s388] sm:$0xff]
    %v2006 = vld [vmem:[%s388 + $0x8] sm:$0xff]
    %2007 = vrot.lane.b32.xlu0 %v438, 64
    %v2008 = vpop.permute.xlu0 %2007
    %v2010 = vmul.f32 %v2000, %v2008
    %v2011 = vmul.f32 %v2003, %v2008
    %v2012 = vadd.f32 %v2005, %v2010
    %v2013 = vadd.f32 %v2006, %v2011
    %v2014 = vsel %vm160, %v2012, 0.0
    %2015 = vadd.xlane.f32.xlu0 %v2014
    %v2016 = vpop.xlane.xlu0 %2015
    %v2017 = vsel %vm160, %v2013, 0.0
    %2018 = vadd.xlane.f32.xlu0 %v2017
    %v2019 = vpop.xlane.xlu0 %2018
    %v2020 = vmul.f32 %v2016, %v298
    %v2021 = vmul.f32 %v2019, %v298
    %v2022 = vsub.f32 %v2012, %v2020
    %v2023 = vsub.f32 %v2013, %v2021
    %v2024 = vmul.f32 %v2022, %v2022
    %v2025 = vmul.f32 %v2023, %v2023
    %v2026 = vsel %vm160, %v2024, 0.0
    %2027 = vadd.xlane.f32.xlu0 %v2026
    %v2028 = vpop.xlane.xlu0 %2027
    %v2029 = vsel %vm160, %v2025, 0.0
    %2030 = vadd.xlane.f32.xlu0 %v2029
    %v2031 = vpop.xlane.xlu0 %2030
    %v2032 = vmul.f32 %v2028, %v298
    %v2033 = vmul.f32 %v2031, %v298
    %v2034 = vadd.f32 %v2032, 1e-06
    %v2035 = vadd.f32 %v2033, 1e-06
    %v2036 = vrsqrt.pop %v2034
    %v2037 = vmul.f32 %v2036, %v2034
    %v2038 = vmul.f32 %v2037, %v2036
    %v2039 = vmul.f32 0.5, %v2038
    %v2040 = vsub.f32 1.5, %v2039
    %v2041 = vmul.f32 %v2036, %v2040
    %vm2042 = vweird.f32 %v2034
    %vm2043 = vweird.f32 %v2036
    %vm2044 = vmor %vm2042, %vm2043
    %v2045 = vsel %vm2044, %v2036, %v2041
    %v2046 = vrsqrt.pop %v2035
    %v2047 = vmul.f32 %v2046, %v2035
    %v2048 = vmul.f32 %v2047, %v2046
    %v2049 = vmul.f32 0.5, %v2048
    %v2050 = vsub.f32 1.5, %v2049
    %v2051 = vmul.f32 %v2046, %v2050
    %vm2052 = vweird.f32 %v2035
    %vm2053 = vweird.f32 %v2046
    %vm2054 = vmor %vm2052, %vm2053
    %v2055 = vsel %vm2054, %v2046, %v2051
    %v2056 = vmul.f32 %v2022, %v2045
    %v2057 = vmul.f32 %v2023, %v2055
    %2059 = vrot.lane.b32.xlu0 %v435, 32
    %v2060 = vpop.permute.xlu0 %2059
    %v2062 = vmul.f32 %v2056, %v2060
    %v2063 = vmul.f32 %v2057, %v2060
    %v2064 = vperm.slane %v202, 1
    %v2065 = vadd.f32 %v2062, %v2064
    %v2066 = vadd.f32 %v2063, %v2064
    %v2067 = vld [vmem:[%s10] sm:$0xff]
    %v2068 = vld [vmem:[%s10 + $0x8] sm:$0xff]
    %v2069 = vld [vmem:[%s10 + $0x10] sm:$0xff]
    %v2070 = vld [vmem:[%s10 + $0x18] sm:$0xff]
    %v2071 = vld [vmem:[%s11] sm:$0x1]
    %v2073 = vperm.slane %v2071, 0
    %v2076 = vsel %vm160, %v2065, 0
    %v2079 = vsel %vm160, %v2066, 0
    %2081 = vmatpush.msra.mxu0 0.0
    %2082 = vmatpush.msra.mxu0 0.0
    %2083 = vmatpush.msra.mxu0 0.0
    %2084 = vmatpush.msra.mxu0 0.0
    %2085 = vmatpush.msra.mxu0 0.0
    %2086 = vmatpush.msra.mxu0 0.0
    %2087 = vmatpush.msra.mxu0 0.0
    %2088 = vmatpush.msra.mxu0 0.0
    %2089 = vmatpush.msra.mxu0 0.0
    %2090 = vmatpush.msra.mxu0 0.0
    %2091 = vmatpush.msra.mxu0 0.0
    %2092 = vmatpush.msra.mxu0 0.0
    %2093 = vmatpush.msra.mxu0 %v2070
    %2094 = vmatpush.msra.mxu0 %v2069
    %2095 = vmatpush.msra.mxu0 %v2068
    %2096 = vmatpush.msra.mxu0 %v2067
    %2097 = vmatmul.f32.gmra.mxu0 %v2076
    %v2098 = vpop.f32.mrf.mxu0
    %v2099 = vadd.f32 %v2073, %v2098
    %2100 = vmatmul.f32.gmra.mxu0 %v2079
    %v2101 = vpop.f32.mrf.mxu0
    %v2102 = vadd.f32 %v2073, %v2101
    %2103 = vdwg.mxu0
    %v2104 = vmul.f32 %v2099, 0.5
    %v2105 = vmul.f32 %v2102, 0.5
    %v2106 = vmul.f32 %v2099, 0.044715
    %v2107 = vmul.f32 %v2102, 0.044715
    %v2108 = vmul.f32 %v2106, %v2099
    %v2109 = vmul.f32 %v2107, %v2102
    %v2110 = vmul.f32 %v2108, %v2099
    %v2111 = vmul.f32 %v2109, %v2102
    %v2112 = vadd.f32 %v2099, %v2110
    %v2113 = vadd.f32 %v2102, %v2111
    %v2114 = vmul.f32 %v2112, 0.7978846
    %v2115 = vmul.f32 %v2113, 0.7978846
    %v2116 = vtanh.pop %v2114
    %v2117 = vtanh.pop %v2115
    %v2118 = vadd.f32 %v2116, 1.0
    %v2119 = vadd.f32 %v2117, 1.0
    %v2120 = vmul.f32 %v2104, %v2118
    %v2121 = vmul.f32 %v2105, %v2119
    %v2122 = vld [vmem:[%s12] sm:$0xff]
    %v2123 = vld [vmem:[%s12 + $0x8] sm:$0xff]
    %v2124 = vld [vmem:[%s12 + $0x10] sm:$0xff]
    %v2125 = vld [vmem:[%s12 + $0x18] sm:$0xff]
    %v2126 = vld [vmem:[%s12 + $0x20] sm:$0xff]
    %v2127 = vld [vmem:[%s12 + $0x28] sm:$0xff]
    %v2128 = vld [vmem:[%s12 + $0x30] sm:$0xff]
    %v2129 = vld [vmem:[%s12 + $0x38] sm:$0xff]
    %v2130 = vld [vmem:[%s12 + $0x40] sm:$0xff]
    %v2131 = vld [vmem:[%s12 + $0x48] sm:$0xff]
    %v2132 = vld [vmem:[%s12 + $0x50] sm:$0xff]
    %v2133 = vld [vmem:[%s12 + $0x58] sm:$0xff]
    %v2134 = vld [vmem:[%s12 + $0x60] sm:$0xff]
    %v2135 = vld [vmem:[%s12 + $0x68] sm:$0xff]
    %v2136 = vld [vmem:[%s12 + $0x70] sm:$0xff]
    %v2137 = vld [vmem:[%s12 + $0x78] sm:$0xff]
    %v2138 = vld [vmem:[%s13] sm:$0x1]
    %v2140 = vperm.slane %v2138, 0
    %2142 = vmatpush.msra.mxu0 %v2137
    %2143 = vmatpush.msra.mxu0 %v2136
    %2144 = vmatpush.msra.mxu0 %v2135
    %2145 = vmatpush.msra.mxu0 %v2134
    %2146 = vmatpush.msra.mxu0 %v2133
    %2147 = vmatpush.msra.mxu0 %v2132
    %2148 = vmatpush.msra.mxu0 %v2131
    %2149 = vmatpush.msra.mxu0 %v2130
    %2150 = vmatpush.msra.mxu0 %v2129
    %2151 = vmatpush.msra.mxu0 %v2128
    %2152 = vmatpush.msra.mxu0 %v2127
    %2153 = vmatpush.msra.mxu0 %v2126
    %2154 = vmatpush.msra.mxu0 %v2125
    %2155 = vmatpush.msra.mxu0 %v2124
    %2156 = vmatpush.msra.mxu0 %v2123
    %2157 = vmatpush.msra.mxu0 %v2122
    %2158 = vmatmul.f32.gmra.mxu0 %v2120
    %v2159 = vpop.f32.mrf.mxu0
    %v2160 = vadd.f32 %v2140, %v2159
    %2161 = vmatmul.f32.gmra.mxu0 %v2121
    %v2162 = vpop.f32.mrf.mxu0
    %v2163 = vadd.f32 %v2140, %v2162
    %2164 = vdwg.mxu0
    %2166 = vrot.lane.b32.xlu0 %v2064, 96
    %v2167 = vpop.permute.xlu0 %2166
    %v2169 = vmul.f32 %v2160, %v2167
    %v2170 = vmul.f32 %v2163, %v2167
    %v2171 = vadd.f32 %v2012, %v2169
    %v2172 = vadd.f32 %v2013, %v2170
    %s2173 = scalar_lea.vmem [#allocation13], 16
    %2174 = vst.msk [vmem:[%s2173] sm:$0xff] %vm160, %v2171
    %2175 = vst.msk [vmem:[%s2173 + $0x8] sm:$0xff] %vm160, %v2172
    %v2176 = vld [vmem:[#allocation3 + $0x10] sm:$0xff]
    %s2177 = scalar_lea.vmem %s8, 32
    %v2178 = vld [vmem:[%s2177] sm:$0xff]
    %v2179 = vld [vmem:[%s2177 + $0x8] sm:$0xff]
    %v2180 = vld [vmem:[%s2177 + $0x10] sm:$0xff]
    %v2181 = vld [vmem:[%s2177 + $0x18] sm:$0xff]
    %s2182 = scalar_lea.vmem %s9, 1
    %v2183 = vld [vmem:[%s2182] sm:$0x1]
    %v2185 = vperm.slane %v2183, 0
    %v2188 = vsel %vm160, %v2176, 0
    %2190 = vmatpush.msra.mxu0 0.0
    %2191 = vmatpush.msra.mxu0 0.0
    %2192 = vmatpush.msra.mxu0 0.0
    %2193 = vmatpush.msra.mxu0 0.0
    %2194 = vmatpush.msra.mxu0 0.0
    %2195 = vmatpush.msra.mxu0 0.0
    %2196 = vmatpush.msra.mxu0 0.0
    %2197 = vmatpush.msra.mxu0 0.0
    %2198 = vmatpush.msra.mxu0 0.0
    %2199 = vmatpush.msra.mxu0 0.0
    %2200 = vmatpush.msra.mxu0 0.0
    %2201 = vmatpush.msra.mxu0 0.0
    %2202 = vmatpush.msra.mxu0 %v2181
    %2203 = vmatpush.msra.mxu0 %v2180
    %2204 = vmatpush.msra.mxu0 %v2179
    %2205 = vmatpush.msra.mxu0 %v2178
    %2206 = vmatmul.f32.gmra.mxu0 %v2188
    %v2207 = vpop.f32.mrf.mxu0
    %v2208 = vadd.f32 %v2185, %v2207
    %2209 = vdwg.mxu0
    %v2210 = vld [vmem:[#allocation7] sm:$0xff]
    %2211 = vrot.lane.b32.xlu0 %v511, 64
    %v2212 = vpop.permute.xlu0 %2211
    %v2214 = vmul.f32 %v2208, %v2212
    %v2215 = vadd.f32 %v2210, %v2214
    %v2216 = vsel %vm160, %v2215, 0.0
    %2217 = vadd.xlane.f32.xlu0 %v2216
    %v2218 = vpop.xlane.xlu0 %2217
    %v2219 = vmul.f32 %v2218, %v298
    %v2220 = vsub.f32 %v2215, %v2219
    %v2221 = vmul.f32 %v2220, %v2220
    %v2222 = vsel %vm160, %v2221, 0.0
    %2223 = vadd.xlane.f32.xlu0 %v2222
    %v2224 = vpop.xlane.xlu0 %2223
    %v2225 = vmul.f32 %v2224, %v298
    %v2226 = vadd.f32 %v2225, 1e-06
    %v2227 = vrsqrt.pop %v2226
    %v2228 = vmul.f32 %v2227, %v2226
    %v2229 = vmul.f32 %v2228, %v2227
    %v2230 = vmul.f32 0.5, %v2229
    %v2231 = vsub.f32 1.5, %v2230
    %v2232 = vmul.f32 %v2227, %v2231
    %vm2233 = vweird.f32 %v2226
    %vm2234 = vweird.f32 %v2227
    %vm2235 = vmor %vm2233, %vm2234
    %v2236 = vsel %vm2235, %v2227, %v2232
    %v2237 = vmul.f32 %v2220, %v2236
    %2239 = vrot.lane.b32.xlu0 %v509, 32
    %v2240 = vpop.permute.xlu0 %2239
    %v2242 = vmul.f32 %v2237, %v2240
    %v2243 = vperm.slane %v282, 0
    %v2244 = vadd.f32 %v2242, %v2243
    %s2245 = scalar_lea.vmem %s10, 32
    %v2246 = vld [vmem:[%s2245] sm:$0xff]
    %v2247 = vld [vmem:[%s2245 + $0x8] sm:$0xff]
    %v2248 = vld [vmem:[%s2245 + $0x10] sm:$0xff]
    %v2249 = vld [vmem:[%s2245 + $0x18] sm:$0xff]
    %s2250 = scalar_lea.vmem %s11, 1
    %v2251 = vld [vmem:[%s2250] sm:$0x1]
    %v2253 = vperm.slane %v2251, 0
    %v2256 = vsel %vm160, %v2244, 0
    %2258 = vmatpush.msra.mxu0 0.0
    %2259 = vmatpush.msra.mxu0 0.0
    %2260 = vmatpush.msra.mxu0 0.0
    %2261 = vmatpush.msra.mxu0 0.0
    %2262 = vmatpush.msra.mxu0 0.0
    %2263 = vmatpush.msra.mxu0 0.0
    %2264 = vmatpush.msra.mxu0 0.0
    %2265 = vmatpush.msra.mxu0 0.0
    %2266 = vmatpush.msra.mxu0 0.0
    %2267 = vmatpush.msra.mxu0 0.0
    %2268 = vmatpush.msra.mxu0 0.0
    %2269 = vmatpush.msra.mxu0 0.0
    %2270 = vmatpush.msra.mxu0 %v2249
    %2271 = vmatpush.msra.mxu0 %v2248
    %2272 = vmatpush.msra.mxu0 %v2247
    %2273 = vmatpush.msra.mxu0 %v2246
    %2274 = vmatmul.f32.gmra.mxu0 %v2256
    %v2275 = vpop.f32.mrf.mxu0
    %v2276 = vadd.f32 %v2253, %v2275
    %2277 = vdwg.mxu0
    %v2278 = vmul.f32 %v2276, 0.5
    %v2279 = vmul.f32 %v2276, 0.044715
    %v2280 = vmul.f32 %v2279, %v2276
    %v2281 = vmul.f32 %v2280, %v2276
    %v2282 = vadd.f32 %v2276, %v2281
    %v2283 = vmul.f32 %v2282, 0.7978846
    %v2284 = vtanh.pop %v2283
    %v2285 = vadd.f32 %v2284, 1.0
    %v2286 = vmul.f32 %v2278, %v2285
    %s2287 = scalar_lea.vmem %s12, 128
    %v2288 = vld [vmem:[%s2287] sm:$0xff]
    %v2289 = vld [vmem:[%s2287 + $0x8] sm:$0xff]
    %v2290 = vld [vmem:[%s2287 + $0x10] sm:$0xff]
    %v2291 = vld [vmem:[%s2287 + $0x18] sm:$0xff]
    %v2292 = vld [vmem:[%s2287 + $0x20] sm:$0xff]
    %v2293 = vld [vmem:[%s2287 + $0x28] sm:$0xff]
    %v2294 = vld [vmem:[%s2287 + $0x30] sm:$0xff]
    %v2295 = vld [vmem:[%s2287 + $0x38] sm:$0xff]
    %v2296 = vld [vmem:[%s2287 + $0x40] sm:$0xff]
    %v2297 = vld [vmem:[%s2287 + $0x48] sm:$0xff]
    %v2298 = vld [vmem:[%s2287 + $0x50] sm:$0xff]
    %v2299 = vld [vmem:[%s2287 + $0x58] sm:$0xff]
    %v2300 = vld [vmem:[%s2287 + $0x60] sm:$0xff]
    %v2301 = vld [vmem:[%s2287 + $0x68] sm:$0xff]
    %v2302 = vld [vmem:[%s2287 + $0x70] sm:$0xff]
    %v2303 = vld [vmem:[%s2287 + $0x78] sm:$0xff]
    %s2304 = scalar_lea.vmem %s13, 1
    %v2305 = vld [vmem:[%s2304] sm:$0x1]
    %v2307 = vperm.slane %v2305, 0
    %2309 = vmatpush.msra.mxu0 %v2303
    %2310 = vmatpush.msra.mxu0 %v2302
    %2311 = vmatpush.msra.mxu0 %v2301
    %2312 = vmatpush.msra.mxu0 %v2300
    %2313 = vmatpush.msra.mxu0 %v2299
    %2314 = vmatpush.msra.mxu0 %v2298
    %2315 = vmatpush.msra.mxu0 %v2297
    %2316 = vmatpush.msra.mxu0 %v2296
    %2317 = vmatpush.msra.mxu0 %v2295
    %2318 = vmatpush.msra.mxu0 %v2294
    %2319 = vmatpush.msra.mxu0 %v2293
    %2320 = vmatpush.msra.mxu0 %v2292
    %2321 = vmatpush.msra.mxu0 %v2291
    %2322 = vmatpush.msra.mxu0 %v2290
    %2323 = vmatpush.msra.mxu0 %v2289
    %2324 = vmatpush.msra.mxu0 %v2288
    %2325 = vmatmul.f32.gmra.mxu0 %v2286
    %v2326 = vpop.f32.mrf.mxu0
    %v2327 = vadd.f32 %v2307, %v2326
    %2328 = vdwg.mxu0
    %2330 = vrot.lane.b32.xlu0 %v2243, 96
    %v2331 = vpop.permute.xlu0 %2330
    %v2333 = vmul.f32 %v2327, %v2331
    %v2334 = vadd.f32 %v2215, %v2333
    %2335 = vst.msk [vmem:[#allocation14] sm:$0xff] %vm160, %v2334
    %v2336 = vld [vmem:[%s1318 + $0x10] sm:$0xff]
    %v2337 = vld [vmem:[%s2177] sm:$0xff]
    %v2338 = vld [vmem:[%s2177 + $0x8] sm:$0xff]
    %v2339 = vld [vmem:[%s2177 + $0x10] sm:$0xff]
    %v2340 = vld [vmem:[%s2177 + $0x18] sm:$0xff]
    %v2341 = vld [vmem:[%s2182] sm:$0x1]
    %v2343 = vperm.slane %v2341, 0
    %v2346 = vsel %vm160, %v2336, 0
    %2348 = vmatpush.msra.mxu0 0.0
    %2349 = vmatpush.msra.mxu0 0.0
    %2350 = vmatpush.msra.mxu0 0.0
    %2351 = vmatpush.msra.mxu0 0.0
    %2352 = vmatpush.msra.mxu0 0.0
    %2353 = vmatpush.msra.mxu0 0.0
    %2354 = vmatpush.msra.mxu0 0.0
    %2355 = vmatpush.msra.mxu0 0.0
    %2356 = vmatpush.msra.mxu0 0.0
    %2357 = vmatpush.msra.mxu0 0.0
    %2358 = vmatpush.msra.mxu0 0.0
    %2359 = vmatpush.msra.mxu0 0.0
    %2360 = vmatpush.msra.mxu0 %v2340
    %2361 = vmatpush.msra.mxu0 %v2339
    %2362 = vmatpush.msra.mxu0 %v2338
    %2363 = vmatpush.msra.mxu0 %v2337
    %2364 = vmatmul.f32.gmra.mxu0 %v2346
    %v2365 = vpop.f32.mrf.mxu0
    %v2366 = vadd.f32 %v2343, %v2365
    %2367 = vdwg.mxu0
    %v2368 = vld [vmem:[%s551] sm:$0xff]
    %2369 = vrot.lane.b32.xlu0 %v577, 64
    %v2370 = vpop.permute.xlu0 %2369
    %v2372 = vmul.f32 %v2366, %v2370
    %v2373 = vadd.f32 %v2368, %v2372
    %v2374 = vsel %vm160, %v2373, 0.0
    %2375 = vadd.xlane.f32.xlu0 %v2374
    %v2376 = vpop.xlane.xlu0 %2375
    %v2377 = vmul.f32 %v2376, %v298
    %v2378 = vsub.f32 %v2373, %v2377
    %v2379 = vmul.f32 %v2378, %v2378
    %v2380 = vsel %vm160, %v2379, 0.0
    %2381 = vadd.xlane.f32.xlu0 %v2380
    %v2382 = vpop.xlane.xlu0 %2381
    %v2383 = vmul.f32 %v2382, %v298
    %v2384 = vadd.f32 %v2383, 1e-06
    %v2385 = vrsqrt.pop %v2384
    %v2386 = vmul.f32 %v2385, %v2384
    %v2387 = vmul.f32 %v2386, %v2385
    %v2388 = vmul.f32 0.5, %v2387
    %v2389 = vsub.f32 1.5, %v2388
    %v2390 = vmul.f32 %v2385, %v2389
    %vm2391 = vweird.f32 %v2384
    %vm2392 = vweird.f32 %v2385
    %vm2393 = vmor %vm2391, %vm2392
    %v2394 = vsel %vm2393, %v2385, %v2390
    %v2395 = vmul.f32 %v2378, %v2394
    %2397 = vrot.lane.b32.xlu0 %v575, 32
    %v2398 = vpop.permute.xlu0 %2397
    %v2400 = vmul.f32 %v2395, %v2398
    %v2401 = vperm.slane %v282, 1
    %v2402 = vadd.f32 %v2400, %v2401
    %v2403 = vld [vmem:[%s2245] sm:$0xff]
    %v2404 = vld [vmem:[%s2245 + $0x8] sm:$0xff]
    %v2405 = vld [vmem:[%s2245 + $0x10] sm:$0xff]
    %v2406 = vld [vmem:[%s2245 + $0x18] sm:$0xff]
    %v2407 = vld [vmem:[%s2250] sm:$0x1]
    %v2409 = vperm.slane %v2407, 0
    %v2412 = vsel %vm160, %v2402, 0
    %2414 = vmatpush.msra.mxu0 0.0
    %2415 = vmatpush.msra.mxu0 0.0
    %2416 = vmatpush.msra.mxu0 0.0
    %2417 = vmatpush.msra.mxu0 0.0
    %2418 = vmatpush.msra.mxu0 0.0
    %2419 = vmatpush.msra.mxu0 0.0
    %2420 = vmatpush.msra.mxu0 0.0
    %2421 = vmatpush.msra.mxu0 0.0
    %2422 = vmatpush.msra.mxu0 0.0
    %2423 = vmatpush.msra.mxu0 0.0
    %2424 = vmatpush.msra.mxu0 0.0
    %2425 = vmatpush.msra.mxu0 0.0
    %2426 = vmatpush.msra.mxu0 %v2406
    %2427 = vmatpush.msra.mxu0 %v2405
    %2428 = vmatpush.msra.mxu0 %v2404
    %2429 = vmatpush.msra.mxu0 %v2403
    %2430 = vmatmul.f32.gmra.mxu0 %v2412
    %v2431 = vpop.f32.mrf.mxu0
    %v2432 = vadd.f32 %v2409, %v2431
    %2433 = vdwg.mxu0
    %v2434 = vmul.f32 %v2432, 0.5
    %v2435 = vmul.f32 %v2432, 0.044715
    %v2436 = vmul.f32 %v2435, %v2432
    %v2437 = vmul.f32 %v2436, %v2432
    %v2438 = vadd.f32 %v2432, %v2437
    %v2439 = vmul.f32 %v2438, 0.7978846
    %v2440 = vtanh.pop %v2439
    %v2441 = vadd.f32 %v2440, 1.0
    %v2442 = vmul.f32 %v2434, %v2441
    %v2443 = vld [vmem:[%s2287] sm:$0xff]
    %v2444 = vld [vmem:[%s2287 + $0x8] sm:$0xff]
    %v2445 = vld [vmem:[%s2287 + $0x10] sm:$0xff]
    %v2446 = vld [vmem:[%s2287 + $0x18] sm:$0xff]
    %v2447 = vld [vmem:[%s2287 + $0x20] sm:$0xff]
    %v2448 = vld [vmem:[%s2287 + $0x28] sm:$0xff]
    %v2449 = vld [vmem:[%s2287 + $0x30] sm:$0xff]
    %v2450 = vld [vmem:[%s2287 + $0x38] sm:$0xff]
    %v2451 = vld [vmem:[%s2287 + $0x40] sm:$0xff]
    %v2452 = vld [vmem:[%s2287 + $0x48] sm:$0xff]
    %v2453 = vld [vmem:[%s2287 + $0x50] sm:$0xff]
    %v2454 = vld [vmem:[%s2287 + $0x58] sm:$0xff]
    %v2455 = vld [vmem:[%s2287 + $0x60] sm:$0xff]
    %v2456 = vld [vmem:[%s2287 + $0x68] sm:$0xff]
    %v2457 = vld [vmem:[%s2287 + $0x70] sm:$0xff]
    %v2458 = vld [vmem:[%s2287 + $0x78] sm:$0xff]
    %v2459 = vld [vmem:[%s2304] sm:$0x1]
    %v2461 = vperm.slane %v2459, 0
    %2463 = vmatpush.msra.mxu0 %v2458
    %2464 = vmatpush.msra.mxu0 %v2457
    %2465 = vmatpush.msra.mxu0 %v2456
    %2466 = vmatpush.msra.mxu0 %v2455
    %2467 = vmatpush.msra.mxu0 %v2454
    %2468 = vmatpush.msra.mxu0 %v2453
    %2469 = vmatpush.msra.mxu0 %v2452
    %2470 = vmatpush.msra.mxu0 %v2451
    %2471 = vmatpush.msra.mxu0 %v2450
    %2472 = vmatpush.msra.mxu0 %v2449
    %2473 = vmatpush.msra.mxu0 %v2448
    %2474 = vmatpush.msra.mxu0 %v2447
    %2475 = vmatpush.msra.mxu0 %v2446
    %2476 = vmatpush.msra.mxu0 %v2445
    %2477 = vmatpush.msra.mxu0 %v2444
    %2478 = vmatpush.msra.mxu0 %v2443
    %2479 = vmatmul.f32.gmra.mxu0 %v2442
    %v2480 = vpop.f32.mrf.mxu0
    %v2481 = vadd.f32 %v2461, %v2480
    %2482 = vdwg.mxu0
    %2484 = vrot.lane.b32.xlu0 %v2401, 96
    %v2485 = vpop.permute.xlu0 %2484
    %v2487 = vmul.f32 %v2481, %v2485
    %v2488 = vadd.f32 %v2373, %v2487
    %s2489 = scalar_lea.vmem [#allocation14], 8
    %2490 = vst.msk [vmem:[%s2489] sm:$0xff] %vm160, %v2488
    // Predicated region
    $region78: #{tpu_custom_call.1} parent=1 // pred_check
      _
    $region79: #{tpu_custom_call.1} parent=1 // pred_check_branch
      %2492 = sbr.rel (0) target = $region81
    $region80: #{tpu_custom_call.1} parent=1 // pred_region
      %2494 = vsyncadd [#allocation6], 0
      %s2495 = sshll.u32 [#allocation13], 4
      %s2496 = int_to_ptr.vmem [resolvable:$true] %s2495
      %s2497 = sshll.u32 %s14, 4
      %s2498 = int_to_ptr.hbm [resolvable:$true] %s2497
      %2503 = dma.vmem_to_hbm [thread:$0]  %s2496, 512, %s2498, [#allocation6], 128, 128, 8
    $region81: #{tpu_custom_call.1} parent=1 // pred_fallthru
      _
    // Predicated region
    $region82: #{tpu_custom_call.1} parent=1 // pred_check
      _
    $region83: #{tpu_custom_call.1} parent=1 // pred_check_branch
      %2505 = sbr.rel (0) target = $region85
    $region84: #{tpu_custom_call.1} parent=1 // pred_region
      %2507 = vsyncadd [#allocation15], 0
      %s2508 = sshll.u32 [#allocation14], 4
      %s2509 = int_to_ptr.vmem [resolvable:$true] %s2508
      %s2510 = sshll.u32 %s15, 4
      %s2511 = int_to_ptr.hbm [resolvable:$true] %s2510
      %2516 = dma.vmem_to_hbm [thread:$0]  %s2509, 256, %s2511, [#allocation15], 128, 128, 8
    $region85: #{tpu_custom_call.1} parent=1 // pred_fallthru
      _
    // Predicated region
    $region86: #{tpu_custom_call.1} parent=1 // pred_check
      _
    $region87: #{tpu_custom_call.1} parent=1 // pred_check_branch
      %2518 = sbr.rel (0) target = $region89
    $region88: #{tpu_custom_call.1} parent=1 // pred_region
      %2520 = dma.done [#allocation6], 512
    $region89: #{tpu_custom_call.1} parent=1 // pred_fallthru
      _
    // Predicated region
    $region90: #{tpu_custom_call.1} parent=1 // pred_check
      _
    $region91: #{tpu_custom_call.1} parent=1 // pred_check_branch
      %2522 = sbr.rel (0) target = $region93
    $region92: #{tpu_custom_call.1} parent=1 // pred_region
      %2524 = dma.done [#allocation15], 256
    $region93: #{tpu_custom_call.1} parent=1 // pred_fallthru
      _
    %2525 = vsyncpa [#allocation5], 1
    %2526 = vsyncpa [#allocation8], 1
    %2527 = vsyncpa [#allocation11], 1
    %2528 = vsyncpa [#allocation6], 1
    %2529 = vsyncpa [#allocation15], 1

</llo_original>
